<compile_context>
chip_gen: v5e
topology: v5e:2x2
jax: 0.10.0
libtpu: 0.0.40
codegen_flags: <defaults>
</compile_context>

<pallas_src>
import jax
import jax.numpy as jnp
from jax.experimental import pallas as pl
from jax.experimental.pallas import tpu as pltpu

_LANE = 128
_SUBLANE = 8


def _round_up(n, m):
    return ((n + m - 1) // m) * m


def mlp_kernel(x_ref,
               w1_ref, b1_ref,
               w2_ref, b2_ref,
               w3_ref, b3_ref,
               w4_ref, b4_ref,
               w5_ref, b5_ref,
               o_ref):
    # TODO(synk): dropout is stochastic in train mode; implemented as eval-mode identity.
    def layer(h_bf16, w_ref, b_ref):
        # bf16 x bf16 MXU matmul with f32 accumulation; bias stays f32.
        return jnp.dot(h_bf16, w_ref[...],
                       preferred_element_type=jnp.float32) + b_ref[...]

    # ReLU is done in f32 on the VPU (cheap everywhere, required for v5e which
    # has no bf16 VPU); re-cast to bf16 only at the MXU inputs.
    h = layer(x_ref[...], w1_ref, b1_ref)
    h = layer(jnp.maximum(h, 0.0).astype(jnp.bfloat16), w2_ref, b2_ref)
    h = layer(jnp.maximum(h, 0.0).astype(jnp.bfloat16), w3_ref, b3_ref)
    h = layer(jnp.maximum(h, 0.0).astype(jnp.bfloat16), w4_ref, b4_ref)
    h = layer(jnp.maximum(h, 0.0).astype(jnp.bfloat16), w5_ref, b5_ref)
    o_ref[...] = h.astype(o_ref.dtype)


def net_forward(x, params, *, tb=256):
    """x: (B, input_size) f32.  params: list of (W (in,out) f32, b (1,out) f32)."""
    B, in_features = x.shape
    out_features = params[-1][0].shape[1]
    n_layers = len(params)

    # --- feature padding: aligned K for the first dot, lane-dense output slab ---
    k_pad = _round_up(max(in_features, _LANE), _LANE)
    out_pad = _round_up(max(out_features, _LANE), _LANE)

    # --- batch tile: sublane-aligned, as large as the (padded) batch permits ---
    b_pad8 = _round_up(B, _SUBLANE)
    tb_eff = min(_round_up(tb, _SUBLANE), b_pad8)
    # v7x has 2 TensorCores: keep at least 2 parallel batch tiles when possible.
    if b_pad8 >= 2 * _SUBLANE and _round_up(B, tb_eff) // tb_eff < 2:
        tb_eff = _round_up(b_pad8 // 2, _SUBLANE)
    b_pad = _round_up(B, tb_eff)
    n_tiles = b_pad // tb_eff  # == pl.cdiv(b_pad, tb_eff)

    # --- host-side prep: zero-pad, cast weights/activations to bf16 ---
    x_p = jnp.zeros((b_pad, k_pad), jnp.bfloat16).at[:B, :in_features].set(
        x.astype(jnp.bfloat16))

    prepped = []
    for li, (w, b) in enumerate(params):
        fin, fout = w.shape
        fin_p = k_pad if li == 0 else fin
        fout_p = out_pad if li == n_layers - 1 else fout
        w_p = jnp.zeros((fin_p, fout_p), jnp.bfloat16).at[:fin, :fout].set(
            w.astype(jnp.bfloat16))
        b_p = jnp.zeros((1, fout_p), jnp.float32).at[:, :fout].set(
            b.reshape(1, -1).astype(jnp.float32))
        prepped.append((w_p, b_p))
    flat_params = [a for wb in prepped for a in wb]

    def _const_spec(shape, single_buffer):
        # Weights / biases are grid-invariant (block index always (0, 0)).
        if single_buffer:
            return pl.BlockSpec(shape, lambda i: (0, 0),
                                pipeline_mode=pl.Buffered(1))
        return pl.BlockSpec(shape, lambda i: (0, 0))

    def _call(single_buffer):
        in_specs = [pl.BlockSpec((tb_eff, k_pad), lambda i: (i, 0))]
        for (w_p, b_p) in prepped:
            in_specs.append(_const_spec(w_p.shape, single_buffer))
            in_specs.append(_const_spec(b_p.shape, single_buffer))
        out = pl.pallas_call(
            mlp_kernel,
            out_shape=jax.ShapeDtypeStruct((b_pad, out_pad), jnp.float32),
            grid_spec=pltpu.PrefetchScalarGridSpec(
                num_scalar_prefetch=0,
                grid=(n_tiles,),
                in_specs=in_specs,
                out_specs=pl.BlockSpec((tb_eff, out_pad), lambda i: (i, 0)),
            ),
            compiler_params=pltpu.CompilerParams(
                dimension_semantics=("parallel",),
                vmem_limit_bytes=32 * 1024 * 1024),
        )(x_p, *flat_params)
        return jax.block_until_ready(out)

    try:
        out_p = _call(single_buffer=True)
    except Exception:
        # pipeline_mode=pl.Buffered(1) not supported by this jax/Mosaic build;
        # fall back to default (double-buffered) weight specs.
        out_p = _call(single_buffer=False)

    return out_p[:B, :out_features]


def init_linear(key, fan_in, fan_out):
    # Mimic PyTorch nn.Linear default init: U(-1/sqrt(fan_in), 1/sqrt(fan_in)).
    kw, kb = jax.random.split(key)
    bound = 1.0 / jnp.sqrt(jnp.float32(fan_in))
    w = jax.random.uniform(kw, (fan_in, fan_out), jnp.float32, -bound, bound)
    b = jax.random.uniform(kb, (1, fan_out), jnp.float32, -bound, bound)
    return w, b


def reference_forward(x, params):
    # Pure-JAX reference with the same bf16 rounding of dot operands + f32 accum.
    h = x
    for i, (w, b) in enumerate(params):
        h_bf = h.astype(jnp.bfloat16).astype(jnp.float32)
        w_bf = w.astype(jnp.bfloat16).astype(jnp.float32)
        h = jnp.dot(h_bf, w_bf, preferred_element_type=jnp.float32) + b
        if i < len(params) - 1:
            h = jnp.maximum(h, 0.0)
    return h


if __name__ == "__main__":
    input_size = 32
    output_size = 8
    batch = 13  # deliberately not a multiple of 8 to exercise the padding path

    key = jax.random.PRNGKey(0)
    keys = jax.random.split(key, 6)
    x = jax.random.normal(keys[0], (batch, input_size), jnp.float32)

    dims = [(input_size, 256), (256, 512), (512, 256), (256, 128), (128, output_size)]
    params = [init_linear(keys[i + 1], fin, fout) for i, (fin, fout) in enumerate(dims)]

    out = net_forward(x, params)
    out = jax.block_until_ready(out)

    ref = reference_forward(x, params)
    assert out.shape == (batch, output_size)
    assert jnp.allclose(out, ref, atol=2e-2, rtol=2e-2), float(jnp.max(jnp.abs(out - ref)))
    print("KERNEL_OK")
</pallas_src>

<mosaic_0001>
module attributes {stable_mosaic.version = 11 : i64} {
  func.func @mlp_kernel(%arg0: i32, %arg1: memref<8x128xbf16, #tpu.memory_space<vmem>>, %arg2: memref<128x256xbf16, #tpu.memory_space<vmem>>, %arg3: memref<1x256xf32, #tpu.memory_space<vmem>>, %arg4: memref<256x512xbf16, #tpu.memory_space<vmem>>, %arg5: memref<1x512xf32, #tpu.memory_space<vmem>>, %arg6: memref<512x256xbf16, #tpu.memory_space<vmem>>, %arg7: memref<1x256xf32, #tpu.memory_space<vmem>>, %arg8: memref<256x128xbf16, #tpu.memory_space<vmem>>, %arg9: memref<1x128xf32, #tpu.memory_space<vmem>>, %arg10: memref<128x128xbf16, #tpu.memory_space<vmem>>, %arg11: memref<1x128xf32, #tpu.memory_space<vmem>>, %arg12: memref<8x128xf32, #tpu.memory_space<vmem>>) attributes {dimension_semantics = [#tpu.dimension_semantics<parallel>], iteration_bounds = array<i64: 2>, scalar_prefetch = 0 : i64, scratch_operands = 0 : i64, tpu.core_type = #tpu.core_type<tc>, window_params = [{transform_indices = @transform_0, window_bounds = array<i64: 8, 128>}, {pipeline_mode = #tpu.pipeline_mode<synchronous>, transform_indices = @transform_1, window_bounds = array<i64: 128, 256>}, {pipeline_mode = #tpu.pipeline_mode<synchronous>, transform_indices = @transform_2, window_bounds = array<i64: 1, 256>}, {pipeline_mode = #tpu.pipeline_mode<synchronous>, transform_indices = @transform_3, window_bounds = array<i64: 256, 512>}, {pipeline_mode = #tpu.pipeline_mode<synchronous>, transform_indices = @transform_4, window_bounds = array<i64: 1, 512>}, {pipeline_mode = #tpu.pipeline_mode<synchronous>, transform_indices = @transform_5, window_bounds = array<i64: 512, 256>}, {pipeline_mode = #tpu.pipeline_mode<synchronous>, transform_indices = @transform_6, window_bounds = array<i64: 1, 256>}, {pipeline_mode = #tpu.pipeline_mode<synchronous>, transform_indices = @transform_7, window_bounds = array<i64: 256, 128>}, {pipeline_mode = #tpu.pipeline_mode<synchronous>, transform_indices = @transform_8, window_bounds = array<i64: 1, 128>}, {pipeline_mode = #tpu.pipeline_mode<synchronous>, transform_indices = @transform_9, window_bounds = array<i64: 128, 128>}, {pipeline_mode = #tpu.pipeline_mode<synchronous>, transform_indices = @transform_10, window_bounds = array<i64: 1, 128>}, {transform_indices = @transform_11, window_bounds = array<i64: 8, 128>}]} {
    %c0 = arith.constant 0 : index
    %c0_0 = arith.constant 0 : index
    %0 = vector.load %arg1[%c0, %c0_0] : memref<8x128xbf16, #tpu.memory_space<vmem>>, vector<8x128xbf16>
    %c0_1 = arith.constant 0 : index
    %c0_2 = arith.constant 0 : index
    %1 = vector.load %arg2[%c0_1, %c0_2] : memref<128x256xbf16, #tpu.memory_space<vmem>>, vector<128x256xbf16>
    %cst = arith.constant dense<0.000000e+00> : vector<8x256xf32>
    %2 = tpu.matmul %0, %1, %cst {dimension_numbers = #tpu.dot_dimension_numbers<[1], [0], [0], [1], [0, 0, 1, 1], [], []>} : vector<8x128xbf16>, vector<128x256xbf16>, vector<8x256xf32> -> vector<8x256xf32>
    %c0_3 = arith.constant 0 : index
    %c0_4 = arith.constant 0 : index
    %3 = vector.load %arg3[%c0_3, %c0_4] : memref<1x256xf32, #tpu.memory_space<vmem>>, vector<1x256xf32>
    %4 = vector.broadcast %3 : vector<1x256xf32> to vector<8x256xf32>
    %5 = arith.addf %2, %4 : vector<8x256xf32>
    %cst_5 = arith.constant 0.000000e+00 : f32
    %6 = vector.broadcast %cst_5 : f32 to vector<8x256xf32>
    %7 = arith.maximumf %5, %6 : vector<8x256xf32>
    %8 = arith.truncf %7 : vector<8x256xf32> to vector<8x256xbf16>
    %c0_6 = arith.constant 0 : index
    %c0_7 = arith.constant 0 : index
    %9 = vector.load %arg4[%c0_6, %c0_7] : memref<256x512xbf16, #tpu.memory_space<vmem>>, vector<256x512xbf16>
    %cst_8 = arith.constant dense<0.000000e+00> : vector<8x512xf32>
    %10 = tpu.matmul %8, %9, %cst_8 {dimension_numbers = #tpu.dot_dimension_numbers<[1], [0], [0], [1], [0, 0, 1, 1], [], []>} : vector<8x256xbf16>, vector<256x512xbf16>, vector<8x512xf32> -> vector<8x512xf32>
    %c0_9 = arith.constant 0 : index
    %c0_10 = arith.constant 0 : index
    %11 = vector.load %arg5[%c0_9, %c0_10] : memref<1x512xf32, #tpu.memory_space<vmem>>, vector<1x512xf32>
    %12 = vector.broadcast %11 : vector<1x512xf32> to vector<8x512xf32>
    %13 = arith.addf %10, %12 : vector<8x512xf32>
    %cst_11 = arith.constant 0.000000e+00 : f32
    %14 = vector.broadcast %cst_11 : f32 to vector<8x512xf32>
    %15 = arith.maximumf %13, %14 : vector<8x512xf32>
    %16 = arith.truncf %15 : vector<8x512xf32> to vector<8x512xbf16>
    %c0_12 = arith.constant 0 : index
    %c0_13 = arith.constant 0 : index
    %17 = vector.load %arg6[%c0_12, %c0_13] : memref<512x256xbf16, #tpu.memory_space<vmem>>, vector<512x256xbf16>
    %cst_14 = arith.constant dense<0.000000e+00> : vector<8x256xf32>
    %18 = tpu.matmul %16, %17, %cst_14 {dimension_numbers = #tpu.dot_dimension_numbers<[1], [0], [0], [1], [0, 0, 1, 1], [], []>} : vector<8x512xbf16>, vector<512x256xbf16>, vector<8x256xf32> -> vector<8x256xf32>
    %c0_15 = arith.constant 0 : index
    %c0_16 = arith.constant 0 : index
    %19 = vector.load %arg7[%c0_15, %c0_16] : memref<1x256xf32, #tpu.memory_space<vmem>>, vector<1x256xf32>
    %20 = vector.broadcast %19 : vector<1x256xf32> to vector<8x256xf32>
    %21 = arith.addf %18, %20 : vector<8x256xf32>
    %cst_17 = arith.constant 0.000000e+00 : f32
    %22 = vector.broadcast %cst_17 : f32 to vector<8x256xf32>
    %23 = arith.maximumf %21, %22 : vector<8x256xf32>
    %24 = arith.truncf %23 : vector<8x256xf32> to vector<8x256xbf16>
    %c0_18 = arith.constant 0 : index
    %c0_19 = arith.constant 0 : index
    %25 = vector.load %arg8[%c0_18, %c0_19] : memref<256x128xbf16, #tpu.memory_space<vmem>>, vector<256x128xbf16>
    %cst_20 = arith.constant dense<0.000000e+00> : vector<8x128xf32>
    %26 = tpu.matmul %24, %25, %cst_20 {dimension_numbers = #tpu.dot_dimension_numbers<[1], [0], [0], [1], [0, 0, 1, 1], [], []>} : vector<8x256xbf16>, vector<256x128xbf16>, vector<8x128xf32> -> vector<8x128xf32>
    %c0_21 = arith.constant 0 : index
    %c0_22 = arith.constant 0 : index
    %27 = vector.load %arg9[%c0_21, %c0_22] : memref<1x128xf32, #tpu.memory_space<vmem>>, vector<1x128xf32>
    %28 = vector.broadcast %27 : vector<1x128xf32> to vector<8x128xf32>
    %29 = arith.addf %26, %28 : vector<8x128xf32>
    %cst_23 = arith.constant 0.000000e+00 : f32
    %30 = vector.broadcast %cst_23 : f32 to vector<8x128xf32>
    %31 = arith.maximumf %29, %30 : vector<8x128xf32>
    %32 = arith.truncf %31 : vector<8x128xf32> to vector<8x128xbf16>
    %c0_24 = arith.constant 0 : index
    %c0_25 = arith.constant 0 : index
    %33 = vector.load %arg10[%c0_24, %c0_25] : memref<128x128xbf16, #tpu.memory_space<vmem>>, vector<128x128xbf16>
    %cst_26 = arith.constant dense<0.000000e+00> : vector<8x128xf32>
    %34 = tpu.matmul %32, %33, %cst_26 {dimension_numbers = #tpu.dot_dimension_numbers<[1], [0], [0], [1], [0, 0, 1, 1], [], []>} : vector<8x128xbf16>, vector<128x128xbf16>, vector<8x128xf32> -> vector<8x128xf32>
    %c0_27 = arith.constant 0 : index
    %c0_28 = arith.constant 0 : index
    %35 = vector.load %arg11[%c0_27, %c0_28] : memref<1x128xf32, #tpu.memory_space<vmem>>, vector<1x128xf32>
    %36 = vector.broadcast %35 : vector<1x128xf32> to vector<8x128xf32>
    %37 = arith.addf %34, %36 : vector<8x128xf32>
    %c0_29 = arith.constant 0 : index
    %c0_30 = arith.constant 0 : index
    %38 = vector.load %arg12[%c0_29, %c0_30] : memref<8x128xf32, #tpu.memory_space<vmem>>, vector<8x128xf32>
    tpu.vector_store %arg12[%c0_29, %c0_30], %37 {strides = array<i32>} : memref<8x128xf32, #tpu.memory_space<vmem>>, vector<8x128xf32>,
    return
  }
  func.func @transform_0(%arg0: i32) -> (i32, i32) {
    %c0_i32 = arith.constant 0 : i32
    %c0_i32_0 = arith.constant 0 : i32
    return %arg0, %c0_i32 : i32, i32
  }
  func.func @transform_1(%arg0: i32) -> (i32, i32) {
    %c0_i32 = arith.constant 0 : i32
    %c0_i32_0 = arith.constant 0 : i32
    %c0_i32_1 = arith.constant 0 : i32
    return %c0_i32, %c0_i32_0 : i32, i32
  }
  func.func @transform_2(%arg0: i32) -> (i32, i32) {
    %c0_i32 = arith.constant 0 : i32
    %c0_i32_0 = arith.constant 0 : i32
    %c0_i32_1 = arith.constant 0 : i32
    return %c0_i32, %c0_i32_0 : i32, i32
  }
  func.func @transform_3(%arg0: i32) -> (i32, i32) {
    %c0_i32 = arith.constant 0 : i32
    %c0_i32_0 = arith.constant 0 : i32
    %c0_i32_1 = arith.constant 0 : i32
    return %c0_i32, %c0_i32_0 : i32, i32
  }
  func.func @transform_4(%arg0: i32) -> (i32, i32) {
    %c0_i32 = arith.constant 0 : i32
    %c0_i32_0 = arith.constant 0 : i32
    %c0_i32_1 = arith.constant 0 : i32
    return %c0_i32, %c0_i32_0 : i32, i32
  }
  func.func @transform_5(%arg0: i32) -> (i32, i32) {
    %c0_i32 = arith.constant 0 : i32
    %c0_i32_0 = arith.constant 0 : i32
    %c0_i32_1 = arith.constant 0 : i32
    return %c0_i32, %c0_i32_0 : i32, i32
  }
  func.func @transform_6(%arg0: i32) -> (i32, i32) {
    %c0_i32 = arith.constant 0 : i32
    %c0_i32_0 = arith.constant 0 : i32
    %c0_i32_1 = arith.constant 0 : i32
    return %c0_i32, %c0_i32_0 : i32, i32
  }
  func.func @transform_7(%arg0: i32) -> (i32, i32) {
    %c0_i32 = arith.constant 0 : i32
    %c0_i32_0 = arith.constant 0 : i32
    %c0_i32_1 = arith.constant 0 : i32
    return %c0_i32, %c0_i32_0 : i32, i32
  }
  func.func @transform_8(%arg0: i32) -> (i32, i32) {
    %c0_i32 = arith.constant 0 : i32
    %c0_i32_0 = arith.constant 0 : i32
    %c0_i32_1 = arith.constant 0 : i32
    return %c0_i32, %c0_i32_0 : i32, i32
  }
  func.func @transform_9(%arg0: i32) -> (i32, i32) {
    %c0_i32 = arith.constant 0 : i32
    %c0_i32_0 = arith.constant 0 : i32
    %c0_i32_1 = arith.constant 0 : i32
    return %c0_i32, %c0_i32_0 : i32, i32
  }
  func.func @transform_10(%arg0: i32) -> (i32, i32) {
    %c0_i32 = arith.constant 0 : i32
    %c0_i32_0 = arith.constant 0 : i32
    %c0_i32_1 = arith.constant 0 : i32
    return %c0_i32, %c0_i32_0 : i32, i32
  }
  func.func @transform_11(%arg0: i32) -> (i32, i32) {
    %c0_i32 = arith.constant 0 : i32
    %c0_i32_0 = arith.constant 0 : i32
    return %arg0, %c0_i32 : i32, i32
  }
}

module attributes {stable_mosaic.version = 11 : i64} {
  func.func @mlp_kernel(%arg0: i32, %arg1: memref<8x128xbf16, #tpu.memory_space<vmem>>, %arg2: memref<128x256xbf16, #tpu.memory_space<vmem>>, %arg3: memref<1x256xf32, #tpu.memory_space<vmem>>, %arg4: memref<256x512xbf16, #tpu.memory_space<vmem>>, %arg5: memref<1x512xf32, #tpu.memory_space<vmem>>, %arg6: memref<512x256xbf16, #tpu.memory_space<vmem>>, %arg7: memref<1x256xf32, #tpu.memory_space<vmem>>, %arg8: memref<256x128xbf16, #tpu.memory_space<vmem>>, %arg9: memref<1x128xf32, #tpu.memory_space<vmem>>, %arg10: memref<128x128xbf16, #tpu.memory_space<vmem>>, %arg11: memref<1x128xf32, #tpu.memory_space<vmem>>, %arg12: memref<8x128xf32, #tpu.memory_space<vmem>>) attributes {dimension_semantics = [#tpu.dimension_semantics<parallel>], iteration_bounds = array<i64: 2>, scalar_prefetch = 0 : i64, scratch_operands = 0 : i64, tpu.core_type = #tpu.core_type<tc>, window_params = [{transform_indices = @transform_0, window_bounds = array<i64: 8, 128>}, {pipeline_mode = #tpu.pipeline_mode<synchronous>, transform_indices = @transform_1, window_bounds = array<i64: 128, 256>}, {pipeline_mode = #tpu.pipeline_mode<synchronous>, transform_indices = @transform_2, window_bounds = array<i64: 1, 256>}, {pipeline_mode = #tpu.pipeline_mode<synchronous>, transform_indices = @transform_3, window_bounds = array<i64: 256, 512>}, {pipeline_mode = #tpu.pipeline_mode<synchronous>, transform_indices = @transform_4, window_bounds = array<i64: 1, 512>}, {pipeline_mode = #tpu.pipeline_mode<synchronous>, transform_indices = @transform_5, window_bounds = array<i64: 512, 256>}, {pipeline_mode = #tpu.pipeline_mode<synchronous>, transform_indices = @transform_6, window_bounds = array<i64: 1, 256>}, {pipeline_mode = #tpu.pipeline_mode<synchronous>, transform_indices = @transform_7, window_bounds = array<i64: 256, 128>}, {pipeline_mode = #tpu.pipeline_mode<synchronous>, transform_indices = @transform_8, window_bounds = array<i64: 1, 128>}, {pipeline_mode = #tpu.pipeline_mode<synchronous>, transform_indices = @transform_9, window_bounds = array<i64: 128, 128>}, {pipeline_mode = #tpu.pipeline_mode<synchronous>, transform_indices = @transform_10, window_bounds = array<i64: 1, 128>}, {transform_indices = @transform_11, window_bounds = array<i64: 8, 128>}]} {
    %c0 = arith.constant 0 : index
    %c0_0 = arith.constant 0 : index
    %0 = vector.load %arg1[%c0, %c0_0] : memref<8x128xbf16, #tpu.memory_space<vmem>>, vector<8x128xbf16>
    %c0_1 = arith.constant 0 : index
    %c0_2 = arith.constant 0 : index
    %1 = vector.load %arg2[%c0_1, %c0_2] : memref<128x256xbf16, #tpu.memory_space<vmem>>, vector<128x256xbf16>
    %cst = arith.constant dense<0.000000e+00> : vector<8x256xf32>
    %2 = tpu.matmul %0, %1, %cst {dimension_numbers = #tpu.dot_dimension_numbers<[1], [0], [0], [1], [0, 0, 1, 1], [], []>} : vector<8x128xbf16>, vector<128x256xbf16>, vector<8x256xf32> -> vector<8x256xf32>
    %c0_3 = arith.constant 0 : index
    %c0_4 = arith.constant 0 : index
    %3 = vector.load %arg3[%c0_3, %c0_4] : memref<1x256xf32, #tpu.memory_space<vmem>>, vector<1x256xf32>
    %4 = vector.broadcast %3 : vector<1x256xf32> to vector<8x256xf32>
    %5 = arith.addf %2, %4 : vector<8x256xf32>
    %cst_5 = arith.constant 0.000000e+00 : f32
    %6 = vector.broadcast %cst_5 : f32 to vector<8x256xf32>
    %7 = arith.maximumf %5, %6 : vector<8x256xf32>
    %8 = arith.truncf %7 : vector<8x256xf32> to vector<8x256xbf16>
    %c0_6 = arith.constant 0 : index
    %c0_7 = arith.constant 0 : index
    %9 = vector.load %arg4[%c0_6, %c0_7] : memref<256x512xbf16, #tpu.memory_space<vmem>>, vector<256x512xbf16>
    %cst_8 = arith.constant dense<0.000000e+00> : vector<8x512xf32>
    %10 = tpu.matmul %8, %9, %cst_8 {dimension_numbers = #tpu.dot_dimension_numbers<[1], [0], [0], [1], [0, 0, 1, 1], [], []>} : vector<8x256xbf16>, vector<256x512xbf16>, vector<8x512xf32> -> vector<8x512xf32>
    %c0_9 = arith.constant 0 : index
    %c0_10 = arith.constant 0 : index
    %11 = vector.load %arg5[%c0_9, %c0_10] : memref<1x512xf32, #tpu.memory_space<vmem>>, vector<1x512xf32>
    %12 = vector.broadcast %11 : vector<1x512xf32> to vector<8x512xf32>
    %13 = arith.addf %10, %12 : vector<8x512xf32>
    %cst_11 = arith.constant 0.000000e+00 : f32
    %14 = vector.broadcast %cst_11 : f32 to vector<8x512xf32>
    %15 = arith.maximumf %13, %14 : vector<8x512xf32>
    %16 = arith.truncf %15 : vector<8x512xf32> to vector<8x512xbf16>
    %c0_12 = arith.constant 0 : index
    %c0_13 = arith.constant 0 : index
    %17 = vector.load %arg6[%c0_12, %c0_13] : memref<512x256xbf16, #tpu.memory_space<vmem>>, vector<512x256xbf16>
    %cst_14 = arith.constant dense<0.000000e+00> : vector<8x256xf32>
    %18 = tpu.matmul %16, %17, %cst_14 {dimension_numbers = #tpu.dot_dimension_numbers<[1], [0], [0], [1], [0, 0, 1, 1], [], []>} : vector<8x512xbf16>, vector<512x256xbf16>, vector<8x256xf32> -> vector<8x256xf32>
    %c0_15 = arith.constant 0 : index
    %c0_16 = arith.constant 0 : index
    %19 = vector.load %arg7[%c0_15, %c0_16] : memref<1x256xf32, #tpu.memory_space<vmem>>, vector<1x256xf32>
    %20 = vector.broadcast %19 : vector<1x256xf32> to vector<8x256xf32>
    %21 = arith.addf %18, %20 : vector<8x256xf32>
    %cst_17 = arith.constant 0.000000e+00 : f32
    %22 = vector.broadcast %cst_17 : f32 to vector<8x256xf32>
    %23 = arith.maximumf %21, %22 : vector<8x256xf32>
    %24 = arith.truncf %23 : vector<8x256xf32> to vector<8x256xbf16>
    %c0_18 = arith.constant 0 : index
    %c0_19 = arith.constant 0 : index
    %25 = vector.load %arg8[%c0_18, %c0_19] : memref<256x128xbf16, #tpu.memory_space<vmem>>, vector<256x128xbf16>
    %cst_20 = arith.constant dense<0.000000e+00> : vector<8x128xf32>
    %26 = tpu.matmul %24, %25, %cst_20 {dimension_numbers = #tpu.dot_dimension_numbers<[1], [0], [0], [1], [0, 0, 1, 1], [], []>} : vector<8x256xbf16>, vector<256x128xbf16>, vector<8x128xf32> -> vector<8x128xf32>
    %c0_21 = arith.constant 0 : index
    %c0_22 = arith.constant 0 : index
    %27 = vector.load %arg9[%c0_21, %c0_22] : memref<1x128xf32, #tpu.memory_space<vmem>>, vector<1x128xf32>
    %28 = vector.broadcast %27 : vector<1x128xf32> to vector<8x128xf32>
    %29 = arith.addf %26, %28 : vector<8x128xf32>
    %cst_23 = arith.constant 0.000000e+00 : f32
    %30 = vector.broadcast %cst_23 : f32 to vector<8x128xf32>
    %31 = arith.maximumf %29, %30 : vector<8x128xf32>
    %32 = arith.truncf %31 : vector<8x128xf32> to vector<8x128xbf16>
    %c0_24 = arith.constant 0 : index
    %c0_25 = arith.constant 0 : index
    %33 = vector.load %arg10[%c0_24, %c0_25] : memref<128x128xbf16, #tpu.memory_space<vmem>>, vector<128x128xbf16>
    %cst_26 = arith.constant dense<0.000000e+00> : vector<8x128xf32>
    %34 = tpu.matmul %32, %33, %cst_26 {dimension_numbers = #tpu.dot_dimension_numbers<[1], [0], [0], [1], [0, 0, 1, 1], [], []>} : vector<8x128xbf16>, vector<128x128xbf16>, vector<8x128xf32> -> vector<8x128xf32>
    %c0_27 = arith.constant 0 : index
    %c0_28 = arith.constant 0 : index
    %35 = vector.load %arg11[%c0_27, %c0_28] : memref<1x128xf32, #tpu.memory_space<vmem>>, vector<1x128xf32>
    %36 = vector.broadcast %35 : vector<1x128xf32> to vector<8x128xf32>
    %37 = arith.addf %34, %36 : vector<8x128xf32>
    %c0_29 = arith.constant 0 : index
    %c0_30 = arith.constant 0 : index
    %38 = vector.load %arg12[%c0_29, %c0_30] : memref<8x128xf32, #tpu.memory_space<vmem>>, vector<8x128xf32>
    tpu.vector_store %arg12[%c0_29, %c0_30], %37 {strides = array<i32>} : memref<8x128xf32, #tpu.memory_space<vmem>>, vector<8x128xf32>,
    return
  }
  func.func @transform_0(%arg0: i32) -> (i32, i32) {
    %c0_i32 = arith.constant 0 : i32
    %c0_i32_0 = arith.constant 0 : i32
    return %arg0, %c0_i32 : i32, i32
  }
  func.func @transform_1(%arg0: i32) -> (i32, i32) {
    %c0_i32 = arith.constant 0 : i32
    %c0_i32_0 = arith.constant 0 : i32
    %c0_i32_1 = arith.constant 0 : i32
    return %c0_i32, %c0_i32_0 : i32, i32
  }
  func.func @transform_2(%arg0: i32) -> (i32, i32) {
    %c0_i32 = arith.constant 0 : i32
    %c0_i32_0 = arith.constant 0 : i32
    %c0_i32_1 = arith.constant 0 : i32
    return %c0_i32, %c0_i32_0 : i32, i32
  }
  func.func @transform_3(%arg0: i32) -> (i32, i32) {
    %c0_i32 = arith.constant 0 : i32
    %c0_i32_0 = arith.constant 0 : i32
    %c0_i32_1 = arith.constant 0 : i32
    return %c0_i32, %c0_i32_0 : i32, i32
  }
  func.func @transform_4(%arg0: i32) -> (i32, i32) {
    %c0_i32 = arith.constant 0 : i32
    %c0_i32_0 = arith.constant 0 : i32
    %c0_i32_1 = arith.constant 0 : i32
    return %c0_i32, %c0_i32_0 : i32, i32
  }
  func.func @transform_5(%arg0: i32) -> (i32, i32) {
    %c0_i32 = arith.constant 0 : i32
    %c0_i32_0 = arith.constant 0 : i32
    %c0_i32_1 = arith.constant 0 : i32
    return %c0_i32, %c0_i32_0 : i32, i32
  }
  func.func @transform_6(%arg0: i32) -> (i32, i32) {
    %c0_i32 = arith.constant 0 : i32
    %c0_i32_0 = arith.constant 0 : i32
    %c0_i32_1 = arith.constant 0 : i32
    return %c0_i32, %c0_i32_0 : i32, i32
  }
  func.func @transform_7(%arg0: i32) -> (i32, i32) {
    %c0_i32 = arith.constant 0 : i32
    %c0_i32_0 = arith.constant 0 : i32
    %c0_i32_1 = arith.constant 0 : i32
    return %c0_i32, %c0_i32_0 : i32, i32
  }
  func.func @transform_8(%arg0: i32) -> (i32, i32) {
    %c0_i32 = arith.constant 0 : i32
    %c0_i32_0 = arith.constant 0 : i32
    %c0_i32_1 = arith.constant 0 : i32
    return %c0_i32, %c0_i32_0 : i32, i32
  }
  func.func @transform_9(%arg0: i32) -> (i32, i32) {
    %c0_i32 = arith.constant 0 : i32
    %c0_i32_0 = arith.constant 0 : i32
    %c0_i32_1 = arith.constant 0 : i32
    return %c0_i32, %c0_i32_0 : i32, i32
  }
  func.func @transform_10(%arg0: i32) -> (i32, i32) {
    %c0_i32 = arith.constant 0 : i32
    %c0_i32_0 = arith.constant 0 : i32
    %c0_i32_1 = arith.constant 0 : i32
    return %c0_i32, %c0_i32_0 : i32, i32
  }
  func.func @transform_11(%arg0: i32) -> (i32, i32) {
    %c0_i32 = arith.constant 0 : i32
    %c0_i32_0 = arith.constant 0 : i32
    return %arg0, %c0_i32 : i32, i32
  }
}

</mosaic_0001>

<llo_original>
// kernel: tpu_custom_call.1
$region0: #{tpu_custom_call.1}
  #allocation0 [shape = 'u32[]', space=smem, size = 0x4, offset = 0x4, fixed_abs, tag = 'smem constant byte address 0x4 - core index']
  #allocation1 [shape = 'u32[72,128]{1,0:T(1,128)}', space=vmem, size = 0x9000, scoped, tag = 'internal scratch']
  %s0 = inlined_call_operand.hbm [shape: bf16[16,128], index: 0, kind: input, shape index: {}]
  %s1 = inlined_call_operand.hbm [shape: bf16[128,256], index: 1, kind: input, shape index: {}]
  %s2 = inlined_call_operand.hbm [shape: f32[1,256], index: 2, kind: input, shape index: {}]
  %s3 = inlined_call_operand.hbm [shape: bf16[256,512], index: 3, kind: input, shape index: {}]
  %s4 = inlined_call_operand.hbm [shape: f32[1,512], index: 4, kind: input, shape index: {}]
  %s5 = inlined_call_operand.hbm [shape: bf16[512,256], index: 5, kind: input, shape index: {}]
  %s6 = inlined_call_operand.vmem [shape: f32[1,256], index: 6, kind: input, shape index: {}]
  %s7 = inlined_call_operand.hbm [shape: bf16[256,128], index: 7, kind: input, shape index: {}]
  %s8 = inlined_call_operand.vmem [shape: f32[1,128], index: 8, kind: input, shape index: {}]
  %s9 = inlined_call_operand.hbm [shape: bf16[128,128], index: 9, kind: input, shape index: {}]
  %s10 = inlined_call_operand.vmem [shape: f32[1,128], index: 10, kind: input, shape index: {}]
  %s11 = inlined_call_operand.hbm [shape: f32[16,128], index: 11, kind: output, shape index: {}]
  %s12 = sld [smem:[#allocation0]]
  $region109: #{tpu_custom_call.1} parent=0
    _
  %s14 = ssub.s32 1, %s12
  %s15 = scalar_select 0, %s14, %s12
  $region1: #{tpu_custom_call.1} parent=0
    #allocation2 [shape = 'u8[4096]{0}', space=vmem, size = 0x1000, scoped, tag = 'input window, operand 0']
    #allocation3 [shape = 's32[2]{0}', space=sflag, size = 0x8, scoped, tag = 'scoped memory for tpu_custom_call.1']
    #allocation4 [shape = 's32[2]{0}', space=sflag, size = 0x8, scoped, tag = 'scoped memory for tpu_custom_call.1']
    #allocation5 [shape = 'u8[65536]{0}', space=vmem, size = 0x10000, scoped, tag = 'input window, operand 1, single buffered']
    #allocation6 [shape = 's32[1]{0}', space=sflag, size = 0x4, scoped, tag = 'scoped memory for tpu_custom_call.1']
    #allocation7 [shape = 'u8[1024]{0}', space=vmem, size = 0x400, scoped, tag = 'input window, operand 2, single buffered']
    #allocation8 [shape = 'u8[262144]{0}', space=vmem, size = 0x40000, scoped, tag = 'input window, operand 3, single buffered']
    #allocation9 [shape = 's32[1]{0}', space=sflag, size = 0x4, scoped, tag = 'scoped memory for tpu_custom_call.1']
    #allocation10 [shape = 'u8[2048]{0}', space=vmem, size = 0x800, scoped, tag = 'input window, operand 4, single buffered']
    #allocation11 [shape = 'u8[262144]{0}', space=vmem, size = 0x40000, scoped, tag = 'input window, operand 5, single buffered']
    #allocation12 [shape = 's32[1]{0}', space=sflag, size = 0x4, scoped, tag = 'scoped memory for tpu_custom_call.1']
    #allocation13 [shape = 'u8[65536]{0}', space=vmem, size = 0x10000, scoped, tag = 'input window, operand 7, single buffered']
    #allocation14 [shape = 'u8[32768]{0}', space=vmem, size = 0x8000, scoped, tag = 'input window, operand 9, single buffered']
    #allocation15 [shape = 's32[1]{0}', space=sflag, size = 0x4, scoped, tag = 'scoped memory for tpu_custom_call.1']
    #allocation16 [shape = 'u8[8192]{0}', space=vmem, size = 0x2000, scoped, tag = 'output window, operand 0']
    %16 = vsyncpa [#allocation3], 0
    %s17 = scalar_lea.sflag [#allocation3], 1
    %18 = vsyncpa %s17, 0
    %19 = vsyncpa [#allocation6], 0
    %20 = vsyncpa [#allocation9], 0
    %21 = vsyncpa [#allocation12], 0
    %22 = vsyncpa [#allocation15], 0
    %23 = vsyncpa [#allocation4], 0
    %s24 = scalar_lea.sflag [#allocation4], 1
    %25 = vsyncpa %s24, 0
    loop: start=0, step=1, limit=4
    $region2: #{tpu_custom_call.1} parent=1 // loop_pre_header
      _
    $region3: #{tpu_custom_call.1} parent=1 // loop_header
      %s27 = sphi 0, %s31
      %p28 = scmp.ge.s32.totalorder %s27, 4
      %s37 = sphi 0, %s39
      %s40 = sphi 0, %s37
      %s41 = sphi 0, %s40
      %s57 = sphi 0, %s41
      %s61 = sphi 0, %s61
      %s63 = sphi 0, %s61
      %s64 = sphi 0, %s63
      %s78 = sphi 0, %s64
      %s82 = sphi 0, %s82
      %s84 = sphi 0, %s82
      %s85 = sphi 0, %s84
      %s99 = sphi 0, %s85
      %s103 = sphi 0, %s103
      %s105 = sphi 0, %s103
      %s106 = sphi 0, %s105
      %s120 = sphi 0, %s106
      %s124 = sphi 0, %s124
      %s126 = sphi 0, %s124
      %s127 = sphi 0, %s126
      %s141 = sphi 0, %s127
      %s145 = sphi 0, %s145
      %s147 = sphi 0, %s145
      %s148 = sphi 0, %s147
      %s162 = sphi 0, %s148
      %s166 = sphi 0, %s166
      %s168 = sphi 0, %s166
      %s169 = sphi 0, %s168
      %s183 = sphi 0, %s169
      %s187 = sphi 0, %s187
      %s189 = sphi 0, %s187
      %s190 = sphi 0, %s189
      %s204 = sphi 0, %s190
      %s208 = sphi 0, %s208
      %s210 = sphi 0, %s208
      %s211 = sphi 0, %s210
      %s225 = sphi 0, %s211
      %s229 = sphi 0, %s229
      %s231 = sphi 0, %s229
      %s232 = sphi 0, %s231
      %s246 = sphi 0, %s232
      %s250 = sphi 0, %s250
      %s252 = sphi 0, %s250
      %s253 = sphi 0, %s252
      %s267 = sphi 0, %s253
      %s273 = sphi 0, %s275
      %s276 = sphi 0, %s273
      %s277 = sphi 0, %s276
      %s293 = sphi 0, %s277
    $region4: #{tpu_custom_call.1} parent=1 // loop_header_branch
      %30 = sbr.rel (%p28) target = $region8
    $region5: #{tpu_custom_call.1} parent=1 // loop_body
      %s32 = ssub.s32 %s27, 1
      %s33 = ssub.s32 %s27, 2
      %s34 = sadd.s32 %s27, 1
      %s35 = ssub.s32 %s27, %s34
      %p36 = scmp.eq.s32.totalorder %s35, 0
      %s38 = sadd.s32 %s37, 1
      %s39 = scalar_select %p36, %s37, %s38
      %p42 = pneg %p36
      %p43 = scmp.eq.s32.totalorder %s27, 1
      %p44 = por %p42, %p43
      %p45 = scmp.ne.s32.totalorder %s37, %s40
      %p46 = scmp.eq.s32.totalorder %s27, 0
      %p47 = por %p45, %p46
      %p48 = scmp.ne.s32.totalorder %s37, %s40
      %p49 = scmp.eq.s32.totalorder %s32, 1
      %p50 = por %p48, %p49
      %p51 = scmp.ne.s32.totalorder %s40, %s41
      %p52 = scmp.eq.s32.totalorder %s32, 0
      %p53 = por %p51, %p52
      %p54 = scmp.ne.s32.totalorder %s40, %s41
      %p55 = scmp.eq.s32.totalorder %s33, 1
      %p56 = por %p54, %p55
      %p58 = scmp.ne.s32.totalorder %s41, %s57
      %p59 = scmp.eq.s32.totalorder %s33, 0
      %p60 = por %p58, %p59
      %s62 = sadd.s32 %s61, 1
      %p65 = scmp.eq.s32.totalorder %s27, 1
      %p66 = scmp.ne.s32.totalorder %s61, %s63
      %p67 = scmp.eq.s32.totalorder %s27, 0
      %p68 = por %p66, %p67
      %p69 = scmp.ne.s32.totalorder %s61, %s63
      %p70 = scmp.eq.s32.totalorder %s32, 1
      %p71 = por %p69, %p70
      %p72 = scmp.ne.s32.totalorder %s63, %s64
      %p73 = scmp.eq.s32.totalorder %s32, 0
      %p74 = por %p72, %p73
      %p75 = scmp.ne.s32.totalorder %s63, %s64
      %p76 = scmp.eq.s32.totalorder %s33, 1
      %p77 = por %p75, %p76
      %p79 = scmp.ne.s32.totalorder %s64, %s78
      %p80 = scmp.eq.s32.totalorder %s33, 0
      %p81 = por %p79, %p80
      %s83 = sadd.s32 %s82, 1
      %p86 = scmp.eq.s32.totalorder %s27, 1
      %p87 = scmp.ne.s32.totalorder %s82, %s84
      %p88 = scmp.eq.s32.totalorder %s27, 0
      %p89 = por %p87, %p88
      %p90 = scmp.ne.s32.totalorder %s82, %s84
      %p91 = scmp.eq.s32.totalorder %s32, 1
      %p92 = por %p90, %p91
      %p93 = scmp.ne.s32.totalorder %s84, %s85
      %p94 = scmp.eq.s32.totalorder %s32, 0
      %p95 = por %p93, %p94
      %p96 = scmp.ne.s32.totalorder %s84, %s85
      %p97 = scmp.eq.s32.totalorder %s33, 1
      %p98 = por %p96, %p97
      %p100 = scmp.ne.s32.totalorder %s85, %s99
      %p101 = scmp.eq.s32.totalorder %s33, 0
      %p102 = por %p100, %p101
      %s104 = sadd.s32 %s103, 1
      %p107 = scmp.eq.s32.totalorder %s27, 1
      %p108 = scmp.ne.s32.totalorder %s103, %s105
      %p109 = scmp.eq.s32.totalorder %s27, 0
      %p110 = por %p108, %p109
      %p111 = scmp.ne.s32.totalorder %s103, %s105
      %p112 = scmp.eq.s32.totalorder %s32, 1
      %p113 = por %p111, %p112
      %p114 = scmp.ne.s32.totalorder %s105, %s106
      %p115 = scmp.eq.s32.totalorder %s32, 0
      %p116 = por %p114, %p115
      %p117 = scmp.ne.s32.totalorder %s105, %s106
      %p118 = scmp.eq.s32.totalorder %s33, 1
      %p119 = por %p117, %p118
      %p121 = scmp.ne.s32.totalorder %s106, %s120
      %p122 = scmp.eq.s32.totalorder %s33, 0
      %p123 = por %p121, %p122
      %s125 = sadd.s32 %s124, 1
      %p128 = scmp.eq.s32.totalorder %s27, 1
      %p129 = scmp.ne.s32.totalorder %s124, %s126
      %p130 = scmp.eq.s32.totalorder %s27, 0
      %p131 = por %p129, %p130
      %p132 = scmp.ne.s32.totalorder %s124, %s126
      %p133 = scmp.eq.s32.totalorder %s32, 1
      %p134 = por %p132, %p133
      %p135 = scmp.ne.s32.totalorder %s126, %s127
      %p136 = scmp.eq.s32.totalorder %s32, 0
      %p137 = por %p135, %p136
      %p138 = scmp.ne.s32.totalorder %s126, %s127
      %p139 = scmp.eq.s32.totalorder %s33, 1
      %p140 = por %p138, %p139
      %p142 = scmp.ne.s32.totalorder %s127, %s141
      %p143 = scmp.eq.s32.totalorder %s33, 0
      %p144 = por %p142, %p143
      %s146 = sadd.s32 %s145, 1
      %p149 = scmp.eq.s32.totalorder %s27, 1
      %p150 = scmp.ne.s32.totalorder %s145, %s147
      %p151 = scmp.eq.s32.totalorder %s27, 0
      %p152 = por %p150, %p151
      %p153 = scmp.ne.s32.totalorder %s145, %s147
      %p154 = scmp.eq.s32.totalorder %s32, 1
      %p155 = por %p153, %p154
      %p156 = scmp.ne.s32.totalorder %s147, %s148
      %p157 = scmp.eq.s32.totalorder %s32, 0
      %p158 = por %p156, %p157
      %p159 = scmp.ne.s32.totalorder %s147, %s148
      %p160 = scmp.eq.s32.totalorder %s33, 1
      %p161 = por %p159, %p160
      %p163 = scmp.ne.s32.totalorder %s148, %s162
      %p164 = scmp.eq.s32.totalorder %s33, 0
      %p165 = por %p163, %p164
      %s167 = sadd.s32 %s166, 1
      %p170 = scmp.eq.s32.totalorder %s27, 1
      %p171 = scmp.ne.s32.totalorder %s166, %s168
      %p172 = scmp.eq.s32.totalorder %s27, 0
      %p173 = por %p171, %p172
      %p174 = scmp.ne.s32.totalorder %s166, %s168
      %p175 = scmp.eq.s32.totalorder %s32, 1
      %p176 = por %p174, %p175
      %p177 = scmp.ne.s32.totalorder %s168, %s169
      %p178 = scmp.eq.s32.totalorder %s32, 0
      %p179 = por %p177, %p178
      %p180 = scmp.ne.s32.totalorder %s168, %s169
      %p181 = scmp.eq.s32.totalorder %s33, 1
      %p182 = por %p180, %p181
      %p184 = scmp.ne.s32.totalorder %s169, %s183
      %p185 = scmp.eq.s32.totalorder %s33, 0
      %p186 = por %p184, %p185
      %s188 = sadd.s32 %s187, 1
      %p191 = scmp.eq.s32.totalorder %s27, 1
      %p192 = scmp.ne.s32.totalorder %s187, %s189
      %p193 = scmp.eq.s32.totalorder %s27, 0
      %p194 = por %p192, %p193
      %p195 = scmp.ne.s32.totalorder %s187, %s189
      %p196 = scmp.eq.s32.totalorder %s32, 1
      %p197 = por %p195, %p196
      %p198 = scmp.ne.s32.totalorder %s189, %s190
      %p199 = scmp.eq.s32.totalorder %s32, 0
      %p200 = por %p198, %p199
      %p201 = scmp.ne.s32.totalorder %s189, %s190
      %p202 = scmp.eq.s32.totalorder %s33, 1
      %p203 = por %p201, %p202
      %p205 = scmp.ne.s32.totalorder %s190, %s204
      %p206 = scmp.eq.s32.totalorder %s33, 0
      %p207 = por %p205, %p206
      %s209 = sadd.s32 %s208, 1
      %p212 = scmp.eq.s32.totalorder %s27, 1
      %p213 = scmp.ne.s32.totalorder %s208, %s210
      %p214 = scmp.eq.s32.totalorder %s27, 0
      %p215 = por %p213, %p214
      %p216 = scmp.ne.s32.totalorder %s208, %s210
      %p217 = scmp.eq.s32.totalorder %s32, 1
      %p218 = por %p216, %p217
      %p219 = scmp.ne.s32.totalorder %s210, %s211
      %p220 = scmp.eq.s32.totalorder %s32, 0
      %p221 = por %p219, %p220
      %p222 = scmp.ne.s32.totalorder %s210, %s211
      %p223 = scmp.eq.s32.totalorder %s33, 1
      %p224 = por %p222, %p223
      %p226 = scmp.ne.s32.totalorder %s211, %s225
      %p227 = scmp.eq.s32.totalorder %s33, 0
      %p228 = por %p226, %p227
      %s230 = sadd.s32 %s229, 1
      %p233 = scmp.eq.s32.totalorder %s27, 1
      %p234 = scmp.ne.s32.totalorder %s229, %s231
      %p235 = scmp.eq.s32.totalorder %s27, 0
      %p236 = por %p234, %p235
      %p237 = scmp.ne.s32.totalorder %s229, %s231
      %p238 = scmp.eq.s32.totalorder %s32, 1
      %p239 = por %p237, %p238
      %p240 = scmp.ne.s32.totalorder %s231, %s232
      %p241 = scmp.eq.s32.totalorder %s32, 0
      %p242 = por %p240, %p241
      %p243 = scmp.ne.s32.totalorder %s231, %s232
      %p244 = scmp.eq.s32.totalorder %s33, 1
      %p245 = por %p243, %p244
      %p247 = scmp.ne.s32.totalorder %s232, %s246
      %p248 = scmp.eq.s32.totalorder %s33, 0
      %p249 = por %p247, %p248
      %s251 = sadd.s32 %s250, 1
      %p254 = scmp.eq.s32.totalorder %s27, 1
      %p255 = scmp.ne.s32.totalorder %s250, %s252
      %p256 = scmp.eq.s32.totalorder %s27, 0
      %p257 = por %p255, %p256
      %p258 = scmp.ne.s32.totalorder %s250, %s252
      %p259 = scmp.eq.s32.totalorder %s32, 1
      %p260 = por %p258, %p259
      %p261 = scmp.ne.s32.totalorder %s252, %s253
      %p262 = scmp.eq.s32.totalorder %s32, 0
      %p263 = por %p261, %p262
      %p264 = scmp.ne.s32.totalorder %s252, %s253
      %p265 = scmp.eq.s32.totalorder %s33, 1
      %p266 = por %p264, %p265
      %p268 = scmp.ne.s32.totalorder %s253, %s267
      %p269 = scmp.eq.s32.totalorder %s33, 0
      %p270 = por %p268, %p269
      %s271 = ssub.s32 %s27, %s34
      %p272 = scmp.eq.s32.totalorder %s271, 0
      %s274 = sadd.s32 %s273, 1
      %s275 = scalar_select %p272, %s273, %s274
      %p278 = pneg %p272
      %p279 = scmp.eq.s32.totalorder %s27, 1
      %p280 = por %p278, %p279
      %p281 = scmp.ne.s32.totalorder %s273, %s276
      %p282 = scmp.eq.s32.totalorder %s27, 0
      %p283 = por %p281, %p282
      %p284 = scmp.ne.s32.totalorder %s273, %s276
      %p285 = scmp.eq.s32.totalorder %s32, 1
      %p286 = por %p284, %p285
      %p287 = scmp.ne.s32.totalorder %s276, %s277
      %p288 = scmp.eq.s32.totalorder %s32, 0
      %p289 = por %p287, %p288
      %p290 = scmp.ne.s32.totalorder %s276, %s277
      %p291 = scmp.eq.s32.totalorder %s33, 1
      %p292 = por %p290, %p291
      %p294 = scmp.ne.s32.totalorder %s277, %s293
      %p295 = scmp.eq.s32.totalorder %s33, 0
      %p296 = por %p294, %p295
      %p297 = scmp.le.s32.totalorder 1, %s27
      %p298 = scmp.lt.s32.totalorder %s27, 3
      %p299 = pnand %p297, %p298
      %p300 = pneg %p299
      // Predicated region
      $region9: #{tpu_custom_call.1} parent=5 // pred_check
        _
      $region10: #{tpu_custom_call.1} parent=5 // pred_check_branch
        %302 = sbr.rel (%p299) target = $region12
      $region11: #{tpu_custom_call.1} parent=5 // pred_region
        %s303 = ssub.s32 %s27, 1
        // Predicated region
        $region13: #{tpu_custom_call.1} parent=11 // pred_check
          %p304 = pneg %p74
        $region14: #{tpu_custom_call.1} parent=11 // pred_check_branch
          %306 = sbr.rel (%p304) target = $region16
        $region15: #{tpu_custom_call.1} parent=11 // pred_region
          %308 = vsyncadd [#allocation6], 0
          %s309 = sshll.u32 %s1, 4
          %s310 = int_to_ptr.hbm [resolvable:$true] %s309
          %s311 = sshll.u32 [#allocation5], 4
          %s312 = int_to_ptr.vmem [resolvable:$true] %s311
          %317 = dma.hbm_to_vmem [thread:$0]  %s310, 2048, %s312, [#allocation6], 128, 128, 8
        $region16: #{tpu_custom_call.1} parent=11 // pred_fallthru
          _
        // Predicated region
        $region17: #{tpu_custom_call.1} parent=11 // pred_check
          %p318 = pneg %p95
        $region18: #{tpu_custom_call.1} parent=11 // pred_check_branch
          %320 = sbr.rel (%p318) target = $region20
        $region19: #{tpu_custom_call.1} parent=11 // pred_region
          %322 = vsyncadd [#allocation6], 0
          %s324 = sshll.u32 %s2, 4
          %s325 = int_to_ptr.hbm [resolvable:$true] %s324
          %s326 = sshll.u32 [#allocation7], 4
          %s327 = int_to_ptr.vmem [resolvable:$true] %s326
          %329 = dma.hbm_to_vmem [thread:$0]  %s325, 32, %s327, [#allocation6]
        $region20: #{tpu_custom_call.1} parent=11 // pred_fallthru
          _
        // Predicated region
        $region21: #{tpu_custom_call.1} parent=11 // pred_check
          %p330 = pneg %p116
        $region22: #{tpu_custom_call.1} parent=11 // pred_check_branch
          %332 = sbr.rel (%p330) target = $region24
        $region23: #{tpu_custom_call.1} parent=11 // pred_region
          %334 = vsyncadd [#allocation9], 0
          %s335 = sshll.u32 %s3, 4
          %s336 = int_to_ptr.hbm [resolvable:$true] %s335
          %s337 = sshll.u32 [#allocation8], 4
          %s338 = int_to_ptr.vmem [resolvable:$true] %s337
          %343 = dma.hbm_to_vmem [thread:$0]  %s336, 8192, %s338, [#allocation9], 256, 256, 16
        $region24: #{tpu_custom_call.1} parent=11 // pred_fallthru
          _
        // Predicated region
        $region25: #{tpu_custom_call.1} parent=11 // pred_check
          %p344 = pneg %p137
        $region26: #{tpu_custom_call.1} parent=11 // pred_check_branch
          %346 = sbr.rel (%p344) target = $region28
        $region27: #{tpu_custom_call.1} parent=11 // pred_region
          %348 = vsyncadd [#allocation9], 0
          %s350 = sshll.u32 %s4, 4
          %s351 = int_to_ptr.hbm [resolvable:$true] %s350
          %s352 = sshll.u32 [#allocation10], 4
          %s353 = int_to_ptr.vmem [resolvable:$true] %s352
          %355 = dma.hbm_to_vmem [thread:$0]  %s351, 64, %s353, [#allocation9]
        $region28: #{tpu_custom_call.1} parent=11 // pred_fallthru
          _
        // Predicated region
        $region29: #{tpu_custom_call.1} parent=11 // pred_check
          %p356 = pneg %p158
        $region30: #{tpu_custom_call.1} parent=11 // pred_check_branch
          %358 = sbr.rel (%p356) target = $region32
        $region31: #{tpu_custom_call.1} parent=11 // pred_region
          %360 = vsyncadd [#allocation12], 0
          %s361 = sshll.u32 %s5, 4
          %s362 = int_to_ptr.hbm [resolvable:$true] %s361
          %s363 = sshll.u32 [#allocation11], 4
          %s364 = int_to_ptr.vmem [resolvable:$true] %s363
          %369 = dma.hbm_to_vmem [thread:$0]  %s362, 8192, %s364, [#allocation12], 128, 128, 8
        $region32: #{tpu_custom_call.1} parent=11 // pred_fallthru
          _
        // Predicated region
        $region33: #{tpu_custom_call.1} parent=11 // pred_check
          %p370 = pneg %p179
        $region34: #{tpu_custom_call.1} parent=11 // pred_check_branch
          %372 = sbr.rel (%p370) target = $region36
        $region35: #{tpu_custom_call.1} parent=11 // pred_region
          _
        $region36: #{tpu_custom_call.1} parent=11 // pred_fallthru
          _
        // Predicated region
        $region37: #{tpu_custom_call.1} parent=11 // pred_check
          %p373 = pneg %p200
        $region38: #{tpu_custom_call.1} parent=11 // pred_check_branch
          %375 = sbr.rel (%p373) target = $region40
        $region39: #{tpu_custom_call.1} parent=11 // pred_region
          %377 = vsyncadd [#allocation12], 0
          %s378 = sshll.u32 %s7, 4
          %s379 = int_to_ptr.hbm [resolvable:$true] %s378
          %s380 = sshll.u32 [#allocation13], 4
          %s381 = int_to_ptr.vmem [resolvable:$true] %s380
          %386 = dma.hbm_to_vmem [thread:$0]  %s379, 2048, %s381, [#allocation12], 64, 64, 4
        $region40: #{tpu_custom_call.1} parent=11 // pred_fallthru
          _
        // Predicated region
        $region41: #{tpu_custom_call.1} parent=11 // pred_check
          %p387 = pneg %p221
        $region42: #{tpu_custom_call.1} parent=11 // pred_check_branch
          %389 = sbr.rel (%p387) target = $region44
        $region43: #{tpu_custom_call.1} parent=11 // pred_region
          _
        $region44: #{tpu_custom_call.1} parent=11 // pred_fallthru
          _
        // Predicated region
        $region45: #{tpu_custom_call.1} parent=11 // pred_check
          %p390 = pneg %p242
        $region46: #{tpu_custom_call.1} parent=11 // pred_check_branch
          %392 = sbr.rel (%p390) target = $region48
        $region47: #{tpu_custom_call.1} parent=11 // pred_region
          %394 = vsyncadd [#allocation15], 0
          %s395 = sshll.u32 %s9, 4
          %s396 = int_to_ptr.hbm [resolvable:$true] %s395
          %s397 = sshll.u32 [#allocation14], 4
          %s398 = int_to_ptr.vmem [resolvable:$true] %s397
          %403 = dma.hbm_to_vmem [thread:$0]  %s396, 1024, %s398, [#allocation15], 64, 64, 4
        $region48: #{tpu_custom_call.1} parent=11 // pred_fallthru
          _
        // Predicated region
        $region49: #{tpu_custom_call.1} parent=11 // pred_check
          %p404 = pneg %p263
        $region50: #{tpu_custom_call.1} parent=11 // pred_check_branch
          %406 = sbr.rel (%p404) target = $region52
        $region51: #{tpu_custom_call.1} parent=11 // pred_region
          _
        $region52: #{tpu_custom_call.1} parent=11 // pred_fallthru
          _
      $region12: #{tpu_custom_call.1} parent=5 // pred_fallthru
        _
      %p407 = scmp.lt.s32.totalorder %s27, 2
      // Predicated region
      $region53: #{tpu_custom_call.1} parent=5 // pred_check
        %p408 = pneg %p407
      $region54: #{tpu_custom_call.1} parent=5 // pred_check_branch
        %410 = sbr.rel (%p408) target = $region56
      $region55: #{tpu_custom_call.1} parent=5 // pred_region
        // Predicated region
        $region57: #{tpu_custom_call.1} parent=55 // pred_check
          %p411 = pneg %p47
        $region58: #{tpu_custom_call.1} parent=55 // pred_check_branch
          %413 = sbr.rel (%p411) target = $region60
        $region59: #{tpu_custom_call.1} parent=55 // pred_region
          %s414 = sand.u32 %s37, 1
          %s415 = scalar_lea.sflag [#allocation3], %s414
          %s416 = sand.u32 %s37, 1
          %s417 = smul.addr %s416, 4
          %s418 = scalar_lea.vmem [#allocation2], %s417
          %420 = vsyncadd %s415, 0
          %s421 = smul.addr %s27, 4
          %s422 = scalar_lea.hbm %s0, %s421
          %s424 = sshll.u32 %s422, 4
          %s425 = int_to_ptr.hbm [resolvable:$true] %s424
          %s426 = sshll.u32 %s418, 4
          %s427 = int_to_ptr.vmem [resolvable:$true] %s426
          %429 = dma.hbm_to_vmem [thread:$0]  %s425, 64, %s427, %s415
        $region60: #{tpu_custom_call.1} parent=55 // pred_fallthru
          _
      $region56: #{tpu_custom_call.1} parent=5 // pred_fallthru
        _
      %p430 = scmp.le.s32.totalorder 1, %s27
      %p431 = scmp.lt.s32.totalorder %s27, 3
      %p432 = pnand %p430, %p431
      %p433 = pneg %p432
      // Predicated region
      $region61: #{tpu_custom_call.1} parent=5 // pred_check
        _
      $region62: #{tpu_custom_call.1} parent=5 // pred_check_branch
        %435 = sbr.rel (%p432) target = $region64
      $region63: #{tpu_custom_call.1} parent=5 // pred_region
        %s436 = ssub.s32 %s27, 1
        %s437 = sand.u32 %s40, 1
        %s438 = scalar_lea.sflag [#allocation3], %s437
        %s439 = sand.u32 %s40, 1
        %s440 = smul.addr %s439, 4
        %s441 = scalar_lea.vmem [#allocation2], %s440
        // Predicated region
        $region65: #{tpu_custom_call.1} parent=63 // pred_check
          %p442 = pneg %p53
        $region66: #{tpu_custom_call.1} parent=63 // pred_check_branch
          %444 = sbr.rel (%p442) target = $region68
        $region67: #{tpu_custom_call.1} parent=63 // pred_region
          %446 = dma.done %s438, 64
        $region68: #{tpu_custom_call.1} parent=63 // pred_fallthru
          _
        // Predicated region
        $region69: #{tpu_custom_call.1} parent=63 // pred_check
          %p447 = pneg %p74
        $region70: #{tpu_custom_call.1} parent=63 // pred_check_branch
          %449 = sbr.rel (%p447) target = $region72
        $region71: #{tpu_custom_call.1} parent=63 // pred_region
          %451 = dma.done [#allocation6], 2048
        $region72: #{tpu_custom_call.1} parent=63 // pred_fallthru
          _
        // Predicated region
        $region73: #{tpu_custom_call.1} parent=63 // pred_check
          %p452 = pneg %p95
        $region74: #{tpu_custom_call.1} parent=63 // pred_check_branch
          %454 = sbr.rel (%p452) target = $region76
        $region75: #{tpu_custom_call.1} parent=63 // pred_region
          %456 = dma.done [#allocation6], 32
        $region76: #{tpu_custom_call.1} parent=63 // pred_fallthru
          _
        // Predicated region
        $region77: #{tpu_custom_call.1} parent=63 // pred_check
          %p457 = pneg %p116
        $region78: #{tpu_custom_call.1} parent=63 // pred_check_branch
          %459 = sbr.rel (%p457) target = $region80
        $region79: #{tpu_custom_call.1} parent=63 // pred_region
          %461 = dma.done [#allocation9], 8192
        $region80: #{tpu_custom_call.1} parent=63 // pred_fallthru
          _
        // Predicated region
        $region81: #{tpu_custom_call.1} parent=63 // pred_check
          %p462 = pneg %p137
        $region82: #{tpu_custom_call.1} parent=63 // pred_check_branch
          %464 = sbr.rel (%p462) target = $region84
        $region83: #{tpu_custom_call.1} parent=63 // pred_region
          %466 = dma.done [#allocation9], 64
        $region84: #{tpu_custom_call.1} parent=63 // pred_fallthru
          _
        // Predicated region
        $region85: #{tpu_custom_call.1} parent=63 // pred_check
          %p467 = pneg %p158
        $region86: #{tpu_custom_call.1} parent=63 // pred_check_branch
          %469 = sbr.rel (%p467) target = $region88
        $region87: #{tpu_custom_call.1} parent=63 // pred_region
          %471 = dma.done [#allocation12], 8192
        $region88: #{tpu_custom_call.1} parent=63 // pred_fallthru
          _
        // Predicated region
        $region89: #{tpu_custom_call.1} parent=63 // pred_check
          %p472 = pneg %p200
        $region90: #{tpu_custom_call.1} parent=63 // pred_check_branch
          %474 = sbr.rel (%p472) target = $region92
        $region91: #{tpu_custom_call.1} parent=63 // pred_region
          %476 = dma.done [#allocation12], 2048
        $region92: #{tpu_custom_call.1} parent=63 // pred_fallthru
          _
        // Predicated region
        $region93: #{tpu_custom_call.1} parent=63 // pred_check
          %p477 = pneg %p242
        $region94: #{tpu_custom_call.1} parent=63 // pred_check_branch
          %479 = sbr.rel (%p477) target = $region96
        $region95: #{tpu_custom_call.1} parent=63 // pred_region
          %481 = dma.done [#allocation15], 1024
        $region96: #{tpu_custom_call.1} parent=63 // pred_fallthru
          _
        %s482 = sand.u32 %s40, 1
        %s483 = scalar_lea.sflag [#allocation3], %s482
        %s484 = sand.u32 %s40, 1
        %s485 = smul.addr %s484, 4
        %s486 = scalar_lea.vmem [#allocation2], %s485
        %p487 = pneg %p53
        %p488 = pneg %p50
        %p489 = pneg %p74
        %p490 = pneg %p71
        %p491 = pneg %p95
        %p492 = pneg %p92
        %p493 = pneg %p116
        %p494 = pneg %p113
        %p495 = pneg %p137
        %p496 = pneg %p134
        %p497 = pneg %p158
        %p498 = pneg %p155
        %p499 = pneg %p179
        %p500 = pneg %p176
        %p501 = pneg %p200
        %p502 = pneg %p197
        %p503 = pneg %p221
        %p504 = pneg %p218
        %p505 = pneg %p242
        %p506 = pneg %p239
        %p507 = pneg %p263
        %p508 = pneg %p260
        %p509 = pneg %p289
        %p510 = pneg %p286
        %s511 = sand.u32 %s276, 1
        %s512 = scalar_lea.sflag [#allocation4], %s511
        %s513 = sand.u32 %s276, 1
        %s514 = smul.addr %s513, 8
        %s515 = scalar_lea.vmem [#allocation16], %s514
        %v516 = vld [vmem:[%s441] sm:$0xf]
        %v517 = vld [vmem:[#allocation5] sm:$0xff]
        %v518 = vld [vmem:[#allocation5 + $0x8] sm:$0xff]
        %v519 = vld [vmem:[#allocation5 + $0x10] sm:$0xff]
        %v520 = vld [vmem:[#allocation5 + $0x18] sm:$0xff]
        %v521 = vld [vmem:[#allocation5 + $0x20] sm:$0xff]
        %v522 = vld [vmem:[#allocation5 + $0x28] sm:$0xff]
        %v523 = vld [vmem:[#allocation5 + $0x30] sm:$0xff]
        %v524 = vld [vmem:[#allocation5 + $0x38] sm:$0xff]
        %v525 = vld [vmem:[#allocation5 + $0x40] sm:$0xff]
        %v526 = vld [vmem:[#allocation5 + $0x48] sm:$0xff]
        %v527 = vld [vmem:[#allocation5 + $0x50] sm:$0xff]
        %v528 = vld [vmem:[#allocation5 + $0x58] sm:$0xff]
        %v529 = vld [vmem:[#allocation5 + $0x60] sm:$0xff]
        %v530 = vld [vmem:[#allocation5 + $0x68] sm:$0xff]
        %v531 = vld [vmem:[#allocation5 + $0x70] sm:$0xff]
        %v532 = vld [vmem:[#allocation5 + $0x78] sm:$0xff]
        %v533 = vld [vmem:[#allocation7] sm:$0x3]
        %v535 = vperm.slane %v533, 0
        %v536 = vperm.slane %v533, 1
        %v555 = vunpack.c.l.b16 %v517
        %v556 = vunpack.c.h.b16 %v517
        %v557 = vunpack.c.l.b16 %v518
        %v558 = vunpack.c.h.b16 %v518
        %v559 = vunpack.c.l.b16 %v519
        %v560 = vunpack.c.h.b16 %v519
        %v561 = vunpack.c.l.b16 %v520
        %v562 = vunpack.c.h.b16 %v520
        %v563 = vunpack.c.l.b16 %v521
        %v564 = vunpack.c.h.b16 %v521
        %v565 = vunpack.c.l.b16 %v522
        %v566 = vunpack.c.h.b16 %v522
        %v567 = vunpack.c.l.b16 %v523
        %v568 = vunpack.c.h.b16 %v523
        %v569 = vunpack.c.l.b16 %v524
        %v570 = vunpack.c.h.b16 %v524
        %v571 = vunpack.c.l.b16 %v525
        %v572 = vunpack.c.h.b16 %v525
        %v573 = vunpack.c.l.b16 %v526
        %v574 = vunpack.c.h.b16 %v526
        %v575 = vunpack.c.l.b16 %v527
        %v576 = vunpack.c.h.b16 %v527
        %v577 = vunpack.c.l.b16 %v528
        %v578 = vunpack.c.h.b16 %v528
        %v579 = vunpack.c.l.b16 %v529
        %v580 = vunpack.c.h.b16 %v529
        %v581 = vunpack.c.l.b16 %v530
        %v582 = vunpack.c.h.b16 %v530
        %v583 = vunpack.c.l.b16 %v531
        %v584 = vunpack.c.h.b16 %v531
        %v585 = vunpack.c.l.b16 %v532
        %v586 = vunpack.c.h.b16 %v532
        %v587 = vpack.c.b16 %v557, %v555
        %v588 = vpack.c.b16 %v558, %v556
        %v589 = vpack.c.b16 %v561, %v559
        %v590 = vpack.c.b16 %v562, %v560
        %v591 = vpack.c.b16 %v565, %v563
        %v592 = vpack.c.b16 %v566, %v564
        %v593 = vpack.c.b16 %v569, %v567
        %v594 = vpack.c.b16 %v570, %v568
        %v595 = vpack.c.b16 %v573, %v571
        %v596 = vpack.c.b16 %v574, %v572
        %v597 = vpack.c.b16 %v577, %v575
        %v598 = vpack.c.b16 %v578, %v576
        %v599 = vpack.c.b16 %v581, %v579
        %v600 = vpack.c.b16 %v582, %v580
        %v601 = vpack.c.b16 %v585, %v583
        %v602 = vpack.c.b16 %v586, %v584
        %619 = vmatpush.bf16.msra.mxu0 %v601
        %620 = vmatpush.bf16.msra.mxu0 %v599
        %621 = vmatpush.bf16.msra.mxu0 %v597
        %622 = vmatpush.bf16.msra.mxu0 %v595
        %623 = vmatpush.bf16.msra.mxu0 %v593
        %624 = vmatpush.bf16.msra.mxu0 %v591
        %625 = vmatpush.bf16.msra.mxu0 %v589
        %626 = vmatpush.bf16.msra.mxu0 %v587
        %627 = vmatmul.bf16.gmra.mxu0 %v516
        %v628 = vpop.f32.mrf.mxu0
        %v629 = vadd.f32 %v535, %v628
        %v630 = vpop.f32.mrf.mxu0
        %631 = vdwg.mxu0
        %632 = vmatpush.bf16.msra.mxu0 %v602
        %633 = vmatpush.bf16.msra.mxu0 %v600
        %634 = vmatpush.bf16.msra.mxu0 %v598
        %635 = vmatpush.bf16.msra.mxu0 %v596
        %636 = vmatpush.bf16.msra.mxu0 %v594
        %637 = vmatpush.bf16.msra.mxu0 %v592
        %638 = vmatpush.bf16.msra.mxu0 %v590
        %639 = vmatpush.bf16.msra.mxu0 %v588
        %640 = vmatmul.bf16.gmra.mxu0 %v516
        %v641 = vpop.f32.mrf.mxu0
        %v642 = vadd.f32 %v536, %v641
        %v643 = vpop.f32.mrf.mxu0
        %644 = vdwg.mxu0
        %v645 = vmax.f32 %v629, 0.0
        %v646 = vmax.f32 %v642, 0.0
        %v647 = vpack.c.bf16 %v645, %v645
        %v648 = vpack.c.bf16 %v646, %v646
        %v649 = vld [vmem:[#allocation8] sm:$0xff]
        %v650 = vld [vmem:[#allocation8 + $0x8] sm:$0xff]
        %v651 = vld [vmem:[#allocation8 + $0x10] sm:$0xff]
        %v652 = vld [vmem:[#allocation8 + $0x18] sm:$0xff]
        %v653 = vld [vmem:[#allocation8 + $0x20] sm:$0xff]
        %v654 = vld [vmem:[#allocation8 + $0x28] sm:$0xff]
        %v655 = vld [vmem:[#allocation8 + $0x30] sm:$0xff]
        %v656 = vld [vmem:[#allocation8 + $0x38] sm:$0xff]
        %v657 = vld [vmem:[#allocation8 + $0x40] sm:$0xff]
        %v658 = vld [vmem:[#allocation8 + $0x48] sm:$0xff]
        %v659 = vld [vmem:[#allocation8 + $0x50] sm:$0xff]
        %v660 = vld [vmem:[#allocation8 + $0x58] sm:$0xff]
        %v661 = vld [vmem:[#allocation8 + $0x60] sm:$0xff]
        %v662 = vld [vmem:[#allocation8 + $0x68] sm:$0xff]
        %v663 = vld [vmem:[#allocation8 + $0x70] sm:$0xff]
        %v664 = vld [vmem:[#allocation8 + $0x78] sm:$0xff]
        %v665 = vld [vmem:[#allocation8 + $0x80] sm:$0xff]
        %v666 = vld [vmem:[#allocation8 + $0x88] sm:$0xff]
        %v667 = vld [vmem:[#allocation8 + $0x90] sm:$0xff]
        %v668 = vld [vmem:[#allocation8 + $0x98] sm:$0xff]
        %v669 = vld [vmem:[#allocation8 + $0xa0] sm:$0xff]
        %v670 = vld [vmem:[#allocation8 + $0xa8] sm:$0xff]
        %v671 = vld [vmem:[#allocation8 + $0xb0] sm:$0xff]
        %v672 = vld [vmem:[#allocation8 + $0xb8] sm:$0xff]
        %v673 = vld [vmem:[#allocation8 + $0xc0] sm:$0xff]
        %v674 = vld [vmem:[#allocation8 + $0xc8] sm:$0xff]
        %v675 = vld [vmem:[#allocation8 + $0xd0] sm:$0xff]
        %v676 = vld [vmem:[#allocation8 + $0xd8] sm:$0xff]
        %v677 = vld [vmem:[#allocation8 + $0xe0] sm:$0xff]
        %v678 = vld [vmem:[#allocation8 + $0xe8] sm:$0xff]
        %v679 = vld [vmem:[#allocation8 + $0xf0] sm:$0xff]
        %v680 = vld [vmem:[#allocation8 + $0xf8] sm:$0xff]
        %v681 = vld [vmem:[#allocation8 + $0x100] sm:$0xff]
        %v682 = vld [vmem:[#allocation8 + $0x108] sm:$0xff]
        %v683 = vld [vmem:[#allocation8 + $0x110] sm:$0xff]
        %v684 = vld [vmem:[#allocation8 + $0x118] sm:$0xff]
        %v685 = vld [vmem:[#allocation8 + $0x120] sm:$0xff]
        %v686 = vld [vmem:[#allocation8 + $0x128] sm:$0xff]
        %v687 = vld [vmem:[#allocation8 + $0x130] sm:$0xff]
        %v688 = vld [vmem:[#allocation8 + $0x138] sm:$0xff]
        %v689 = vld [vmem:[#allocation8 + $0x140] sm:$0xff]
        %v690 = vld [vmem:[#allocation8 + $0x148] sm:$0xff]
        %v691 = vld [vmem:[#allocation8 + $0x150] sm:$0xff]
        %v692 = vld [vmem:[#allocation8 + $0x158] sm:$0xff]
        %v693 = vld [vmem:[#allocation8 + $0x160] sm:$0xff]
        %v694 = vld [vmem:[#allocation8 + $0x168] sm:$0xff]
        %v695 = vld [vmem:[#allocation8 + $0x170] sm:$0xff]
        %v696 = vld [vmem:[#allocation8 + $0x178] sm:$0xff]
        %v697 = vld [vmem:[#allocation8 + $0x180] sm:$0xff]
        %v698 = vld [vmem:[#allocation8 + $0x188] sm:$0xff]
        %v699 = vld [vmem:[#allocation8 + $0x190] sm:$0xff]
        %v700 = vld [vmem:[#allocation8 + $0x198] sm:$0xff]
        %v701 = vld [vmem:[#allocation8 + $0x1a0] sm:$0xff]
        %v702 = vld [vmem:[#allocation8 + $0x1a8] sm:$0xff]
        %v703 = vld [vmem:[#allocation8 + $0x1b0] sm:$0xff]
        %v704 = vld [vmem:[#allocation8 + $0x1b8] sm:$0xff]
        %v705 = vld [vmem:[#allocation8 + $0x1c0] sm:$0xff]
        %v706 = vld [vmem:[#allocation8 + $0x1c8] sm:$0xff]
        %v707 = vld [vmem:[#allocation8 + $0x1d0] sm:$0xff]
        %v708 = vld [vmem:[#allocation8 + $0x1d8] sm:$0xff]
        %v709 = vld [vmem:[#allocation8 + $0x1e0] sm:$0xff]
        %v710 = vld [vmem:[#allocation8 + $0x1e8] sm:$0xff]
        %v711 = vld [vmem:[#allocation8 + $0x1f0] sm:$0xff]
        %v712 = vld [vmem:[#allocation8 + $0x1f8] sm:$0xff]
        %v713 = vld [vmem:[#allocation10] sm:$0xf]
        %v715 = vperm.slane %v713, 0
        %v716 = vperm.slane %v713, 1
        %v717 = vperm.slane %v713, 2
        %v718 = vperm.slane %v713, 3
        %v787 = vunpack.c.l.b16 %v649
        %v788 = vunpack.c.h.b16 %v649
        %v789 = vunpack.c.l.b16 %v650
        %v790 = vunpack.c.h.b16 %v650
        %v791 = vunpack.c.l.b16 %v651
        %v792 = vunpack.c.h.b16 %v651
        %v793 = vunpack.c.l.b16 %v652
        %v794 = vunpack.c.h.b16 %v652
        %v795 = vunpack.c.l.b16 %v653
        %v796 = vunpack.c.h.b16 %v653
        %v797 = vunpack.c.l.b16 %v654
        %v798 = vunpack.c.h.b16 %v654
        %v799 = vunpack.c.l.b16 %v655
        %v800 = vunpack.c.h.b16 %v655
        %v801 = vunpack.c.l.b16 %v656
        %v802 = vunpack.c.h.b16 %v656
        %v803 = vunpack.c.l.b16 %v657
        %v804 = vunpack.c.h.b16 %v657
        %v805 = vunpack.c.l.b16 %v658
        %v806 = vunpack.c.h.b16 %v658
        %v807 = vunpack.c.l.b16 %v659
        %v808 = vunpack.c.h.b16 %v659
        %v809 = vunpack.c.l.b16 %v660
        %v810 = vunpack.c.h.b16 %v660
        %v811 = vunpack.c.l.b16 %v661
        %v812 = vunpack.c.h.b16 %v661
        %v813 = vunpack.c.l.b16 %v662
        %v814 = vunpack.c.h.b16 %v662
        %v815 = vunpack.c.l.b16 %v663
        %v816 = vunpack.c.h.b16 %v663
        %v817 = vunpack.c.l.b16 %v664
        %v818 = vunpack.c.h.b16 %v664
        %v819 = vunpack.c.l.b16 %v665
        %v820 = vunpack.c.h.b16 %v665
        %v821 = vunpack.c.l.b16 %v666
        %v822 = vunpack.c.h.b16 %v666
        %v823 = vunpack.c.l.b16 %v667
        %v824 = vunpack.c.h.b16 %v667
        %v825 = vunpack.c.l.b16 %v668
        %v826 = vunpack.c.h.b16 %v668
        %v827 = vunpack.c.l.b16 %v669
        %v828 = vunpack.c.h.b16 %v669
        %v829 = vunpack.c.l.b16 %v670
        %v830 = vunpack.c.h.b16 %v670
        %v831 = vunpack.c.l.b16 %v671
        %v832 = vunpack.c.h.b16 %v671
        %v833 = vunpack.c.l.b16 %v672
        %v834 = vunpack.c.h.b16 %v672
        %v835 = vunpack.c.l.b16 %v673
        %v836 = vunpack.c.h.b16 %v673
        %v837 = vunpack.c.l.b16 %v674
        %v838 = vunpack.c.h.b16 %v674
        %v839 = vunpack.c.l.b16 %v675
        %v840 = vunpack.c.h.b16 %v675
        %v841 = vunpack.c.l.b16 %v676
        %v842 = vunpack.c.h.b16 %v676
        %v843 = vunpack.c.l.b16 %v677
        %v844 = vunpack.c.h.b16 %v677
        %v845 = vunpack.c.l.b16 %v678
        %v846 = vunpack.c.h.b16 %v678
        %v847 = vunpack.c.l.b16 %v679
        %v848 = vunpack.c.h.b16 %v679
        %v849 = vunpack.c.l.b16 %v680
        %v850 = vunpack.c.h.b16 %v680
        %v851 = vunpack.c.l.b16 %v681
        %v852 = vunpack.c.h.b16 %v681
        %v853 = vunpack.c.l.b16 %v682
        %v854 = vunpack.c.h.b16 %v682
        %v855 = vunpack.c.l.b16 %v683
        %v856 = vunpack.c.h.b16 %v683
        %v857 = vunpack.c.l.b16 %v684
        %v858 = vunpack.c.h.b16 %v684
        %v859 = vunpack.c.l.b16 %v685
        %v860 = vunpack.c.h.b16 %v685
        %v861 = vunpack.c.l.b16 %v686
        %v862 = vunpack.c.h.b16 %v686
        %v863 = vunpack.c.l.b16 %v687
        %v864 = vunpack.c.h.b16 %v687
        %v865 = vunpack.c.l.b16 %v688
        %v866 = vunpack.c.h.b16 %v688
        %v867 = vunpack.c.l.b16 %v689
        %v868 = vunpack.c.h.b16 %v689
        %v869 = vunpack.c.l.b16 %v690
        %v870 = vunpack.c.h.b16 %v690
        %v871 = vunpack.c.l.b16 %v691
        %v872 = vunpack.c.h.b16 %v691
        %v873 = vunpack.c.l.b16 %v692
        %v874 = vunpack.c.h.b16 %v692
        %v875 = vunpack.c.l.b16 %v693
        %v876 = vunpack.c.h.b16 %v693
        %v877 = vunpack.c.l.b16 %v694
        %v878 = vunpack.c.h.b16 %v694
        %v879 = vunpack.c.l.b16 %v695
        %v880 = vunpack.c.h.b16 %v695
        %v881 = vunpack.c.l.b16 %v696
        %v882 = vunpack.c.h.b16 %v696
        %v883 = vunpack.c.l.b16 %v697
        %v884 = vunpack.c.h.b16 %v697
        %v885 = vunpack.c.l.b16 %v698
        %v886 = vunpack.c.h.b16 %v698
        %v887 = vunpack.c.l.b16 %v699
        %v888 = vunpack.c.h.b16 %v699
        %v889 = vunpack.c.l.b16 %v700
        %v890 = vunpack.c.h.b16 %v700
        %v891 = vunpack.c.l.b16 %v701
        %v892 = vunpack.c.h.b16 %v701
        %v893 = vunpack.c.l.b16 %v702
        %v894 = vunpack.c.h.b16 %v702
        %v895 = vunpack.c.l.b16 %v703
        %v896 = vunpack.c.h.b16 %v703
        %v897 = vunpack.c.l.b16 %v704
        %v898 = vunpack.c.h.b16 %v704
        %v899 = vunpack.c.l.b16 %v705
        %v900 = vunpack.c.h.b16 %v705
        %v901 = vunpack.c.l.b16 %v706
        %v902 = vunpack.c.h.b16 %v706
        %v903 = vunpack.c.l.b16 %v707
        %v904 = vunpack.c.h.b16 %v707
        %v905 = vunpack.c.l.b16 %v708
        %v906 = vunpack.c.h.b16 %v708
        %v907 = vunpack.c.l.b16 %v709
        %v908 = vunpack.c.h.b16 %v709
        %v909 = vunpack.c.l.b16 %v710
        %v910 = vunpack.c.h.b16 %v710
        %v911 = vunpack.c.l.b16 %v711
        %v912 = vunpack.c.h.b16 %v711
        %v913 = vunpack.c.l.b16 %v712
        %v914 = vunpack.c.h.b16 %v712
        %v915 = vpack.c.b16 %v791, %v787
        %v916 = vpack.c.b16 %v792, %v788
        %v917 = vpack.c.b16 %v793, %v789
        %v918 = vpack.c.b16 %v794, %v790
        %v919 = vpack.c.b16 %v799, %v795
        %v920 = vpack.c.b16 %v800, %v796
        %v921 = vpack.c.b16 %v801, %v797
        %v922 = vpack.c.b16 %v802, %v798
        %v923 = vpack.c.b16 %v807, %v803
        %v924 = vpack.c.b16 %v808, %v804
        %v925 = vpack.c.b16 %v809, %v805
        %v926 = vpack.c.b16 %v810, %v806
        %v927 = vpack.c.b16 %v815, %v811
        %v928 = vpack.c.b16 %v816, %v812
        %v929 = vpack.c.b16 %v817, %v813
        %v930 = vpack.c.b16 %v818, %v814
        %v931 = vpack.c.b16 %v823, %v819
        %v932 = vpack.c.b16 %v824, %v820
        %v933 = vpack.c.b16 %v825, %v821
        %v934 = vpack.c.b16 %v826, %v822
        %v935 = vpack.c.b16 %v831, %v827
        %v936 = vpack.c.b16 %v832, %v828
        %v937 = vpack.c.b16 %v833, %v829
        %v938 = vpack.c.b16 %v834, %v830
        %v939 = vpack.c.b16 %v839, %v835
        %v940 = vpack.c.b16 %v840, %v836
        %v941 = vpack.c.b16 %v841, %v837
        %v942 = vpack.c.b16 %v842, %v838
        %v943 = vpack.c.b16 %v847, %v843
        %v944 = vpack.c.b16 %v848, %v844
        %v945 = vpack.c.b16 %v849, %v845
        %v946 = vpack.c.b16 %v850, %v846
        %v947 = vpack.c.b16 %v855, %v851
        %v948 = vpack.c.b16 %v856, %v852
        %v949 = vpack.c.b16 %v857, %v853
        %v950 = vpack.c.b16 %v858, %v854
        %v951 = vpack.c.b16 %v863, %v859
        %v952 = vpack.c.b16 %v864, %v860
        %v953 = vpack.c.b16 %v865, %v861
        %v954 = vpack.c.b16 %v866, %v862
        %v955 = vpack.c.b16 %v871, %v867
        %v956 = vpack.c.b16 %v872, %v868
        %v957 = vpack.c.b16 %v873, %v869
        %v958 = vpack.c.b16 %v874, %v870
        %v959 = vpack.c.b16 %v879, %v875
        %v960 = vpack.c.b16 %v880, %v876
        %v961 = vpack.c.b16 %v881, %v877
        %v962 = vpack.c.b16 %v882, %v878
        %v963 = vpack.c.b16 %v887, %v883
        %v964 = vpack.c.b16 %v888, %v884
        %v965 = vpack.c.b16 %v889, %v885
        %v966 = vpack.c.b16 %v890, %v886
        %v967 = vpack.c.b16 %v895, %v891
        %v968 = vpack.c.b16 %v896, %v892
        %v969 = vpack.c.b16 %v897, %v893
        %v970 = vpack.c.b16 %v898, %v894
        %v971 = vpack.c.b16 %v903, %v899
        %v972 = vpack.c.b16 %v904, %v900
        %v973 = vpack.c.b16 %v905, %v901
        %v974 = vpack.c.b16 %v906, %v902
        %v975 = vpack.c.b16 %v911, %v907
        %v976 = vpack.c.b16 %v912, %v908
        %v977 = vpack.c.b16 %v913, %v909
        %v978 = vpack.c.b16 %v914, %v910
        %1043 = vmatpush.bf16.msra.mxu0 %v943
        %1044 = vmatpush.bf16.msra.mxu0 %v939
        %1045 = vmatpush.bf16.msra.mxu0 %v935
        %1046 = vmatpush.bf16.msra.mxu0 %v931
        %1047 = vmatpush.bf16.msra.mxu0 %v927
        %1048 = vmatpush.bf16.msra.mxu0 %v923
        %1049 = vmatpush.bf16.msra.mxu0 %v919
        %1050 = vmatpush.bf16.msra.mxu0 %v915
        %1051 = vmatmul.bf16.gmra.mxu0 %v647
        %v1052 = vpop.f32.mrf.mxu0
        %v1053 = vadd.f32 %v715, %v1052
        %v1054 = vpop.f32.mrf.mxu0
        %1055 = vdwg.mxu0
        %1056 = vmatpush.bf16.msra.mxu0 %v975
        %1057 = vmatpush.bf16.msra.mxu0 %v971
        %1058 = vmatpush.bf16.msra.mxu0 %v967
        %1059 = vmatpush.bf16.msra.mxu0 %v963
        %1060 = vmatpush.bf16.msra.mxu0 %v959
        %1061 = vmatpush.bf16.msra.mxu0 %v955
        %1062 = vmatpush.bf16.msra.mxu0 %v951
        %1063 = vmatpush.bf16.msra.mxu0 %v947
        %1064 = vmatmul.bf16.gmra.mxu0 %v648
        %v1065 = vpop.f32.mrf.mxu0
        %v1066 = vadd.f32 %v1053, %v1065
        %v1067 = vpop.f32.mrf.mxu0
        %1068 = vdwg.mxu0
        %1069 = vmatpush.bf16.msra.mxu0 %v944
        %1070 = vmatpush.bf16.msra.mxu0 %v940
        %1071 = vmatpush.bf16.msra.mxu0 %v936
        %1072 = vmatpush.bf16.msra.mxu0 %v932
        %1073 = vmatpush.bf16.msra.mxu0 %v928
        %1074 = vmatpush.bf16.msra.mxu0 %v924
        %1075 = vmatpush.bf16.msra.mxu0 %v920
        %1076 = vmatpush.bf16.msra.mxu0 %v916
        %1077 = vmatmul.bf16.gmra.mxu0 %v647
        %v1078 = vpop.f32.mrf.mxu0
        %v1079 = vadd.f32 %v716, %v1078
        %v1080 = vpop.f32.mrf.mxu0
        %1081 = vdwg.mxu0
        %1082 = vmatpush.bf16.msra.mxu0 %v976
        %1083 = vmatpush.bf16.msra.mxu0 %v972
        %1084 = vmatpush.bf16.msra.mxu0 %v968
        %1085 = vmatpush.bf16.msra.mxu0 %v964
        %1086 = vmatpush.bf16.msra.mxu0 %v960
        %1087 = vmatpush.bf16.msra.mxu0 %v956
        %1088 = vmatpush.bf16.msra.mxu0 %v952
        %1089 = vmatpush.bf16.msra.mxu0 %v948
        %1090 = vmatmul.bf16.gmra.mxu0 %v648
        %v1091 = vpop.f32.mrf.mxu0
        %v1092 = vadd.f32 %v1079, %v1091
        %v1093 = vpop.f32.mrf.mxu0
        %1094 = vdwg.mxu0
        %1095 = vmatpush.bf16.msra.mxu0 %v945
        %1096 = vmatpush.bf16.msra.mxu0 %v941
        %1097 = vmatpush.bf16.msra.mxu0 %v937
        %1098 = vmatpush.bf16.msra.mxu0 %v933
        %1099 = vmatpush.bf16.msra.mxu0 %v929
        %1100 = vmatpush.bf16.msra.mxu0 %v925
        %1101 = vmatpush.bf16.msra.mxu0 %v921
        %1102 = vmatpush.bf16.msra.mxu0 %v917
        %1103 = vmatmul.bf16.gmra.mxu0 %v647
        %v1104 = vpop.f32.mrf.mxu0
        %v1105 = vadd.f32 %v717, %v1104
        %v1106 = vpop.f32.mrf.mxu0
        %1107 = vdwg.mxu0
        %1108 = vmatpush.bf16.msra.mxu0 %v977
        %1109 = vmatpush.bf16.msra.mxu0 %v973
        %1110 = vmatpush.bf16.msra.mxu0 %v969
        %1111 = vmatpush.bf16.msra.mxu0 %v965
        %1112 = vmatpush.bf16.msra.mxu0 %v961
        %1113 = vmatpush.bf16.msra.mxu0 %v957
        %1114 = vmatpush.bf16.msra.mxu0 %v953
        %1115 = vmatpush.bf16.msra.mxu0 %v949
        %1116 = vmatmul.bf16.gmra.mxu0 %v648
        %v1117 = vpop.f32.mrf.mxu0
        %v1118 = vadd.f32 %v1105, %v1117
        %v1119 = vpop.f32.mrf.mxu0
        %1120 = vdwg.mxu0
        %1121 = vmatpush.bf16.msra.mxu0 %v946
        %1122 = vmatpush.bf16.msra.mxu0 %v942
        %1123 = vmatpush.bf16.msra.mxu0 %v938
        %1124 = vmatpush.bf16.msra.mxu0 %v934
        %1125 = vmatpush.bf16.msra.mxu0 %v930
        %1126 = vmatpush.bf16.msra.mxu0 %v926
        %1127 = vmatpush.bf16.msra.mxu0 %v922
        %1128 = vmatpush.bf16.msra.mxu0 %v918
        %1129 = vmatmul.bf16.gmra.mxu0 %v647
        %v1130 = vpop.f32.mrf.mxu0
        %v1131 = vadd.f32 %v718, %v1130
        %v1132 = vpop.f32.mrf.mxu0
        %1133 = vdwg.mxu0
        %1134 = vmatpush.bf16.msra.mxu0 %v978
        %1135 = vmatpush.bf16.msra.mxu0 %v974
        %1136 = vmatpush.bf16.msra.mxu0 %v970
        %1137 = vmatpush.bf16.msra.mxu0 %v966
        %1138 = vmatpush.bf16.msra.mxu0 %v962
        %1139 = vmatpush.bf16.msra.mxu0 %v958
        %1140 = vmatpush.bf16.msra.mxu0 %v954
        %1141 = vmatpush.bf16.msra.mxu0 %v950
        %1142 = vmatmul.bf16.gmra.mxu0 %v648
        %v1143 = vpop.f32.mrf.mxu0
        %v1144 = vadd.f32 %v1131, %v1143
        %v1145 = vpop.f32.mrf.mxu0
        %1146 = vdwg.mxu0
        %v1147 = vmax.f32 %v1066, 0.0
        %v1148 = vmax.f32 %v1092, 0.0
        %v1149 = vmax.f32 %v1118, 0.0
        %v1150 = vmax.f32 %v1144, 0.0
        %v1151 = vpack.c.bf16 %v1147, %v1147
        %v1152 = vpack.c.bf16 %v1148, %v1148
        %v1153 = vpack.c.bf16 %v1149, %v1149
        %v1154 = vpack.c.bf16 %v1150, %v1150
        %v1155 = vld [vmem:[#allocation11] sm:$0xff]
        %v1156 = vld [vmem:[#allocation11 + $0x8] sm:$0xff]
        %v1157 = vld [vmem:[#allocation11 + $0x10] sm:$0xff]
        %v1158 = vld [vmem:[#allocation11 + $0x18] sm:$0xff]
        %v1159 = vld [vmem:[#allocation11 + $0x20] sm:$0xff]
        %v1160 = vld [vmem:[#allocation11 + $0x28] sm:$0xff]
        %v1161 = vld [vmem:[#allocation11 + $0x30] sm:$0xff]
        %v1162 = vld [vmem:[#allocation11 + $0x38] sm:$0xff]
        %v1163 = vld [vmem:[#allocation11 + $0x40] sm:$0xff]
        %v1164 = vld [vmem:[#allocation11 + $0x48] sm:$0xff]
        %v1165 = vld [vmem:[#allocation11 + $0x50] sm:$0xff]
        %v1166 = vld [vmem:[#allocation11 + $0x58] sm:$0xff]
        %v1167 = vld [vmem:[#allocation11 + $0x60] sm:$0xff]
        %v1168 = vld [vmem:[#allocation11 + $0x68] sm:$0xff]
        %v1169 = vld [vmem:[#allocation11 + $0x70] sm:$0xff]
        %v1170 = vld [vmem:[#allocation11 + $0x78] sm:$0xff]
        %v1171 = vld [vmem:[#allocation11 + $0x80] sm:$0xff]
        %v1172 = vld [vmem:[#allocation11 + $0x88] sm:$0xff]
        %v1173 = vld [vmem:[#allocation11 + $0x90] sm:$0xff]
        %v1174 = vld [vmem:[#allocation11 + $0x98] sm:$0xff]
        %v1175 = vld [vmem:[#allocation11 + $0xa0] sm:$0xff]
        %v1176 = vld [vmem:[#allocation11 + $0xa8] sm:$0xff]
        %v1177 = vld [vmem:[#allocation11 + $0xb0] sm:$0xff]
        %v1178 = vld [vmem:[#allocation11 + $0xb8] sm:$0xff]
        %v1179 = vld [vmem:[#allocation11 + $0xc0] sm:$0xff]
        %v1180 = vld [vmem:[#allocation11 + $0xc8] sm:$0xff]
        %v1181 = vld [vmem:[#allocation11 + $0xd0] sm:$0xff]
        %v1182 = vld [vmem:[#allocation11 + $0xd8] sm:$0xff]
        %v1183 = vld [vmem:[#allocation11 + $0xe0] sm:$0xff]
        %v1184 = vld [vmem:[#allocation11 + $0xe8] sm:$0xff]
        %v1185 = vld [vmem:[#allocation11 + $0xf0] sm:$0xff]
        %v1186 = vld [vmem:[#allocation11 + $0xf8] sm:$0xff]
        %v1187 = vld [vmem:[#allocation11 + $0x100] sm:$0xff]
        %v1188 = vld [vmem:[#allocation11 + $0x108] sm:$0xff]
        %v1189 = vld [vmem:[#allocation11 + $0x110] sm:$0xff]
        %v1190 = vld [vmem:[#allocation11 + $0x118] sm:$0xff]
        %v1191 = vld [vmem:[#allocation11 + $0x120] sm:$0xff]
        %v1192 = vld [vmem:[#allocation11 + $0x128] sm:$0xff]
        %v1193 = vld [vmem:[#allocation11 + $0x130] sm:$0xff]
        %v1194 = vld [vmem:[#allocation11 + $0x138] sm:$0xff]
        %v1195 = vld [vmem:[#allocation11 + $0x140] sm:$0xff]
        %v1196 = vld [vmem:[#allocation11 + $0x148] sm:$0xff]
        %v1197 = vld [vmem:[#allocation11 + $0x150] sm:$0xff]
        %v1198 = vld [vmem:[#allocation11 + $0x158] sm:$0xff]
        %v1199 = vld [vmem:[#allocation11 + $0x160] sm:$0xff]
        %v1200 = vld [vmem:[#allocation11 + $0x168] sm:$0xff]
        %v1201 = vld [vmem:[#allocation11 + $0x170] sm:$0xff]
        %v1202 = vld [vmem:[#allocation11 + $0x178] sm:$0xff]
        %v1203 = vld [vmem:[#allocation11 + $0x180] sm:$0xff]
        %v1204 = vld [vmem:[#allocation11 + $0x188] sm:$0xff]
        %v1205 = vld [vmem:[#allocation11 + $0x190] sm:$0xff]
        %v1206 = vld [vmem:[#allocation11 + $0x198] sm:$0xff]
        %v1207 = vld [vmem:[#allocation11 + $0x1a0] sm:$0xff]
        %v1208 = vld [vmem:[#allocation11 + $0x1a8] sm:$0xff]
        %v1209 = vld [vmem:[#allocation11 + $0x1b0] sm:$0xff]
        %v1210 = vld [vmem:[#allocation11 + $0x1b8] sm:$0xff]
        %v1211 = vld [vmem:[#allocation11 + $0x1c0] sm:$0xff]
        %v1212 = vld [vmem:[#allocation11 + $0x1c8] sm:$0xff]
        %v1213 = vld [vmem:[#allocation11 + $0x1d0] sm:$0xff]
        %v1214 = vld [vmem:[#allocation11 + $0x1d8] sm:$0xff]
        %v1215 = vld [vmem:[#allocation11 + $0x1e0] sm:$0xff]
        %v1216 = vld [vmem:[#allocation11 + $0x1e8] sm:$0xff]
        %v1217 = vld [vmem:[#allocation11 + $0x1f0] sm:$0xff]
        %v1218 = vld [vmem:[#allocation11 + $0x1f8] sm:$0xff]
        %v1219 = vld [vmem:[%s6] sm:$0x3]
        %v1221 = vperm.slane %v1219, 0
        %v1222 = vperm.slane %v1219, 1
        %v1289 = vunpack.c.l.b16 %v1155
        %v1290 = vunpack.c.h.b16 %v1155
        %v1291 = vunpack.c.l.b16 %v1156
        %v1292 = vunpack.c.h.b16 %v1156
        %v1293 = vunpack.c.l.b16 %v1157
        %v1294 = vunpack.c.h.b16 %v1157
        %v1295 = vunpack.c.l.b16 %v1158
        %v1296 = vunpack.c.h.b16 %v1158
        %v1297 = vunpack.c.l.b16 %v1159
        %v1298 = vunpack.c.h.b16 %v1159
        %v1299 = vunpack.c.l.b16 %v1160
        %v1300 = vunpack.c.h.b16 %v1160
        %v1301 = vunpack.c.l.b16 %v1161
        %v1302 = vunpack.c.h.b16 %v1161
        %v1303 = vunpack.c.l.b16 %v1162
        %v1304 = vunpack.c.h.b16 %v1162
        %v1305 = vunpack.c.l.b16 %v1163
        %v1306 = vunpack.c.h.b16 %v1163
        %v1307 = vunpack.c.l.b16 %v1164
        %v1308 = vunpack.c.h.b16 %v1164
        %v1309 = vunpack.c.l.b16 %v1165
        %v1310 = vunpack.c.h.b16 %v1165
        %v1311 = vunpack.c.l.b16 %v1166
        %v1312 = vunpack.c.h.b16 %v1166
        %v1313 = vunpack.c.l.b16 %v1167
        %v1314 = vunpack.c.h.b16 %v1167
        %v1315 = vunpack.c.l.b16 %v1168
        %v1316 = vunpack.c.h.b16 %v1168
        %v1317 = vunpack.c.l.b16 %v1169
        %v1318 = vunpack.c.h.b16 %v1169
        %v1319 = vunpack.c.l.b16 %v1170
        %v1320 = vunpack.c.h.b16 %v1170
        %v1321 = vunpack.c.l.b16 %v1171
        %v1322 = vunpack.c.h.b16 %v1171
        %v1323 = vunpack.c.l.b16 %v1172
        %v1324 = vunpack.c.h.b16 %v1172
        %v1325 = vunpack.c.l.b16 %v1173
        %v1326 = vunpack.c.h.b16 %v1173
        %v1327 = vunpack.c.l.b16 %v1174
        %v1328 = vunpack.c.h.b16 %v1174
        %v1329 = vunpack.c.l.b16 %v1175
        %v1330 = vunpack.c.h.b16 %v1175
        %v1331 = vunpack.c.l.b16 %v1176
        %v1332 = vunpack.c.h.b16 %v1176
        %v1333 = vunpack.c.l.b16 %v1177
        %v1334 = vunpack.c.h.b16 %v1177
        %v1335 = vunpack.c.l.b16 %v1178
        %v1336 = vunpack.c.h.b16 %v1178
        %v1337 = vunpack.c.l.b16 %v1179
        %v1338 = vunpack.c.h.b16 %v1179
        %v1339 = vunpack.c.l.b16 %v1180
        %v1340 = vunpack.c.h.b16 %v1180
        %v1341 = vunpack.c.l.b16 %v1181
        %v1342 = vunpack.c.h.b16 %v1181
        %v1343 = vunpack.c.l.b16 %v1182
        %v1344 = vunpack.c.h.b16 %v1182
        %v1345 = vunpack.c.l.b16 %v1183
        %v1346 = vunpack.c.h.b16 %v1183
        %v1347 = vunpack.c.l.b16 %v1184
        %v1348 = vunpack.c.h.b16 %v1184
        %v1349 = vunpack.c.l.b16 %v1185
        %v1350 = vunpack.c.h.b16 %v1185
        %v1351 = vunpack.c.l.b16 %v1186
        %v1352 = vunpack.c.h.b16 %v1186
        %v1353 = vunpack.c.l.b16 %v1187
        %v1354 = vunpack.c.h.b16 %v1187
        %v1355 = vunpack.c.l.b16 %v1188
        %v1356 = vunpack.c.h.b16 %v1188
        %v1357 = vunpack.c.l.b16 %v1189
        %v1358 = vunpack.c.h.b16 %v1189
        %v1359 = vunpack.c.l.b16 %v1190
        %v1360 = vunpack.c.h.b16 %v1190
        %v1361 = vunpack.c.l.b16 %v1191
        %v1362 = vunpack.c.h.b16 %v1191
        %v1363 = vunpack.c.l.b16 %v1192
        %v1364 = vunpack.c.h.b16 %v1192
        %v1365 = vunpack.c.l.b16 %v1193
        %v1366 = vunpack.c.h.b16 %v1193
        %v1367 = vunpack.c.l.b16 %v1194
        %v1368 = vunpack.c.h.b16 %v1194
        %v1369 = vunpack.c.l.b16 %v1195
        %v1370 = vunpack.c.h.b16 %v1195
        %v1371 = vunpack.c.l.b16 %v1196
        %v1372 = vunpack.c.h.b16 %v1196
        %v1373 = vunpack.c.l.b16 %v1197
        %v1374 = vunpack.c.h.b16 %v1197
        %v1375 = vunpack.c.l.b16 %v1198
        %v1376 = vunpack.c.h.b16 %v1198
        %v1377 = vunpack.c.l.b16 %v1199
        %v1378 = vunpack.c.h.b16 %v1199
        %v1379 = vunpack.c.l.b16 %v1200
        %v1380 = vunpack.c.h.b16 %v1200
        %v1381 = vunpack.c.l.b16 %v1201
        %v1382 = vunpack.c.h.b16 %v1201
        %v1383 = vunpack.c.l.b16 %v1202
        %v1384 = vunpack.c.h.b16 %v1202
        %v1385 = vunpack.c.l.b16 %v1203
        %v1386 = vunpack.c.h.b16 %v1203
        %v1387 = vunpack.c.l.b16 %v1204
        %v1388 = vunpack.c.h.b16 %v1204
        %v1389 = vunpack.c.l.b16 %v1205
        %v1390 = vunpack.c.h.b16 %v1205
        %v1391 = vunpack.c.l.b16 %v1206
        %v1392 = vunpack.c.h.b16 %v1206
        %v1393 = vunpack.c.l.b16 %v1207
        %v1394 = vunpack.c.h.b16 %v1207
        %v1395 = vunpack.c.l.b16 %v1208
        %v1396 = vunpack.c.h.b16 %v1208
        %v1397 = vunpack.c.l.b16 %v1209
        %v1398 = vunpack.c.h.b16 %v1209
        %v1399 = vunpack.c.l.b16 %v1210
        %v1400 = vunpack.c.h.b16 %v1210
        %v1401 = vunpack.c.l.b16 %v1211
        %v1402 = vunpack.c.h.b16 %v1211
        %v1403 = vunpack.c.l.b16 %v1212
        %v1404 = vunpack.c.h.b16 %v1212
        %v1405 = vunpack.c.l.b16 %v1213
        %v1406 = vunpack.c.h.b16 %v1213
        %v1407 = vunpack.c.l.b16 %v1214
        %v1408 = vunpack.c.h.b16 %v1214
        %v1409 = vunpack.c.l.b16 %v1215
        %v1410 = vunpack.c.h.b16 %v1215
        %v1411 = vunpack.c.l.b16 %v1216
        %v1412 = vunpack.c.h.b16 %v1216
        %v1413 = vunpack.c.l.b16 %v1217
        %v1414 = vunpack.c.h.b16 %v1217
        %v1415 = vunpack.c.l.b16 %v1218
        %v1416 = vunpack.c.h.b16 %v1218
        %v1417 = vpack.c.b16 %v1291, %v1289
        %v1418 = vpack.c.b16 %v1292, %v1290
        %v1419 = vpack.c.b16 %v1295, %v1293
        %v1420 = vpack.c.b16 %v1296, %v1294
        %v1421 = vpack.c.b16 %v1299, %v1297
        %v1422 = vpack.c.b16 %v1300, %v1298
        %v1423 = vpack.c.b16 %v1303, %v1301
        %v1424 = vpack.c.b16 %v1304, %v1302
        %v1425 = vpack.c.b16 %v1307, %v1305
        %v1426 = vpack.c.b16 %v1308, %v1306
        %v1427 = vpack.c.b16 %v1311, %v1309
        %v1428 = vpack.c.b16 %v1312, %v1310
        %v1429 = vpack.c.b16 %v1315, %v1313
        %v1430 = vpack.c.b16 %v1316, %v1314
        %v1431 = vpack.c.b16 %v1319, %v1317
        %v1432 = vpack.c.b16 %v1320, %v1318
        %v1433 = vpack.c.b16 %v1323, %v1321
        %v1434 = vpack.c.b16 %v1324, %v1322
        %v1435 = vpack.c.b16 %v1327, %v1325
        %v1436 = vpack.c.b16 %v1328, %v1326
        %v1437 = vpack.c.b16 %v1331, %v1329
        %v1438 = vpack.c.b16 %v1332, %v1330
        %v1439 = vpack.c.b16 %v1335, %v1333
        %v1440 = vpack.c.b16 %v1336, %v1334
        %v1441 = vpack.c.b16 %v1339, %v1337
        %v1442 = vpack.c.b16 %v1340, %v1338
        %v1443 = vpack.c.b16 %v1343, %v1341
        %v1444 = vpack.c.b16 %v1344, %v1342
        %v1445 = vpack.c.b16 %v1347, %v1345
        %v1446 = vpack.c.b16 %v1348, %v1346
        %v1447 = vpack.c.b16 %v1351, %v1349
        %v1448 = vpack.c.b16 %v1352, %v1350
        %v1449 = vpack.c.b16 %v1355, %v1353
        %v1450 = vpack.c.b16 %v1356, %v1354
        %v1451 = vpack.c.b16 %v1359, %v1357
        %v1452 = vpack.c.b16 %v1360, %v1358
        %v1453 = vpack.c.b16 %v1363, %v1361
        %v1454 = vpack.c.b16 %v1364, %v1362
        %v1455 = vpack.c.b16 %v1367, %v1365
        %v1456 = vpack.c.b16 %v1368, %v1366
        %v1457 = vpack.c.b16 %v1371, %v1369
        %v1458 = vpack.c.b16 %v1372, %v1370
        %v1459 = vpack.c.b16 %v1375, %v1373
        %v1460 = vpack.c.b16 %v1376, %v1374
        %v1461 = vpack.c.b16 %v1379, %v1377
        %v1462 = vpack.c.b16 %v1380, %v1378
        %v1463 = vpack.c.b16 %v1383, %v1381
        %v1464 = vpack.c.b16 %v1384, %v1382
        %v1465 = vpack.c.b16 %v1387, %v1385
        %v1466 = vpack.c.b16 %v1388, %v1386
        %v1467 = vpack.c.b16 %v1391, %v1389
        %v1468 = vpack.c.b16 %v1392, %v1390
        %v1469 = vpack.c.b16 %v1395, %v1393
        %v1470 = vpack.c.b16 %v1396, %v1394
        %v1471 = vpack.c.b16 %v1399, %v1397
        %v1472 = vpack.c.b16 %v1400, %v1398
        %v1473 = vpack.c.b16 %v1403, %v1401
        %v1474 = vpack.c.b16 %v1404, %v1402
        %v1475 = vpack.c.b16 %v1407, %v1405
        %v1476 = vpack.c.b16 %v1408, %v1406
        %v1477 = vpack.c.b16 %v1411, %v1409
        %v1478 = vpack.c.b16 %v1412, %v1410
        %v1479 = vpack.c.b16 %v1415, %v1413
        %v1480 = vpack.c.b16 %v1416, %v1414
        %1545 = vmatpush.bf16.msra.mxu0 %v1431
        %1546 = vmatpush.bf16.msra.mxu0 %v1429
        %1547 = vmatpush.bf16.msra.mxu0 %v1427
        %1548 = vmatpush.bf16.msra.mxu0 %v1425
        %1549 = vmatpush.bf16.msra.mxu0 %v1423
        %1550 = vmatpush.bf16.msra.mxu0 %v1421
        %1551 = vmatpush.bf16.msra.mxu0 %v1419
        %1552 = vmatpush.bf16.msra.mxu0 %v1417
        %1553 = vmatmul.bf16.gmra.mxu0 %v1151
        %v1554 = vpop.f32.mrf.mxu0
        %v1555 = vadd.f32 %v1221, %v1554
        %v1556 = vpop.f32.mrf.mxu0
        %1557 = vdwg.mxu0
        %1558 = vmatpush.bf16.msra.mxu0 %v1447
        %1559 = vmatpush.bf16.msra.mxu0 %v1445
        %1560 = vmatpush.bf16.msra.mxu0 %v1443
        %1561 = vmatpush.bf16.msra.mxu0 %v1441
        %1562 = vmatpush.bf16.msra.mxu0 %v1439
        %1563 = vmatpush.bf16.msra.mxu0 %v1437
        %1564 = vmatpush.bf16.msra.mxu0 %v1435
        %1565 = vmatpush.bf16.msra.mxu0 %v1433
        %1566 = vmatmul.bf16.gmra.mxu0 %v1152
        %v1567 = vpop.f32.mrf.mxu0
        %v1568 = vadd.f32 %v1555, %v1567
        %v1569 = vpop.f32.mrf.mxu0
        %1570 = vdwg.mxu0
        %1571 = vmatpush.bf16.msra.mxu0 %v1463
        %1572 = vmatpush.bf16.msra.mxu0 %v1461
        %1573 = vmatpush.bf16.msra.mxu0 %v1459
        %1574 = vmatpush.bf16.msra.mxu0 %v1457
        %1575 = vmatpush.bf16.msra.mxu0 %v1455
        %1576 = vmatpush.bf16.msra.mxu0 %v1453
        %1577 = vmatpush.bf16.msra.mxu0 %v1451
        %1578 = vmatpush.bf16.msra.mxu0 %v1449
        %1579 = vmatmul.bf16.gmra.mxu0 %v1153
        %v1580 = vpop.f32.mrf.mxu0
        %v1581 = vadd.f32 %v1568, %v1580
        %v1582 = vpop.f32.mrf.mxu0
        %1583 = vdwg.mxu0
        %1584 = vmatpush.bf16.msra.mxu0 %v1479
        %1585 = vmatpush.bf16.msra.mxu0 %v1477
        %1586 = vmatpush.bf16.msra.mxu0 %v1475
        %1587 = vmatpush.bf16.msra.mxu0 %v1473
        %1588 = vmatpush.bf16.msra.mxu0 %v1471
        %1589 = vmatpush.bf16.msra.mxu0 %v1469
        %1590 = vmatpush.bf16.msra.mxu0 %v1467
        %1591 = vmatpush.bf16.msra.mxu0 %v1465
        %1592 = vmatmul.bf16.gmra.mxu0 %v1154
        %v1593 = vpop.f32.mrf.mxu0
        %v1594 = vadd.f32 %v1581, %v1593
        %v1595 = vpop.f32.mrf.mxu0
        %1596 = vdwg.mxu0
        %1597 = vmatpush.bf16.msra.mxu0 %v1432
        %1598 = vmatpush.bf16.msra.mxu0 %v1430
        %1599 = vmatpush.bf16.msra.mxu0 %v1428
        %1600 = vmatpush.bf16.msra.mxu0 %v1426
        %1601 = vmatpush.bf16.msra.mxu0 %v1424
        %1602 = vmatpush.bf16.msra.mxu0 %v1422
        %1603 = vmatpush.bf16.msra.mxu0 %v1420
        %1604 = vmatpush.bf16.msra.mxu0 %v1418
        %1605 = vmatmul.bf16.gmra.mxu0 %v1151
        %v1606 = vpop.f32.mrf.mxu0
        %v1607 = vadd.f32 %v1222, %v1606
        %v1608 = vpop.f32.mrf.mxu0
        %1609 = vdwg.mxu0
        %1610 = vmatpush.bf16.msra.mxu0 %v1448
        %1611 = vmatpush.bf16.msra.mxu0 %v1446
        %1612 = vmatpush.bf16.msra.mxu0 %v1444
        %1613 = vmatpush.bf16.msra.mxu0 %v1442
        %1614 = vmatpush.bf16.msra.mxu0 %v1440
        %1615 = vmatpush.bf16.msra.mxu0 %v1438
        %1616 = vmatpush.bf16.msra.mxu0 %v1436
        %1617 = vmatpush.bf16.msra.mxu0 %v1434
        %1618 = vmatmul.bf16.gmra.mxu0 %v1152
        %v1619 = vpop.f32.mrf.mxu0
        %v1620 = vadd.f32 %v1607, %v1619
        %v1621 = vpop.f32.mrf.mxu0
        %1622 = vdwg.mxu0
        %1623 = vmatpush.bf16.msra.mxu0 %v1464
        %1624 = vmatpush.bf16.msra.mxu0 %v1462
        %1625 = vmatpush.bf16.msra.mxu0 %v1460
        %1626 = vmatpush.bf16.msra.mxu0 %v1458
        %1627 = vmatpush.bf16.msra.mxu0 %v1456
        %1628 = vmatpush.bf16.msra.mxu0 %v1454
        %1629 = vmatpush.bf16.msra.mxu0 %v1452
        %1630 = vmatpush.bf16.msra.mxu0 %v1450
        %1631 = vmatmul.bf16.gmra.mxu0 %v1153
        %v1632 = vpop.f32.mrf.mxu0
        %v1633 = vadd.f32 %v1620, %v1632
        %v1634 = vpop.f32.mrf.mxu0
        %1635 = vdwg.mxu0
        %1636 = vmatpush.bf16.msra.mxu0 %v1480
        %1637 = vmatpush.bf16.msra.mxu0 %v1478
        %1638 = vmatpush.bf16.msra.mxu0 %v1476
        %1639 = vmatpush.bf16.msra.mxu0 %v1474
        %1640 = vmatpush.bf16.msra.mxu0 %v1472
        %1641 = vmatpush.bf16.msra.mxu0 %v1470
        %1642 = vmatpush.bf16.msra.mxu0 %v1468
        %1643 = vmatpush.bf16.msra.mxu0 %v1466
        %1644 = vmatmul.bf16.gmra.mxu0 %v1154
        %v1645 = vpop.f32.mrf.mxu0
        %v1646 = vadd.f32 %v1633, %v1645
        %v1647 = vpop.f32.mrf.mxu0
        %1648 = vdwg.mxu0
        %v1649 = vmax.f32 %v1594, 0.0
        %v1650 = vmax.f32 %v1646, 0.0
        %v1651 = vpack.c.bf16 %v1649, %v1649
        %v1652 = vpack.c.bf16 %v1650, %v1650
        %v1653 = vld [vmem:[#allocation13] sm:$0xf]
        %v1654 = vld [vmem:[#allocation13 + $0x4] sm:$0xf]
        %v1655 = vld [vmem:[#allocation13 + $0x8] sm:$0xf]
        %v1656 = vld [vmem:[#allocation13 + $0xc] sm:$0xf]
        %v1657 = vld [vmem:[#allocation13 + $0x10] sm:$0xf]
        %v1658 = vld [vmem:[#allocation13 + $0x14] sm:$0xf]
        %v1659 = vld [vmem:[#allocation13 + $0x18] sm:$0xf]
        %v1660 = vld [vmem:[#allocation13 + $0x1c] sm:$0xf]
        %v1661 = vld [vmem:[#allocation13 + $0x20] sm:$0xf]
        %v1662 = vld [vmem:[#allocation13 + $0x24] sm:$0xf]
        %v1663 = vld [vmem:[#allocation13 + $0x28] sm:$0xf]
        %v1664 = vld [vmem:[#allocation13 + $0x2c] sm:$0xf]
        %v1665 = vld [vmem:[#allocation13 + $0x30] sm:$0xf]
        %v1666 = vld [vmem:[#allocation13 + $0x34] sm:$0xf]
        %v1667 = vld [vmem:[#allocation13 + $0x38] sm:$0xf]
        %v1668 = vld [vmem:[#allocation13 + $0x3c] sm:$0xf]
        %v1669 = vld [vmem:[#allocation13 + $0x40] sm:$0xf]
        %v1670 = vld [vmem:[#allocation13 + $0x44] sm:$0xf]
        %v1671 = vld [vmem:[#allocation13 + $0x48] sm:$0xf]
        %v1672 = vld [vmem:[#allocation13 + $0x4c] sm:$0xf]
        %v1673 = vld [vmem:[#allocation13 + $0x50] sm:$0xf]
        %v1674 = vld [vmem:[#allocation13 + $0x54] sm:$0xf]
        %v1675 = vld [vmem:[#allocation13 + $0x58] sm:$0xf]
        %v1676 = vld [vmem:[#allocation13 + $0x5c] sm:$0xf]
        %v1677 = vld [vmem:[#allocation13 + $0x60] sm:$0xf]
        %v1678 = vld [vmem:[#allocation13 + $0x64] sm:$0xf]
        %v1679 = vld [vmem:[#allocation13 + $0x68] sm:$0xf]
        %v1680 = vld [vmem:[#allocation13 + $0x6c] sm:$0xf]
        %v1681 = vld [vmem:[#allocation13 + $0x70] sm:$0xf]
        %v1682 = vld [vmem:[#allocation13 + $0x74] sm:$0xf]
        %v1683 = vld [vmem:[#allocation13 + $0x78] sm:$0xf]
        %v1684 = vld [vmem:[#allocation13 + $0x7c] sm:$0xf]
        %v1685 = vld [vmem:[%s8] sm:$0x1]
        %v1687 = vperm.slane %v1685, 0
        %v1721 = vunpack.c.l.b16 %v1653
        %v1722 = vunpack.c.l.b16 %v1654
        %v1723 = vunpack.c.l.b16 %v1655
        %v1724 = vunpack.c.l.b16 %v1656
        %v1725 = vunpack.c.l.b16 %v1657
        %v1726 = vunpack.c.l.b16 %v1658
        %v1727 = vunpack.c.l.b16 %v1659
        %v1728 = vunpack.c.l.b16 %v1660
        %v1729 = vunpack.c.l.b16 %v1661
        %v1730 = vunpack.c.l.b16 %v1662
        %v1731 = vunpack.c.l.b16 %v1663
        %v1732 = vunpack.c.l.b16 %v1664
        %v1733 = vunpack.c.l.b16 %v1665
        %v1734 = vunpack.c.l.b16 %v1666
        %v1735 = vunpack.c.l.b16 %v1667
        %v1736 = vunpack.c.l.b16 %v1668
        %v1737 = vunpack.c.l.b16 %v1669
        %v1738 = vunpack.c.l.b16 %v1670
        %v1739 = vunpack.c.l.b16 %v1671
        %v1740 = vunpack.c.l.b16 %v1672
        %v1741 = vunpack.c.l.b16 %v1673
        %v1742 = vunpack.c.l.b16 %v1674
        %v1743 = vunpack.c.l.b16 %v1675
        %v1744 = vunpack.c.l.b16 %v1676
        %v1745 = vunpack.c.l.b16 %v1677
        %v1746 = vunpack.c.l.b16 %v1678
        %v1747 = vunpack.c.l.b16 %v1679
        %v1748 = vunpack.c.l.b16 %v1680
        %v1749 = vunpack.c.l.b16 %v1681
        %v1750 = vunpack.c.l.b16 %v1682
        %v1751 = vunpack.c.l.b16 %v1683
        %v1752 = vunpack.c.l.b16 %v1684
        %v1753 = vpack.c.b16 %v1722, %v1721
        %v1754 = vpack.c.b16 %v1724, %v1723
        %v1755 = vpack.c.b16 %v1726, %v1725
        %v1756 = vpack.c.b16 %v1728, %v1727
        %v1757 = vpack.c.b16 %v1730, %v1729
        %v1758 = vpack.c.b16 %v1732, %v1731
        %v1759 = vpack.c.b16 %v1734, %v1733
        %v1760 = vpack.c.b16 %v1736, %v1735
        %v1761 = vpack.c.b16 %v1738, %v1737
        %v1762 = vpack.c.b16 %v1740, %v1739
        %v1763 = vpack.c.b16 %v1742, %v1741
        %v1764 = vpack.c.b16 %v1744, %v1743
        %v1765 = vpack.c.b16 %v1746, %v1745
        %v1766 = vpack.c.b16 %v1748, %v1747
        %v1767 = vpack.c.b16 %v1750, %v1749
        %v1768 = vpack.c.b16 %v1752, %v1751
        %1785 = vmatpush.bf16.msra.mxu0 %v1760
        %1786 = vmatpush.bf16.msra.mxu0 %v1759
        %1787 = vmatpush.bf16.msra.mxu0 %v1758
        %1788 = vmatpush.bf16.msra.mxu0 %v1757
        %1789 = vmatpush.bf16.msra.mxu0 %v1756
        %1790 = vmatpush.bf16.msra.mxu0 %v1755
        %1791 = vmatpush.bf16.msra.mxu0 %v1754
        %1792 = vmatpush.bf16.msra.mxu0 %v1753
        %1793 = vmatmul.bf16.gmra.mxu0 %v1651
        %v1794 = vpop.f32.mrf.mxu0
        %v1795 = vadd.f32 %v1687, %v1794
        %v1796 = vpop.f32.mrf.mxu0
        %1797 = vdwg.mxu0
        %1798 = vmatpush.bf16.msra.mxu0 %v1768
        %1799 = vmatpush.bf16.msra.mxu0 %v1767
        %1800 = vmatpush.bf16.msra.mxu0 %v1766
        %1801 = vmatpush.bf16.msra.mxu0 %v1765
        %1802 = vmatpush.bf16.msra.mxu0 %v1764
        %1803 = vmatpush.bf16.msra.mxu0 %v1763
        %1804 = vmatpush.bf16.msra.mxu0 %v1762
        %1805 = vmatpush.bf16.msra.mxu0 %v1761
        %1806 = vmatmul.bf16.gmra.mxu0 %v1652
        %v1807 = vpop.f32.mrf.mxu0
        %v1808 = vadd.f32 %v1795, %v1807
        %v1809 = vpop.f32.mrf.mxu0
        %1810 = vdwg.mxu0
        %v1811 = vmax.f32 %v1808, 0.0
        %v1812 = vpack.c.bf16 %v1811, %v1811
        %v1813 = vld [vmem:[#allocation14] sm:$0xf]
        %v1814 = vld [vmem:[#allocation14 + $0x4] sm:$0xf]
        %v1815 = vld [vmem:[#allocation14 + $0x8] sm:$0xf]
        %v1816 = vld [vmem:[#allocation14 + $0xc] sm:$0xf]
        %v1817 = vld [vmem:[#allocation14 + $0x10] sm:$0xf]
        %v1818 = vld [vmem:[#allocation14 + $0x14] sm:$0xf]
        %v1819 = vld [vmem:[#allocation14 + $0x18] sm:$0xf]
        %v1820 = vld [vmem:[#allocation14 + $0x1c] sm:$0xf]
        %v1821 = vld [vmem:[#allocation14 + $0x20] sm:$0xf]
        %v1822 = vld [vmem:[#allocation14 + $0x24] sm:$0xf]
        %v1823 = vld [vmem:[#allocation14 + $0x28] sm:$0xf]
        %v1824 = vld [vmem:[#allocation14 + $0x2c] sm:$0xf]
        %v1825 = vld [vmem:[#allocation14 + $0x30] sm:$0xf]
        %v1826 = vld [vmem:[#allocation14 + $0x34] sm:$0xf]
        %v1827 = vld [vmem:[#allocation14 + $0x38] sm:$0xf]
        %v1828 = vld [vmem:[#allocation14 + $0x3c] sm:$0xf]
        %v1829 = vld [vmem:[%s10] sm:$0x1]
        %v1831 = vperm.slane %v1829, 0
        %v1849 = vunpack.c.l.b16 %v1813
        %v1850 = vunpack.c.l.b16 %v1814
        %v1851 = vunpack.c.l.b16 %v1815
        %v1852 = vunpack.c.l.b16 %v1816
        %v1853 = vunpack.c.l.b16 %v1817
        %v1854 = vunpack.c.l.b16 %v1818
        %v1855 = vunpack.c.l.b16 %v1819
        %v1856 = vunpack.c.l.b16 %v1820
        %v1857 = vunpack.c.l.b16 %v1821
        %v1858 = vunpack.c.l.b16 %v1822
        %v1859 = vunpack.c.l.b16 %v1823
        %v1860 = vunpack.c.l.b16 %v1824
        %v1861 = vunpack.c.l.b16 %v1825
        %v1862 = vunpack.c.l.b16 %v1826
        %v1863 = vunpack.c.l.b16 %v1827
        %v1864 = vunpack.c.l.b16 %v1828
        %v1865 = vpack.c.b16 %v1850, %v1849
        %v1866 = vpack.c.b16 %v1852, %v1851
        %v1867 = vpack.c.b16 %v1854, %v1853
        %v1868 = vpack.c.b16 %v1856, %v1855
        %v1869 = vpack.c.b16 %v1858, %v1857
        %v1870 = vpack.c.b16 %v1860, %v1859
        %v1871 = vpack.c.b16 %v1862, %v1861
        %v1872 = vpack.c.b16 %v1864, %v1863
        %1881 = vmatpush.bf16.msra.mxu0 %v1872
        %1882 = vmatpush.bf16.msra.mxu0 %v1871
        %1883 = vmatpush.bf16.msra.mxu0 %v1870
        %1884 = vmatpush.bf16.msra.mxu0 %v1869
        %1885 = vmatpush.bf16.msra.mxu0 %v1868
        %1886 = vmatpush.bf16.msra.mxu0 %v1867
        %1887 = vmatpush.bf16.msra.mxu0 %v1866
        %1888 = vmatpush.bf16.msra.mxu0 %v1865
        %1889 = vmatmul.bf16.gmra.mxu0 %v1812
        %v1890 = vpop.f32.mrf.mxu0
        %v1891 = vadd.f32 %v1831, %v1890
        %v1892 = vpop.f32.mrf.mxu0
        %1893 = vdwg.mxu0
        %1894 = vst [vmem:[%s515] sm:$0xff] %v1891
        %s1895 = sand.u32 %s276, 1
        %s1896 = scalar_lea.sflag [#allocation4], %s1895
        %s1897 = sand.u32 %s276, 1
        %s1898 = smul.addr %s1897, 8
        %s1899 = scalar_lea.vmem [#allocation16], %s1898
        // Predicated region
        $region97: #{tpu_custom_call.1} parent=63 // pred_check
          %p1900 = pneg %p286
        $region98: #{tpu_custom_call.1} parent=63 // pred_check_branch
          %1902 = sbr.rel (%p1900) target = $region100
        $region99: #{tpu_custom_call.1} parent=63 // pred_region
          %1904 = vsyncadd %s1896, 0
          %s1905 = smul.addr %s32, 8
          %s1906 = scalar_lea.hbm %s11, %s1905
          %s1908 = sshll.u32 %s1899, 4
          %s1909 = int_to_ptr.vmem [resolvable:$true] %s1908
          %s1910 = sshll.u32 %s1906, 4
          %s1911 = int_to_ptr.hbm [resolvable:$true] %s1910
          %1913 = dma.vmem_to_hbm [thread:$0]  %s1909, 128, %s1911, %s1896
        $region100: #{tpu_custom_call.1} parent=63 // pred_fallthru
          _
      $region64: #{tpu_custom_call.1} parent=5 // pred_fallthru
        _
      %p1914 = scmp.le.s32.totalorder 2, %s27
      // Predicated region
      $region101: #{tpu_custom_call.1} parent=5 // pred_check
        %p1915 = pneg %p1914
      $region102: #{tpu_custom_call.1} parent=5 // pred_check_branch
        %1917 = sbr.rel (%p1915) target = $region104
      $region103: #{tpu_custom_call.1} parent=5 // pred_region
        %s1918 = ssub.s32 %s27, 2
        // Predicated region
        $region105: #{tpu_custom_call.1} parent=103 // pred_check
          %p1919 = pneg %p292
        $region106: #{tpu_custom_call.1} parent=103 // pred_check_branch
          %1921 = sbr.rel (%p1919) target = $region108
        $region107: #{tpu_custom_call.1} parent=103 // pred_region
          %s1922 = sand.u32 %s277, 1
          %s1923 = scalar_lea.sflag [#allocation4], %s1922
          %s1924 = sand.u32 %s277, 1
          %s1925 = smul.addr %s1924, 8
          %s1926 = scalar_lea.vmem [#allocation16], %s1925
          %1928 = dma.done %s1923, 128
        $region108: #{tpu_custom_call.1} parent=103 // pred_fallthru
          _
      $region104: #{tpu_custom_call.1} parent=5 // pred_fallthru
        _
    $region6: #{tpu_custom_call.1} parent=1 // loop_footer
      %s31 = sadd.s32 1, %s27
    $region7: #{tpu_custom_call.1} parent=1 // loop_footer_branch
      %26 = sbr.rel target = $region3
    $region8: #{tpu_custom_call.1} parent=1 // loop_exit
      _
    %1929 = vsyncpa [#allocation3], 1
    %s1930 = scalar_lea.sflag [#allocation3], 1
    %1931 = vsyncpa %s1930, 1
    %1932 = vsyncpa [#allocation6], 1
    %1933 = vsyncpa [#allocation9], 1
    %1934 = vsyncpa [#allocation12], 1
    %1935 = vsyncpa [#allocation15], 1
    %1936 = vsyncpa [#allocation4], 1
    %s1937 = scalar_lea.sflag [#allocation4], 1
    %1938 = vsyncpa %s1937, 1

// kernel: tpu_custom_call.1
$region0: #{tpu_custom_call.1}
  #allocation0 [shape = 'u32[]', space=smem, size = 0x4, offset = 0x4, fixed_abs, tag = 'smem constant byte address 0x4 - core index']
  #allocation1 [shape = 'u32[72,128]{1,0:T(1,128)}', space=vmem, size = 0x9000, scoped, tag = 'internal scratch']
  %s0 = inlined_call_operand.hbm [shape: bf16[16,128], index: 0, kind: input, shape index: {}]
  %s1 = inlined_call_operand.hbm [shape: bf16[128,256], index: 1, kind: input, shape index: {}]
  %s2 = inlined_call_operand.hbm [shape: f32[1,256], index: 2, kind: input, shape index: {}]
  %s3 = inlined_call_operand.hbm [shape: bf16[256,512], index: 3, kind: input, shape index: {}]
  %s4 = inlined_call_operand.hbm [shape: f32[1,512], index: 4, kind: input, shape index: {}]
  %s5 = inlined_call_operand.hbm [shape: bf16[512,256], index: 5, kind: input, shape index: {}]
  %s6 = inlined_call_operand.vmem [shape: f32[1,256], index: 6, kind: input, shape index: {}]
  %s7 = inlined_call_operand.hbm [shape: bf16[256,128], index: 7, kind: input, shape index: {}]
  %s8 = inlined_call_operand.vmem [shape: f32[1,128], index: 8, kind: input, shape index: {}]
  %s9 = inlined_call_operand.hbm [shape: bf16[128,128], index: 9, kind: input, shape index: {}]
  %s10 = inlined_call_operand.vmem [shape: f32[1,128], index: 10, kind: input, shape index: {}]
  %s11 = inlined_call_operand.hbm [shape: f32[16,128], index: 11, kind: output, shape index: {}]
  %s12 = sld [smem:[#allocation0]]
  $region109: #{tpu_custom_call.1} parent=0
    _
  %s14 = ssub.s32 1, %s12
  %s15 = scalar_select 0, %s14, %s12
  $region1: #{tpu_custom_call.1} parent=0
    #allocation2 [shape = 'u8[4096]{0}', space=vmem, size = 0x1000, scoped, tag = 'input window, operand 0']
    #allocation3 [shape = 's32[2]{0}', space=sflag, size = 0x8, scoped, tag = 'scoped memory for tpu_custom_call.1']
    #allocation4 [shape = 's32[2]{0}', space=sflag, size = 0x8, scoped, tag = 'scoped memory for tpu_custom_call.1']
    #allocation5 [shape = 'u8[65536]{0}', space=vmem, size = 0x10000, scoped, tag = 'input window, operand 1, single buffered']
    #allocation6 [shape = 's32[1]{0}', space=sflag, size = 0x4, scoped, tag = 'scoped memory for tpu_custom_call.1']
    #allocation7 [shape = 'u8[1024]{0}', space=vmem, size = 0x400, scoped, tag = 'input window, operand 2, single buffered']
    #allocation8 [shape = 'u8[262144]{0}', space=vmem, size = 0x40000, scoped, tag = 'input window, operand 3, single buffered']
    #allocation9 [shape = 's32[1]{0}', space=sflag, size = 0x4, scoped, tag = 'scoped memory for tpu_custom_call.1']
    #allocation10 [shape = 'u8[2048]{0}', space=vmem, size = 0x800, scoped, tag = 'input window, operand 4, single buffered']
    #allocation11 [shape = 'u8[262144]{0}', space=vmem, size = 0x40000, scoped, tag = 'input window, operand 5, single buffered']
    #allocation12 [shape = 's32[1]{0}', space=sflag, size = 0x4, scoped, tag = 'scoped memory for tpu_custom_call.1']
    #allocation13 [shape = 'u8[65536]{0}', space=vmem, size = 0x10000, scoped, tag = 'input window, operand 7, single buffered']
    #allocation14 [shape = 'u8[32768]{0}', space=vmem, size = 0x8000, scoped, tag = 'input window, operand 9, single buffered']
    #allocation15 [shape = 's32[1]{0}', space=sflag, size = 0x4, scoped, tag = 'scoped memory for tpu_custom_call.1']
    #allocation16 [shape = 'u8[8192]{0}', space=vmem, size = 0x2000, scoped, tag = 'output window, operand 0']
    %16 = vsyncpa [#allocation3], 0
    %s17 = scalar_lea.sflag [#allocation3], 1
    %18 = vsyncpa %s17, 0
    %19 = vsyncpa [#allocation6], 0
    %20 = vsyncpa [#allocation9], 0
    %21 = vsyncpa [#allocation12], 0
    %22 = vsyncpa [#allocation15], 0
    %23 = vsyncpa [#allocation4], 0
    %s24 = scalar_lea.sflag [#allocation4], 1
    %25 = vsyncpa %s24, 0
    loop: start=0, step=1, limit=4
    $region2: #{tpu_custom_call.1} parent=1 // loop_pre_header
      _
    $region3: #{tpu_custom_call.1} parent=1 // loop_header
      %s27 = sphi 0, %s31
      %p28 = scmp.ge.s32.totalorder %s27, 4
      %s37 = sphi 0, %s39
      %s40 = sphi 0, %s37
      %s41 = sphi 0, %s40
      %s57 = sphi 0, %s41
      %s61 = sphi 0, %s61
      %s63 = sphi 0, %s61
      %s64 = sphi 0, %s63
      %s78 = sphi 0, %s64
      %s82 = sphi 0, %s82
      %s84 = sphi 0, %s82
      %s85 = sphi 0, %s84
      %s99 = sphi 0, %s85
      %s103 = sphi 0, %s103
      %s105 = sphi 0, %s103
      %s106 = sphi 0, %s105
      %s120 = sphi 0, %s106
      %s124 = sphi 0, %s124
      %s126 = sphi 0, %s124
      %s127 = sphi 0, %s126
      %s141 = sphi 0, %s127
      %s145 = sphi 0, %s145
      %s147 = sphi 0, %s145
      %s148 = sphi 0, %s147
      %s162 = sphi 0, %s148
      %s166 = sphi 0, %s166
      %s168 = sphi 0, %s166
      %s169 = sphi 0, %s168
      %s183 = sphi 0, %s169
      %s187 = sphi 0, %s187
      %s189 = sphi 0, %s187
      %s190 = sphi 0, %s189
      %s204 = sphi 0, %s190
      %s208 = sphi 0, %s208
      %s210 = sphi 0, %s208
      %s211 = sphi 0, %s210
      %s225 = sphi 0, %s211
      %s229 = sphi 0, %s229
      %s231 = sphi 0, %s229
      %s232 = sphi 0, %s231
      %s246 = sphi 0, %s232
      %s250 = sphi 0, %s250
      %s252 = sphi 0, %s250
      %s253 = sphi 0, %s252
      %s267 = sphi 0, %s253
      %s273 = sphi 0, %s275
      %s276 = sphi 0, %s273
      %s277 = sphi 0, %s276
      %s293 = sphi 0, %s277
    $region4: #{tpu_custom_call.1} parent=1 // loop_header_branch
      %30 = sbr.rel (%p28) target = $region8
    $region5: #{tpu_custom_call.1} parent=1 // loop_body
      %s32 = ssub.s32 %s27, 1
      %s33 = ssub.s32 %s27, 2
      %s34 = sadd.s32 %s27, 1
      %s35 = ssub.s32 %s27, %s34
      %p36 = scmp.eq.s32.totalorder %s35, 0
      %s38 = sadd.s32 %s37, 1
      %s39 = scalar_select %p36, %s37, %s38
      %p42 = pneg %p36
      %p43 = scmp.eq.s32.totalorder %s27, 1
      %p44 = por %p42, %p43
      %p45 = scmp.ne.s32.totalorder %s37, %s40
      %p46 = scmp.eq.s32.totalorder %s27, 0
      %p47 = por %p45, %p46
      %p48 = scmp.ne.s32.totalorder %s37, %s40
      %p49 = scmp.eq.s32.totalorder %s32, 1
      %p50 = por %p48, %p49
      %p51 = scmp.ne.s32.totalorder %s40, %s41
      %p52 = scmp.eq.s32.totalorder %s32, 0
      %p53 = por %p51, %p52
      %p54 = scmp.ne.s32.totalorder %s40, %s41
      %p55 = scmp.eq.s32.totalorder %s33, 1
      %p56 = por %p54, %p55
      %p58 = scmp.ne.s32.totalorder %s41, %s57
      %p59 = scmp.eq.s32.totalorder %s33, 0
      %p60 = por %p58, %p59
      %s62 = sadd.s32 %s61, 1
      %p65 = scmp.eq.s32.totalorder %s27, 1
      %p66 = scmp.ne.s32.totalorder %s61, %s63
      %p67 = scmp.eq.s32.totalorder %s27, 0
      %p68 = por %p66, %p67
      %p69 = scmp.ne.s32.totalorder %s61, %s63
      %p70 = scmp.eq.s32.totalorder %s32, 1
      %p71 = por %p69, %p70
      %p72 = scmp.ne.s32.totalorder %s63, %s64
      %p73 = scmp.eq.s32.totalorder %s32, 0
      %p74 = por %p72, %p73
      %p75 = scmp.ne.s32.totalorder %s63, %s64
      %p76 = scmp.eq.s32.totalorder %s33, 1
      %p77 = por %p75, %p76
      %p79 = scmp.ne.s32.totalorder %s64, %s78
      %p80 = scmp.eq.s32.totalorder %s33, 0
      %p81 = por %p79, %p80
      %s83 = sadd.s32 %s82, 1
      %p86 = scmp.eq.s32.totalorder %s27, 1
      %p87 = scmp.ne.s32.totalorder %s82, %s84
      %p88 = scmp.eq.s32.totalorder %s27, 0
      %p89 = por %p87, %p88
      %p90 = scmp.ne.s32.totalorder %s82, %s84
      %p91 = scmp.eq.s32.totalorder %s32, 1
      %p92 = por %p90, %p91
      %p93 = scmp.ne.s32.totalorder %s84, %s85
      %p94 = scmp.eq.s32.totalorder %s32, 0
      %p95 = por %p93, %p94
      %p96 = scmp.ne.s32.totalorder %s84, %s85
      %p97 = scmp.eq.s32.totalorder %s33, 1
      %p98 = por %p96, %p97
      %p100 = scmp.ne.s32.totalorder %s85, %s99
      %p101 = scmp.eq.s32.totalorder %s33, 0
      %p102 = por %p100, %p101
      %s104 = sadd.s32 %s103, 1
      %p107 = scmp.eq.s32.totalorder %s27, 1
      %p108 = scmp.ne.s32.totalorder %s103, %s105
      %p109 = scmp.eq.s32.totalorder %s27, 0
      %p110 = por %p108, %p109
      %p111 = scmp.ne.s32.totalorder %s103, %s105
      %p112 = scmp.eq.s32.totalorder %s32, 1
      %p113 = por %p111, %p112
      %p114 = scmp.ne.s32.totalorder %s105, %s106
      %p115 = scmp.eq.s32.totalorder %s32, 0
      %p116 = por %p114, %p115
      %p117 = scmp.ne.s32.totalorder %s105, %s106
      %p118 = scmp.eq.s32.totalorder %s33, 1
      %p119 = por %p117, %p118
      %p121 = scmp.ne.s32.totalorder %s106, %s120
      %p122 = scmp.eq.s32.totalorder %s33, 0
      %p123 = por %p121, %p122
      %s125 = sadd.s32 %s124, 1
      %p128 = scmp.eq.s32.totalorder %s27, 1
      %p129 = scmp.ne.s32.totalorder %s124, %s126
      %p130 = scmp.eq.s32.totalorder %s27, 0
      %p131 = por %p129, %p130
      %p132 = scmp.ne.s32.totalorder %s124, %s126
      %p133 = scmp.eq.s32.totalorder %s32, 1
      %p134 = por %p132, %p133
      %p135 = scmp.ne.s32.totalorder %s126, %s127
      %p136 = scmp.eq.s32.totalorder %s32, 0
      %p137 = por %p135, %p136
      %p138 = scmp.ne.s32.totalorder %s126, %s127
      %p139 = scmp.eq.s32.totalorder %s33, 1
      %p140 = por %p138, %p139
      %p142 = scmp.ne.s32.totalorder %s127, %s141
      %p143 = scmp.eq.s32.totalorder %s33, 0
      %p144 = por %p142, %p143
      %s146 = sadd.s32 %s145, 1
      %p149 = scmp.eq.s32.totalorder %s27, 1
      %p150 = scmp.ne.s32.totalorder %s145, %s147
      %p151 = scmp.eq.s32.totalorder %s27, 0
      %p152 = por %p150, %p151
      %p153 = scmp.ne.s32.totalorder %s145, %s147
      %p154 = scmp.eq.s32.totalorder %s32, 1
      %p155 = por %p153, %p154
      %p156 = scmp.ne.s32.totalorder %s147, %s148
      %p157 = scmp.eq.s32.totalorder %s32, 0
      %p158 = por %p156, %p157
      %p159 = scmp.ne.s32.totalorder %s147, %s148
      %p160 = scmp.eq.s32.totalorder %s33, 1
      %p161 = por %p159, %p160
      %p163 = scmp.ne.s32.totalorder %s148, %s162
      %p164 = scmp.eq.s32.totalorder %s33, 0
      %p165 = por %p163, %p164
      %s167 = sadd.s32 %s166, 1
      %p170 = scmp.eq.s32.totalorder %s27, 1
      %p171 = scmp.ne.s32.totalorder %s166, %s168
      %p172 = scmp.eq.s32.totalorder %s27, 0
      %p173 = por %p171, %p172
      %p174 = scmp.ne.s32.totalorder %s166, %s168
      %p175 = scmp.eq.s32.totalorder %s32, 1
      %p176 = por %p174, %p175
      %p177 = scmp.ne.s32.totalorder %s168, %s169
      %p178 = scmp.eq.s32.totalorder %s32, 0
      %p179 = por %p177, %p178
      %p180 = scmp.ne.s32.totalorder %s168, %s169
      %p181 = scmp.eq.s32.totalorder %s33, 1
      %p182 = por %p180, %p181
      %p184 = scmp.ne.s32.totalorder %s169, %s183
      %p185 = scmp.eq.s32.totalorder %s33, 0
      %p186 = por %p184, %p185
      %s188 = sadd.s32 %s187, 1
      %p191 = scmp.eq.s32.totalorder %s27, 1
      %p192 = scmp.ne.s32.totalorder %s187, %s189
      %p193 = scmp.eq.s32.totalorder %s27, 0
      %p194 = por %p192, %p193
      %p195 = scmp.ne.s32.totalorder %s187, %s189
      %p196 = scmp.eq.s32.totalorder %s32, 1
      %p197 = por %p195, %p196
      %p198 = scmp.ne.s32.totalorder %s189, %s190
      %p199 = scmp.eq.s32.totalorder %s32, 0
      %p200 = por %p198, %p199
      %p201 = scmp.ne.s32.totalorder %s189, %s190
      %p202 = scmp.eq.s32.totalorder %s33, 1
      %p203 = por %p201, %p202
      %p205 = scmp.ne.s32.totalorder %s190, %s204
      %p206 = scmp.eq.s32.totalorder %s33, 0
      %p207 = por %p205, %p206
      %s209 = sadd.s32 %s208, 1
      %p212 = scmp.eq.s32.totalorder %s27, 1
      %p213 = scmp.ne.s32.totalorder %s208, %s210
      %p214 = scmp.eq.s32.totalorder %s27, 0
      %p215 = por %p213, %p214
      %p216 = scmp.ne.s32.totalorder %s208, %s210
      %p217 = scmp.eq.s32.totalorder %s32, 1
      %p218 = por %p216, %p217
      %p219 = scmp.ne.s32.totalorder %s210, %s211
      %p220 = scmp.eq.s32.totalorder %s32, 0
      %p221 = por %p219, %p220
      %p222 = scmp.ne.s32.totalorder %s210, %s211
      %p223 = scmp.eq.s32.totalorder %s33, 1
      %p224 = por %p222, %p223
      %p226 = scmp.ne.s32.totalorder %s211, %s225
      %p227 = scmp.eq.s32.totalorder %s33, 0
      %p228 = por %p226, %p227
      %s230 = sadd.s32 %s229, 1
      %p233 = scmp.eq.s32.totalorder %s27, 1
      %p234 = scmp.ne.s32.totalorder %s229, %s231
      %p235 = scmp.eq.s32.totalorder %s27, 0
      %p236 = por %p234, %p235
      %p237 = scmp.ne.s32.totalorder %s229, %s231
      %p238 = scmp.eq.s32.totalorder %s32, 1
      %p239 = por %p237, %p238
      %p240 = scmp.ne.s32.totalorder %s231, %s232
      %p241 = scmp.eq.s32.totalorder %s32, 0
      %p242 = por %p240, %p241
      %p243 = scmp.ne.s32.totalorder %s231, %s232
      %p244 = scmp.eq.s32.totalorder %s33, 1
      %p245 = por %p243, %p244
      %p247 = scmp.ne.s32.totalorder %s232, %s246
      %p248 = scmp.eq.s32.totalorder %s33, 0
      %p249 = por %p247, %p248
      %s251 = sadd.s32 %s250, 1
      %p254 = scmp.eq.s32.totalorder %s27, 1
      %p255 = scmp.ne.s32.totalorder %s250, %s252
      %p256 = scmp.eq.s32.totalorder %s27, 0
      %p257 = por %p255, %p256
      %p258 = scmp.ne.s32.totalorder %s250, %s252
      %p259 = scmp.eq.s32.totalorder %s32, 1
      %p260 = por %p258, %p259
      %p261 = scmp.ne.s32.totalorder %s252, %s253
      %p262 = scmp.eq.s32.totalorder %s32, 0
      %p263 = por %p261, %p262
      %p264 = scmp.ne.s32.totalorder %s252, %s253
      %p265 = scmp.eq.s32.totalorder %s33, 1
      %p266 = por %p264, %p265
      %p268 = scmp.ne.s32.totalorder %s253, %s267
      %p269 = scmp.eq.s32.totalorder %s33, 0
      %p270 = por %p268, %p269
      %s271 = ssub.s32 %s27, %s34
      %p272 = scmp.eq.s32.totalorder %s271, 0
      %s274 = sadd.s32 %s273, 1
      %s275 = scalar_select %p272, %s273, %s274
      %p278 = pneg %p272
      %p279 = scmp.eq.s32.totalorder %s27, 1
      %p280 = por %p278, %p279
      %p281 = scmp.ne.s32.totalorder %s273, %s276
      %p282 = scmp.eq.s32.totalorder %s27, 0
      %p283 = por %p281, %p282
      %p284 = scmp.ne.s32.totalorder %s273, %s276
      %p285 = scmp.eq.s32.totalorder %s32, 1
      %p286 = por %p284, %p285
      %p287 = scmp.ne.s32.totalorder %s276, %s277
      %p288 = scmp.eq.s32.totalorder %s32, 0
      %p289 = por %p287, %p288
      %p290 = scmp.ne.s32.totalorder %s276, %s277
      %p291 = scmp.eq.s32.totalorder %s33, 1
      %p292 = por %p290, %p291
      %p294 = scmp.ne.s32.totalorder %s277, %s293
      %p295 = scmp.eq.s32.totalorder %s33, 0
      %p296 = por %p294, %p295
      %p297 = scmp.le.s32.totalorder 1, %s27
      %p298 = scmp.lt.s32.totalorder %s27, 3
      %p299 = pnand %p297, %p298
      %p300 = pneg %p299
      // Predicated region
      $region9: #{tpu_custom_call.1} parent=5 // pred_check
        _
      $region10: #{tpu_custom_call.1} parent=5 // pred_check_branch
        %302 = sbr.rel (%p299) target = $region12
      $region11: #{tpu_custom_call.1} parent=5 // pred_region
        %s303 = ssub.s32 %s27, 1
        // Predicated region
        $region13: #{tpu_custom_call.1} parent=11 // pred_check
          %p304 = pneg %p74
        $region14: #{tpu_custom_call.1} parent=11 // pred_check_branch
          %306 = sbr.rel (%p304) target = $region16
        $region15: #{tpu_custom_call.1} parent=11 // pred_region
          %308 = vsyncadd [#allocation6], 0
          %s309 = sshll.u32 %s1, 4
          %s310 = int_to_ptr.hbm [resolvable:$true] %s309
          %s311 = sshll.u32 [#allocation5], 4
          %s312 = int_to_ptr.vmem [resolvable:$true] %s311
          %317 = dma.hbm_to_vmem [thread:$0]  %s310, 2048, %s312, [#allocation6], 128, 128, 8
        $region16: #{tpu_custom_call.1} parent=11 // pred_fallthru
          _
        // Predicated region
        $region17: #{tpu_custom_call.1} parent=11 // pred_check
          %p318 = pneg %p95
        $region18: #{tpu_custom_call.1} parent=11 // pred_check_branch
          %320 = sbr.rel (%p318) target = $region20
        $region19: #{tpu_custom_call.1} parent=11 // pred_region
          %322 = vsyncadd [#allocation6], 0
          %s324 = sshll.u32 %s2, 4
          %s325 = int_to_ptr.hbm [resolvable:$true] %s324
          %s326 = sshll.u32 [#allocation7], 4
          %s327 = int_to_ptr.vmem [resolvable:$true] %s326
          %329 = dma.hbm_to_vmem [thread:$0]  %s325, 32, %s327, [#allocation6]
        $region20: #{tpu_custom_call.1} parent=11 // pred_fallthru
          _
        // Predicated region
        $region21: #{tpu_custom_call.1} parent=11 // pred_check
          %p330 = pneg %p116
        $region22: #{tpu_custom_call.1} parent=11 // pred_check_branch
          %332 = sbr.rel (%p330) target = $region24
        $region23: #{tpu_custom_call.1} parent=11 // pred_region
          %334 = vsyncadd [#allocation9], 0
          %s335 = sshll.u32 %s3, 4
          %s336 = int_to_ptr.hbm [resolvable:$true] %s335
          %s337 = sshll.u32 [#allocation8], 4
          %s338 = int_to_ptr.vmem [resolvable:$true] %s337
          %343 = dma.hbm_to_vmem [thread:$0]  %s336, 8192, %s338, [#allocation9], 256, 256, 16
        $region24: #{tpu_custom_call.1} parent=11 // pred_fallthru
          _
        // Predicated region
        $region25: #{tpu_custom_call.1} parent=11 // pred_check
          %p344 = pneg %p137
        $region26: #{tpu_custom_call.1} parent=11 // pred_check_branch
          %346 = sbr.rel (%p344) target = $region28
        $region27: #{tpu_custom_call.1} parent=11 // pred_region
          %348 = vsyncadd [#allocation9], 0
          %s350 = sshll.u32 %s4, 4
          %s351 = int_to_ptr.hbm [resolvable:$true] %s350
          %s352 = sshll.u32 [#allocation10], 4
          %s353 = int_to_ptr.vmem [resolvable:$true] %s352
          %355 = dma.hbm_to_vmem [thread:$0]  %s351, 64, %s353, [#allocation9]
        $region28: #{tpu_custom_call.1} parent=11 // pred_fallthru
          _
        // Predicated region
        $region29: #{tpu_custom_call.1} parent=11 // pred_check
          %p356 = pneg %p158
        $region30: #{tpu_custom_call.1} parent=11 // pred_check_branch
          %358 = sbr.rel (%p356) target = $region32
        $region31: #{tpu_custom_call.1} parent=11 // pred_region
          %360 = vsyncadd [#allocation12], 0
          %s361 = sshll.u32 %s5, 4
          %s362 = int_to_ptr.hbm [resolvable:$true] %s361
          %s363 = sshll.u32 [#allocation11], 4
          %s364 = int_to_ptr.vmem [resolvable:$true] %s363
          %369 = dma.hbm_to_vmem [thread:$0]  %s362, 8192, %s364, [#allocation12], 128, 128, 8
        $region32: #{tpu_custom_call.1} parent=11 // pred_fallthru
          _
        // Predicated region
        $region33: #{tpu_custom_call.1} parent=11 // pred_check
          %p370 = pneg %p179
        $region34: #{tpu_custom_call.1} parent=11 // pred_check_branch
          %372 = sbr.rel (%p370) target = $region36
        $region35: #{tpu_custom_call.1} parent=11 // pred_region
          _
        $region36: #{tpu_custom_call.1} parent=11 // pred_fallthru
          _
        // Predicated region
        $region37: #{tpu_custom_call.1} parent=11 // pred_check
          %p373 = pneg %p200
        $region38: #{tpu_custom_call.1} parent=11 // pred_check_branch
          %375 = sbr.rel (%p373) target = $region40
        $region39: #{tpu_custom_call.1} parent=11 // pred_region
          %377 = vsyncadd [#allocation12], 0
          %s378 = sshll.u32 %s7, 4
          %s379 = int_to_ptr.hbm [resolvable:$true] %s378
          %s380 = sshll.u32 [#allocation13], 4
          %s381 = int_to_ptr.vmem [resolvable:$true] %s380
          %386 = dma.hbm_to_vmem [thread:$0]  %s379, 2048, %s381, [#allocation12], 64, 64, 4
        $region40: #{tpu_custom_call.1} parent=11 // pred_fallthru
          _
        // Predicated region
        $region41: #{tpu_custom_call.1} parent=11 // pred_check
          %p387 = pneg %p221
        $region42: #{tpu_custom_call.1} parent=11 // pred_check_branch
          %389 = sbr.rel (%p387) target = $region44
        $region43: #{tpu_custom_call.1} parent=11 // pred_region
          _
        $region44: #{tpu_custom_call.1} parent=11 // pred_fallthru
          _
        // Predicated region
        $region45: #{tpu_custom_call.1} parent=11 // pred_check
          %p390 = pneg %p242
        $region46: #{tpu_custom_call.1} parent=11 // pred_check_branch
          %392 = sbr.rel (%p390) target = $region48
        $region47: #{tpu_custom_call.1} parent=11 // pred_region
          %394 = vsyncadd [#allocation15], 0
          %s395 = sshll.u32 %s9, 4
          %s396 = int_to_ptr.hbm [resolvable:$true] %s395
          %s397 = sshll.u32 [#allocation14], 4
          %s398 = int_to_ptr.vmem [resolvable:$true] %s397
          %403 = dma.hbm_to_vmem [thread:$0]  %s396, 1024, %s398, [#allocation15], 64, 64, 4
        $region48: #{tpu_custom_call.1} parent=11 // pred_fallthru
          _
        // Predicated region
        $region49: #{tpu_custom_call.1} parent=11 // pred_check
          %p404 = pneg %p263
        $region50: #{tpu_custom_call.1} parent=11 // pred_check_branch
          %406 = sbr.rel (%p404) target = $region52
        $region51: #{tpu_custom_call.1} parent=11 // pred_region
          _
        $region52: #{tpu_custom_call.1} parent=11 // pred_fallthru
          _
      $region12: #{tpu_custom_call.1} parent=5 // pred_fallthru
        _
      %p407 = scmp.lt.s32.totalorder %s27, 2
      // Predicated region
      $region53: #{tpu_custom_call.1} parent=5 // pred_check
        %p408 = pneg %p407
      $region54: #{tpu_custom_call.1} parent=5 // pred_check_branch
        %410 = sbr.rel (%p408) target = $region56
      $region55: #{tpu_custom_call.1} parent=5 // pred_region
        // Predicated region
        $region57: #{tpu_custom_call.1} parent=55 // pred_check
          %p411 = pneg %p47
        $region58: #{tpu_custom_call.1} parent=55 // pred_check_branch
          %413 = sbr.rel (%p411) target = $region60
        $region59: #{tpu_custom_call.1} parent=55 // pred_region
          %s414 = sand.u32 %s37, 1
          %s415 = scalar_lea.sflag [#allocation3], %s414
          %s416 = sand.u32 %s37, 1
          %s417 = smul.addr %s416, 4
          %s418 = scalar_lea.vmem [#allocation2], %s417
          %420 = vsyncadd %s415, 0
          %s421 = smul.addr %s27, 4
          %s422 = scalar_lea.hbm %s0, %s421
          %s424 = sshll.u32 %s422, 4
          %s425 = int_to_ptr.hbm [resolvable:$true] %s424
          %s426 = sshll.u32 %s418, 4
          %s427 = int_to_ptr.vmem [resolvable:$true] %s426
          %429 = dma.hbm_to_vmem [thread:$0]  %s425, 64, %s427, %s415
        $region60: #{tpu_custom_call.1} parent=55 // pred_fallthru
          _
      $region56: #{tpu_custom_call.1} parent=5 // pred_fallthru
        _
      %p430 = scmp.le.s32.totalorder 1, %s27
      %p431 = scmp.lt.s32.totalorder %s27, 3
      %p432 = pnand %p430, %p431
      %p433 = pneg %p432
      // Predicated region
      $region61: #{tpu_custom_call.1} parent=5 // pred_check
        _
      $region62: #{tpu_custom_call.1} parent=5 // pred_check_branch
        %435 = sbr.rel (%p432) target = $region64
      $region63: #{tpu_custom_call.1} parent=5 // pred_region
        %s436 = ssub.s32 %s27, 1
        %s437 = sand.u32 %s40, 1
        %s438 = scalar_lea.sflag [#allocation3], %s437
        %s439 = sand.u32 %s40, 1
        %s440 = smul.addr %s439, 4
        %s441 = scalar_lea.vmem [#allocation2], %s440
        // Predicated region
        $region65: #{tpu_custom_call.1} parent=63 // pred_check
          %p442 = pneg %p53
        $region66: #{tpu_custom_call.1} parent=63 // pred_check_branch
          %444 = sbr.rel (%p442) target = $region68
        $region67: #{tpu_custom_call.1} parent=63 // pred_region
          %446 = dma.done %s438, 64
        $region68: #{tpu_custom_call.1} parent=63 // pred_fallthru
          _
        // Predicated region
        $region69: #{tpu_custom_call.1} parent=63 // pred_check
          %p447 = pneg %p74
        $region70: #{tpu_custom_call.1} parent=63 // pred_check_branch
          %449 = sbr.rel (%p447) target = $region72
        $region71: #{tpu_custom_call.1} parent=63 // pred_region
          %451 = dma.done [#allocation6], 2048
        $region72: #{tpu_custom_call.1} parent=63 // pred_fallthru
          _
        // Predicated region
        $region73: #{tpu_custom_call.1} parent=63 // pred_check
          %p452 = pneg %p95
        $region74: #{tpu_custom_call.1} parent=63 // pred_check_branch
          %454 = sbr.rel (%p452) target = $region76
        $region75: #{tpu_custom_call.1} parent=63 // pred_region
          %456 = dma.done [#allocation6], 32
        $region76: #{tpu_custom_call.1} parent=63 // pred_fallthru
          _
        // Predicated region
        $region77: #{tpu_custom_call.1} parent=63 // pred_check
          %p457 = pneg %p116
        $region78: #{tpu_custom_call.1} parent=63 // pred_check_branch
          %459 = sbr.rel (%p457) target = $region80
        $region79: #{tpu_custom_call.1} parent=63 // pred_region
          %461 = dma.done [#allocation9], 8192
        $region80: #{tpu_custom_call.1} parent=63 // pred_fallthru
          _
        // Predicated region
        $region81: #{tpu_custom_call.1} parent=63 // pred_check
          %p462 = pneg %p137
        $region82: #{tpu_custom_call.1} parent=63 // pred_check_branch
          %464 = sbr.rel (%p462) target = $region84
        $region83: #{tpu_custom_call.1} parent=63 // pred_region
          %466 = dma.done [#allocation9], 64
        $region84: #{tpu_custom_call.1} parent=63 // pred_fallthru
          _
        // Predicated region
        $region85: #{tpu_custom_call.1} parent=63 // pred_check
          %p467 = pneg %p158
        $region86: #{tpu_custom_call.1} parent=63 // pred_check_branch
          %469 = sbr.rel (%p467) target = $region88
        $region87: #{tpu_custom_call.1} parent=63 // pred_region
          %471 = dma.done [#allocation12], 8192
        $region88: #{tpu_custom_call.1} parent=63 // pred_fallthru
          _
        // Predicated region
        $region89: #{tpu_custom_call.1} parent=63 // pred_check
          %p472 = pneg %p200
        $region90: #{tpu_custom_call.1} parent=63 // pred_check_branch
          %474 = sbr.rel (%p472) target = $region92
        $region91: #{tpu_custom_call.1} parent=63 // pred_region
          %476 = dma.done [#allocation12], 2048
        $region92: #{tpu_custom_call.1} parent=63 // pred_fallthru
          _
        // Predicated region
        $region93: #{tpu_custom_call.1} parent=63 // pred_check
          %p477 = pneg %p242
        $region94: #{tpu_custom_call.1} parent=63 // pred_check_branch
          %479 = sbr.rel (%p477) target = $region96
        $region95: #{tpu_custom_call.1} parent=63 // pred_region
          %481 = dma.done [#allocation15], 1024
        $region96: #{tpu_custom_call.1} parent=63 // pred_fallthru
          _
        %s482 = sand.u32 %s40, 1
        %s483 = scalar_lea.sflag [#allocation3], %s482
        %s484 = sand.u32 %s40, 1
        %s485 = smul.addr %s484, 4
        %s486 = scalar_lea.vmem [#allocation2], %s485
        %p487 = pneg %p53
        %p488 = pneg %p50
        %p489 = pneg %p74
        %p490 = pneg %p71
        %p491 = pneg %p95
        %p492 = pneg %p92
        %p493 = pneg %p116
        %p494 = pneg %p113
        %p495 = pneg %p137
        %p496 = pneg %p134
        %p497 = pneg %p158
        %p498 = pneg %p155
        %p499 = pneg %p179
        %p500 = pneg %p176
        %p501 = pneg %p200
        %p502 = pneg %p197
        %p503 = pneg %p221
        %p504 = pneg %p218
        %p505 = pneg %p242
        %p506 = pneg %p239
        %p507 = pneg %p263
        %p508 = pneg %p260
        %p509 = pneg %p289
        %p510 = pneg %p286
        %s511 = sand.u32 %s276, 1
        %s512 = scalar_lea.sflag [#allocation4], %s511
        %s513 = sand.u32 %s276, 1
        %s514 = smul.addr %s513, 8
        %s515 = scalar_lea.vmem [#allocation16], %s514
        %v516 = vld [vmem:[%s441] sm:$0xf]
        %v517 = vld [vmem:[#allocation5] sm:$0xff]
        %v518 = vld [vmem:[#allocation5 + $0x8] sm:$0xff]
        %v519 = vld [vmem:[#allocation5 + $0x10] sm:$0xff]
        %v520 = vld [vmem:[#allocation5 + $0x18] sm:$0xff]
        %v521 = vld [vmem:[#allocation5 + $0x20] sm:$0xff]
        %v522 = vld [vmem:[#allocation5 + $0x28] sm:$0xff]
        %v523 = vld [vmem:[#allocation5 + $0x30] sm:$0xff]
        %v524 = vld [vmem:[#allocation5 + $0x38] sm:$0xff]
        %v525 = vld [vmem:[#allocation5 + $0x40] sm:$0xff]
        %v526 = vld [vmem:[#allocation5 + $0x48] sm:$0xff]
        %v527 = vld [vmem:[#allocation5 + $0x50] sm:$0xff]
        %v528 = vld [vmem:[#allocation5 + $0x58] sm:$0xff]
        %v529 = vld [vmem:[#allocation5 + $0x60] sm:$0xff]
        %v530 = vld [vmem:[#allocation5 + $0x68] sm:$0xff]
        %v531 = vld [vmem:[#allocation5 + $0x70] sm:$0xff]
        %v532 = vld [vmem:[#allocation5 + $0x78] sm:$0xff]
        %v533 = vld [vmem:[#allocation7] sm:$0x3]
        %v535 = vperm.slane %v533, 0
        %v536 = vperm.slane %v533, 1
        %v555 = vunpack.c.l.b16 %v517
        %v556 = vunpack.c.h.b16 %v517
        %v557 = vunpack.c.l.b16 %v518
        %v558 = vunpack.c.h.b16 %v518
        %v559 = vunpack.c.l.b16 %v519
        %v560 = vunpack.c.h.b16 %v519
        %v561 = vunpack.c.l.b16 %v520
        %v562 = vunpack.c.h.b16 %v520
        %v563 = vunpack.c.l.b16 %v521
        %v564 = vunpack.c.h.b16 %v521
        %v565 = vunpack.c.l.b16 %v522
        %v566 = vunpack.c.h.b16 %v522
        %v567 = vunpack.c.l.b16 %v523
        %v568 = vunpack.c.h.b16 %v523
        %v569 = vunpack.c.l.b16 %v524
        %v570 = vunpack.c.h.b16 %v524
        %v571 = vunpack.c.l.b16 %v525
        %v572 = vunpack.c.h.b16 %v525
        %v573 = vunpack.c.l.b16 %v526
        %v574 = vunpack.c.h.b16 %v526
        %v575 = vunpack.c.l.b16 %v527
        %v576 = vunpack.c.h.b16 %v527
        %v577 = vunpack.c.l.b16 %v528
        %v578 = vunpack.c.h.b16 %v528
        %v579 = vunpack.c.l.b16 %v529
        %v580 = vunpack.c.h.b16 %v529
        %v581 = vunpack.c.l.b16 %v530
        %v582 = vunpack.c.h.b16 %v530
        %v583 = vunpack.c.l.b16 %v531
        %v584 = vunpack.c.h.b16 %v531
        %v585 = vunpack.c.l.b16 %v532
        %v586 = vunpack.c.h.b16 %v532
        %v587 = vpack.c.b16 %v557, %v555
        %v588 = vpack.c.b16 %v558, %v556
        %v589 = vpack.c.b16 %v561, %v559
        %v590 = vpack.c.b16 %v562, %v560
        %v591 = vpack.c.b16 %v565, %v563
        %v592 = vpack.c.b16 %v566, %v564
        %v593 = vpack.c.b16 %v569, %v567
        %v594 = vpack.c.b16 %v570, %v568
        %v595 = vpack.c.b16 %v573, %v571
        %v596 = vpack.c.b16 %v574, %v572
        %v597 = vpack.c.b16 %v577, %v575
        %v598 = vpack.c.b16 %v578, %v576
        %v599 = vpack.c.b16 %v581, %v579
        %v600 = vpack.c.b16 %v582, %v580
        %v601 = vpack.c.b16 %v585, %v583
        %v602 = vpack.c.b16 %v586, %v584
        %619 = vmatpush.bf16.msra.mxu0 %v601
        %620 = vmatpush.bf16.msra.mxu0 %v599
        %621 = vmatpush.bf16.msra.mxu0 %v597
        %622 = vmatpush.bf16.msra.mxu0 %v595
        %623 = vmatpush.bf16.msra.mxu0 %v593
        %624 = vmatpush.bf16.msra.mxu0 %v591
        %625 = vmatpush.bf16.msra.mxu0 %v589
        %626 = vmatpush.bf16.msra.mxu0 %v587
        %627 = vmatmul.bf16.gmra.mxu0 %v516
        %v628 = vpop.f32.mrf.mxu0
        %v629 = vadd.f32 %v535, %v628
        %v630 = vpop.f32.mrf.mxu0
        %631 = vdwg.mxu0
        %632 = vmatpush.bf16.msra.mxu0 %v602
        %633 = vmatpush.bf16.msra.mxu0 %v600
        %634 = vmatpush.bf16.msra.mxu0 %v598
        %635 = vmatpush.bf16.msra.mxu0 %v596
        %636 = vmatpush.bf16.msra.mxu0 %v594
        %637 = vmatpush.bf16.msra.mxu0 %v592
        %638 = vmatpush.bf16.msra.mxu0 %v590
        %639 = vmatpush.bf16.msra.mxu0 %v588
        %640 = vmatmul.bf16.gmra.mxu0 %v516
        %v641 = vpop.f32.mrf.mxu0
        %v642 = vadd.f32 %v536, %v641
        %v643 = vpop.f32.mrf.mxu0
        %644 = vdwg.mxu0
        %v645 = vmax.f32 %v629, 0.0
        %v646 = vmax.f32 %v642, 0.0
        %v647 = vpack.c.bf16 %v645, %v645
        %v648 = vpack.c.bf16 %v646, %v646
        %v649 = vld [vmem:[#allocation8] sm:$0xff]
        %v650 = vld [vmem:[#allocation8 + $0x8] sm:$0xff]
        %v651 = vld [vmem:[#allocation8 + $0x10] sm:$0xff]
        %v652 = vld [vmem:[#allocation8 + $0x18] sm:$0xff]
        %v653 = vld [vmem:[#allocation8 + $0x20] sm:$0xff]
        %v654 = vld [vmem:[#allocation8 + $0x28] sm:$0xff]
        %v655 = vld [vmem:[#allocation8 + $0x30] sm:$0xff]
        %v656 = vld [vmem:[#allocation8 + $0x38] sm:$0xff]
        %v657 = vld [vmem:[#allocation8 + $0x40] sm:$0xff]
        %v658 = vld [vmem:[#allocation8 + $0x48] sm:$0xff]
        %v659 = vld [vmem:[#allocation8 + $0x50] sm:$0xff]
        %v660 = vld [vmem:[#allocation8 + $0x58] sm:$0xff]
        %v661 = vld [vmem:[#allocation8 + $0x60] sm:$0xff]
        %v662 = vld [vmem:[#allocation8 + $0x68] sm:$0xff]
        %v663 = vld [vmem:[#allocation8 + $0x70] sm:$0xff]
        %v664 = vld [vmem:[#allocation8 + $0x78] sm:$0xff]
        %v665 = vld [vmem:[#allocation8 + $0x80] sm:$0xff]
        %v666 = vld [vmem:[#allocation8 + $0x88] sm:$0xff]
        %v667 = vld [vmem:[#allocation8 + $0x90] sm:$0xff]
        %v668 = vld [vmem:[#allocation8 + $0x98] sm:$0xff]
        %v669 = vld [vmem:[#allocation8 + $0xa0] sm:$0xff]
        %v670 = vld [vmem:[#allocation8 + $0xa8] sm:$0xff]
        %v671 = vld [vmem:[#allocation8 + $0xb0] sm:$0xff]
        %v672 = vld [vmem:[#allocation8 + $0xb8] sm:$0xff]
        %v673 = vld [vmem:[#allocation8 + $0xc0] sm:$0xff]
        %v674 = vld [vmem:[#allocation8 + $0xc8] sm:$0xff]
        %v675 = vld [vmem:[#allocation8 + $0xd0] sm:$0xff]
        %v676 = vld [vmem:[#allocation8 + $0xd8] sm:$0xff]
        %v677 = vld [vmem:[#allocation8 + $0xe0] sm:$0xff]
        %v678 = vld [vmem:[#allocation8 + $0xe8] sm:$0xff]
        %v679 = vld [vmem:[#allocation8 + $0xf0] sm:$0xff]
        %v680 = vld [vmem:[#allocation8 + $0xf8] sm:$0xff]
        %v681 = vld [vmem:[#allocation8 + $0x100] sm:$0xff]
        %v682 = vld [vmem:[#allocation8 + $0x108] sm:$0xff]
        %v683 = vld [vmem:[#allocation8 + $0x110] sm:$0xff]
        %v684 = vld [vmem:[#allocation8 + $0x118] sm:$0xff]
        %v685 = vld [vmem:[#allocation8 + $0x120] sm:$0xff]
        %v686 = vld [vmem:[#allocation8 + $0x128] sm:$0xff]
        %v687 = vld [vmem:[#allocation8 + $0x130] sm:$0xff]
        %v688 = vld [vmem:[#allocation8 + $0x138] sm:$0xff]
        %v689 = vld [vmem:[#allocation8 + $0x140] sm:$0xff]
        %v690 = vld [vmem:[#allocation8 + $0x148] sm:$0xff]
        %v691 = vld [vmem:[#allocation8 + $0x150] sm:$0xff]
        %v692 = vld [vmem:[#allocation8 + $0x158] sm:$0xff]
        %v693 = vld [vmem:[#allocation8 + $0x160] sm:$0xff]
        %v694 = vld [vmem:[#allocation8 + $0x168] sm:$0xff]
        %v695 = vld [vmem:[#allocation8 + $0x170] sm:$0xff]
        %v696 = vld [vmem:[#allocation8 + $0x178] sm:$0xff]
        %v697 = vld [vmem:[#allocation8 + $0x180] sm:$0xff]
        %v698 = vld [vmem:[#allocation8 + $0x188] sm:$0xff]
        %v699 = vld [vmem:[#allocation8 + $0x190] sm:$0xff]
        %v700 = vld [vmem:[#allocation8 + $0x198] sm:$0xff]
        %v701 = vld [vmem:[#allocation8 + $0x1a0] sm:$0xff]
        %v702 = vld [vmem:[#allocation8 + $0x1a8] sm:$0xff]
        %v703 = vld [vmem:[#allocation8 + $0x1b0] sm:$0xff]
        %v704 = vld [vmem:[#allocation8 + $0x1b8] sm:$0xff]
        %v705 = vld [vmem:[#allocation8 + $0x1c0] sm:$0xff]
        %v706 = vld [vmem:[#allocation8 + $0x1c8] sm:$0xff]
        %v707 = vld [vmem:[#allocation8 + $0x1d0] sm:$0xff]
        %v708 = vld [vmem:[#allocation8 + $0x1d8] sm:$0xff]
        %v709 = vld [vmem:[#allocation8 + $0x1e0] sm:$0xff]
        %v710 = vld [vmem:[#allocation8 + $0x1e8] sm:$0xff]
        %v711 = vld [vmem:[#allocation8 + $0x1f0] sm:$0xff]
        %v712 = vld [vmem:[#allocation8 + $0x1f8] sm:$0xff]
        %v713 = vld [vmem:[#allocation10] sm:$0xf]
        %v715 = vperm.slane %v713, 0
        %v716 = vperm.slane %v713, 1
        %v717 = vperm.slane %v713, 2
        %v718 = vperm.slane %v713, 3
        %v787 = vunpack.c.l.b16 %v649
        %v788 = vunpack.c.h.b16 %v649
        %v789 = vunpack.c.l.b16 %v650
        %v790 = vunpack.c.h.b16 %v650
        %v791 = vunpack.c.l.b16 %v651
        %v792 = vunpack.c.h.b16 %v651
        %v793 = vunpack.c.l.b16 %v652
        %v794 = vunpack.c.h.b16 %v652
        %v795 = vunpack.c.l.b16 %v653
        %v796 = vunpack.c.h.b16 %v653
        %v797 = vunpack.c.l.b16 %v654
        %v798 = vunpack.c.h.b16 %v654
        %v799 = vunpack.c.l.b16 %v655
        %v800 = vunpack.c.h.b16 %v655
        %v801 = vunpack.c.l.b16 %v656
        %v802 = vunpack.c.h.b16 %v656
        %v803 = vunpack.c.l.b16 %v657
        %v804 = vunpack.c.h.b16 %v657
        %v805 = vunpack.c.l.b16 %v658
        %v806 = vunpack.c.h.b16 %v658
        %v807 = vunpack.c.l.b16 %v659
        %v808 = vunpack.c.h.b16 %v659
        %v809 = vunpack.c.l.b16 %v660
        %v810 = vunpack.c.h.b16 %v660
        %v811 = vunpack.c.l.b16 %v661
        %v812 = vunpack.c.h.b16 %v661
        %v813 = vunpack.c.l.b16 %v662
        %v814 = vunpack.c.h.b16 %v662
        %v815 = vunpack.c.l.b16 %v663
        %v816 = vunpack.c.h.b16 %v663
        %v817 = vunpack.c.l.b16 %v664
        %v818 = vunpack.c.h.b16 %v664
        %v819 = vunpack.c.l.b16 %v665
        %v820 = vunpack.c.h.b16 %v665
        %v821 = vunpack.c.l.b16 %v666
        %v822 = vunpack.c.h.b16 %v666
        %v823 = vunpack.c.l.b16 %v667
        %v824 = vunpack.c.h.b16 %v667
        %v825 = vunpack.c.l.b16 %v668
        %v826 = vunpack.c.h.b16 %v668
        %v827 = vunpack.c.l.b16 %v669
        %v828 = vunpack.c.h.b16 %v669
        %v829 = vunpack.c.l.b16 %v670
        %v830 = vunpack.c.h.b16 %v670
        %v831 = vunpack.c.l.b16 %v671
        %v832 = vunpack.c.h.b16 %v671
        %v833 = vunpack.c.l.b16 %v672
        %v834 = vunpack.c.h.b16 %v672
        %v835 = vunpack.c.l.b16 %v673
        %v836 = vunpack.c.h.b16 %v673
        %v837 = vunpack.c.l.b16 %v674
        %v838 = vunpack.c.h.b16 %v674
        %v839 = vunpack.c.l.b16 %v675
        %v840 = vunpack.c.h.b16 %v675
        %v841 = vunpack.c.l.b16 %v676
        %v842 = vunpack.c.h.b16 %v676
        %v843 = vunpack.c.l.b16 %v677
        %v844 = vunpack.c.h.b16 %v677
        %v845 = vunpack.c.l.b16 %v678
        %v846 = vunpack.c.h.b16 %v678
        %v847 = vunpack.c.l.b16 %v679
        %v848 = vunpack.c.h.b16 %v679
        %v849 = vunpack.c.l.b16 %v680
        %v850 = vunpack.c.h.b16 %v680
        %v851 = vunpack.c.l.b16 %v681
        %v852 = vunpack.c.h.b16 %v681
        %v853 = vunpack.c.l.b16 %v682
        %v854 = vunpack.c.h.b16 %v682
        %v855 = vunpack.c.l.b16 %v683
        %v856 = vunpack.c.h.b16 %v683
        %v857 = vunpack.c.l.b16 %v684
        %v858 = vunpack.c.h.b16 %v684
        %v859 = vunpack.c.l.b16 %v685
        %v860 = vunpack.c.h.b16 %v685
        %v861 = vunpack.c.l.b16 %v686
        %v862 = vunpack.c.h.b16 %v686
        %v863 = vunpack.c.l.b16 %v687
        %v864 = vunpack.c.h.b16 %v687
        %v865 = vunpack.c.l.b16 %v688
        %v866 = vunpack.c.h.b16 %v688
        %v867 = vunpack.c.l.b16 %v689
        %v868 = vunpack.c.h.b16 %v689
        %v869 = vunpack.c.l.b16 %v690
        %v870 = vunpack.c.h.b16 %v690
        %v871 = vunpack.c.l.b16 %v691
        %v872 = vunpack.c.h.b16 %v691
        %v873 = vunpack.c.l.b16 %v692
        %v874 = vunpack.c.h.b16 %v692
        %v875 = vunpack.c.l.b16 %v693
        %v876 = vunpack.c.h.b16 %v693
        %v877 = vunpack.c.l.b16 %v694
        %v878 = vunpack.c.h.b16 %v694
        %v879 = vunpack.c.l.b16 %v695
        %v880 = vunpack.c.h.b16 %v695
        %v881 = vunpack.c.l.b16 %v696
        %v882 = vunpack.c.h.b16 %v696
        %v883 = vunpack.c.l.b16 %v697
        %v884 = vunpack.c.h.b16 %v697
        %v885 = vunpack.c.l.b16 %v698
        %v886 = vunpack.c.h.b16 %v698
        %v887 = vunpack.c.l.b16 %v699
        %v888 = vunpack.c.h.b16 %v699
        %v889 = vunpack.c.l.b16 %v700
        %v890 = vunpack.c.h.b16 %v700
        %v891 = vunpack.c.l.b16 %v701
        %v892 = vunpack.c.h.b16 %v701
        %v893 = vunpack.c.l.b16 %v702
        %v894 = vunpack.c.h.b16 %v702
        %v895 = vunpack.c.l.b16 %v703
        %v896 = vunpack.c.h.b16 %v703
        %v897 = vunpack.c.l.b16 %v704
        %v898 = vunpack.c.h.b16 %v704
        %v899 = vunpack.c.l.b16 %v705
        %v900 = vunpack.c.h.b16 %v705
        %v901 = vunpack.c.l.b16 %v706
        %v902 = vunpack.c.h.b16 %v706
        %v903 = vunpack.c.l.b16 %v707
        %v904 = vunpack.c.h.b16 %v707
        %v905 = vunpack.c.l.b16 %v708
        %v906 = vunpack.c.h.b16 %v708
        %v907 = vunpack.c.l.b16 %v709
        %v908 = vunpack.c.h.b16 %v709
        %v909 = vunpack.c.l.b16 %v710
        %v910 = vunpack.c.h.b16 %v710
        %v911 = vunpack.c.l.b16 %v711
        %v912 = vunpack.c.h.b16 %v711
        %v913 = vunpack.c.l.b16 %v712
        %v914 = vunpack.c.h.b16 %v712
        %v915 = vpack.c.b16 %v791, %v787
        %v916 = vpack.c.b16 %v792, %v788
        %v917 = vpack.c.b16 %v793, %v789
        %v918 = vpack.c.b16 %v794, %v790
        %v919 = vpack.c.b16 %v799, %v795
        %v920 = vpack.c.b16 %v800, %v796
        %v921 = vpack.c.b16 %v801, %v797
        %v922 = vpack.c.b16 %v802, %v798
        %v923 = vpack.c.b16 %v807, %v803
        %v924 = vpack.c.b16 %v808, %v804
        %v925 = vpack.c.b16 %v809, %v805
        %v926 = vpack.c.b16 %v810, %v806
        %v927 = vpack.c.b16 %v815, %v811
        %v928 = vpack.c.b16 %v816, %v812
        %v929 = vpack.c.b16 %v817, %v813
        %v930 = vpack.c.b16 %v818, %v814
        %v931 = vpack.c.b16 %v823, %v819
        %v932 = vpack.c.b16 %v824, %v820
        %v933 = vpack.c.b16 %v825, %v821
        %v934 = vpack.c.b16 %v826, %v822
        %v935 = vpack.c.b16 %v831, %v827
        %v936 = vpack.c.b16 %v832, %v828
        %v937 = vpack.c.b16 %v833, %v829
        %v938 = vpack.c.b16 %v834, %v830
        %v939 = vpack.c.b16 %v839, %v835
        %v940 = vpack.c.b16 %v840, %v836
        %v941 = vpack.c.b16 %v841, %v837
        %v942 = vpack.c.b16 %v842, %v838
        %v943 = vpack.c.b16 %v847, %v843
        %v944 = vpack.c.b16 %v848, %v844
        %v945 = vpack.c.b16 %v849, %v845
        %v946 = vpack.c.b16 %v850, %v846
        %v947 = vpack.c.b16 %v855, %v851
        %v948 = vpack.c.b16 %v856, %v852
        %v949 = vpack.c.b16 %v857, %v853
        %v950 = vpack.c.b16 %v858, %v854
        %v951 = vpack.c.b16 %v863, %v859
        %v952 = vpack.c.b16 %v864, %v860
        %v953 = vpack.c.b16 %v865, %v861
        %v954 = vpack.c.b16 %v866, %v862
        %v955 = vpack.c.b16 %v871, %v867
        %v956 = vpack.c.b16 %v872, %v868
        %v957 = vpack.c.b16 %v873, %v869
        %v958 = vpack.c.b16 %v874, %v870
        %v959 = vpack.c.b16 %v879, %v875
        %v960 = vpack.c.b16 %v880, %v876
        %v961 = vpack.c.b16 %v881, %v877
        %v962 = vpack.c.b16 %v882, %v878
        %v963 = vpack.c.b16 %v887, %v883
        %v964 = vpack.c.b16 %v888, %v884
        %v965 = vpack.c.b16 %v889, %v885
        %v966 = vpack.c.b16 %v890, %v886
        %v967 = vpack.c.b16 %v895, %v891
        %v968 = vpack.c.b16 %v896, %v892
        %v969 = vpack.c.b16 %v897, %v893
        %v970 = vpack.c.b16 %v898, %v894
        %v971 = vpack.c.b16 %v903, %v899
        %v972 = vpack.c.b16 %v904, %v900
        %v973 = vpack.c.b16 %v905, %v901
        %v974 = vpack.c.b16 %v906, %v902
        %v975 = vpack.c.b16 %v911, %v907
        %v976 = vpack.c.b16 %v912, %v908
        %v977 = vpack.c.b16 %v913, %v909
        %v978 = vpack.c.b16 %v914, %v910
        %1043 = vmatpush.bf16.msra.mxu0 %v943
        %1044 = vmatpush.bf16.msra.mxu0 %v939
        %1045 = vmatpush.bf16.msra.mxu0 %v935
        %1046 = vmatpush.bf16.msra.mxu0 %v931
        %1047 = vmatpush.bf16.msra.mxu0 %v927
        %1048 = vmatpush.bf16.msra.mxu0 %v923
        %1049 = vmatpush.bf16.msra.mxu0 %v919
        %1050 = vmatpush.bf16.msra.mxu0 %v915
        %1051 = vmatmul.bf16.gmra.mxu0 %v647
        %v1052 = vpop.f32.mrf.mxu0
        %v1053 = vadd.f32 %v715, %v1052
        %v1054 = vpop.f32.mrf.mxu0
        %1055 = vdwg.mxu0
        %1056 = vmatpush.bf16.msra.mxu0 %v975
        %1057 = vmatpush.bf16.msra.mxu0 %v971
        %1058 = vmatpush.bf16.msra.mxu0 %v967
        %1059 = vmatpush.bf16.msra.mxu0 %v963
        %1060 = vmatpush.bf16.msra.mxu0 %v959
        %1061 = vmatpush.bf16.msra.mxu0 %v955
        %1062 = vmatpush.bf16.msra.mxu0 %v951
        %1063 = vmatpush.bf16.msra.mxu0 %v947
        %1064 = vmatmul.bf16.gmra.mxu0 %v648
        %v1065 = vpop.f32.mrf.mxu0
        %v1066 = vadd.f32 %v1053, %v1065
        %v1067 = vpop.f32.mrf.mxu0
        %1068 = vdwg.mxu0
        %1069 = vmatpush.bf16.msra.mxu0 %v944
        %1070 = vmatpush.bf16.msra.mxu0 %v940
        %1071 = vmatpush.bf16.msra.mxu0 %v936
        %1072 = vmatpush.bf16.msra.mxu0 %v932
        %1073 = vmatpush.bf16.msra.mxu0 %v928
        %1074 = vmatpush.bf16.msra.mxu0 %v924
        %1075 = vmatpush.bf16.msra.mxu0 %v920
        %1076 = vmatpush.bf16.msra.mxu0 %v916
        %1077 = vmatmul.bf16.gmra.mxu0 %v647
        %v1078 = vpop.f32.mrf.mxu0
        %v1079 = vadd.f32 %v716, %v1078
        %v1080 = vpop.f32.mrf.mxu0
        %1081 = vdwg.mxu0
        %1082 = vmatpush.bf16.msra.mxu0 %v976
        %1083 = vmatpush.bf16.msra.mxu0 %v972
        %1084 = vmatpush.bf16.msra.mxu0 %v968
        %1085 = vmatpush.bf16.msra.mxu0 %v964
        %1086 = vmatpush.bf16.msra.mxu0 %v960
        %1087 = vmatpush.bf16.msra.mxu0 %v956
        %1088 = vmatpush.bf16.msra.mxu0 %v952
        %1089 = vmatpush.bf16.msra.mxu0 %v948
        %1090 = vmatmul.bf16.gmra.mxu0 %v648
        %v1091 = vpop.f32.mrf.mxu0
        %v1092 = vadd.f32 %v1079, %v1091
        %v1093 = vpop.f32.mrf.mxu0
        %1094 = vdwg.mxu0
        %1095 = vmatpush.bf16.msra.mxu0 %v945
        %1096 = vmatpush.bf16.msra.mxu0 %v941
        %1097 = vmatpush.bf16.msra.mxu0 %v937
        %1098 = vmatpush.bf16.msra.mxu0 %v933
        %1099 = vmatpush.bf16.msra.mxu0 %v929
        %1100 = vmatpush.bf16.msra.mxu0 %v925
        %1101 = vmatpush.bf16.msra.mxu0 %v921
        %1102 = vmatpush.bf16.msra.mxu0 %v917
        %1103 = vmatmul.bf16.gmra.mxu0 %v647
        %v1104 = vpop.f32.mrf.mxu0
        %v1105 = vadd.f32 %v717, %v1104
        %v1106 = vpop.f32.mrf.mxu0
        %1107 = vdwg.mxu0
        %1108 = vmatpush.bf16.msra.mxu0 %v977
        %1109 = vmatpush.bf16.msra.mxu0 %v973
        %1110 = vmatpush.bf16.msra.mxu0 %v969
        %1111 = vmatpush.bf16.msra.mxu0 %v965
        %1112 = vmatpush.bf16.msra.mxu0 %v961
        %1113 = vmatpush.bf16.msra.mxu0 %v957
        %1114 = vmatpush.bf16.msra.mxu0 %v953
        %1115 = vmatpush.bf16.msra.mxu0 %v949
        %1116 = vmatmul.bf16.gmra.mxu0 %v648
        %v1117 = vpop.f32.mrf.mxu0
        %v1118 = vadd.f32 %v1105, %v1117
        %v1119 = vpop.f32.mrf.mxu0
        %1120 = vdwg.mxu0
        %1121 = vmatpush.bf16.msra.mxu0 %v946
        %1122 = vmatpush.bf16.msra.mxu0 %v942
        %1123 = vmatpush.bf16.msra.mxu0 %v938
        %1124 = vmatpush.bf16.msra.mxu0 %v934
        %1125 = vmatpush.bf16.msra.mxu0 %v930
        %1126 = vmatpush.bf16.msra.mxu0 %v926
        %1127 = vmatpush.bf16.msra.mxu0 %v922
        %1128 = vmatpush.bf16.msra.mxu0 %v918
        %1129 = vmatmul.bf16.gmra.mxu0 %v647
        %v1130 = vpop.f32.mrf.mxu0
        %v1131 = vadd.f32 %v718, %v1130
        %v1132 = vpop.f32.mrf.mxu0
        %1133 = vdwg.mxu0
        %1134 = vmatpush.bf16.msra.mxu0 %v978
        %1135 = vmatpush.bf16.msra.mxu0 %v974
        %1136 = vmatpush.bf16.msra.mxu0 %v970
        %1137 = vmatpush.bf16.msra.mxu0 %v966
        %1138 = vmatpush.bf16.msra.mxu0 %v962
        %1139 = vmatpush.bf16.msra.mxu0 %v958
        %1140 = vmatpush.bf16.msra.mxu0 %v954
        %1141 = vmatpush.bf16.msra.mxu0 %v950
        %1142 = vmatmul.bf16.gmra.mxu0 %v648
        %v1143 = vpop.f32.mrf.mxu0
        %v1144 = vadd.f32 %v1131, %v1143
        %v1145 = vpop.f32.mrf.mxu0
        %1146 = vdwg.mxu0
        %v1147 = vmax.f32 %v1066, 0.0
        %v1148 = vmax.f32 %v1092, 0.0
        %v1149 = vmax.f32 %v1118, 0.0
        %v1150 = vmax.f32 %v1144, 0.0
        %v1151 = vpack.c.bf16 %v1147, %v1147
        %v1152 = vpack.c.bf16 %v1148, %v1148
        %v1153 = vpack.c.bf16 %v1149, %v1149
        %v1154 = vpack.c.bf16 %v1150, %v1150
        %v1155 = vld [vmem:[#allocation11] sm:$0xff]
        %v1156 = vld [vmem:[#allocation11 + $0x8] sm:$0xff]
        %v1157 = vld [vmem:[#allocation11 + $0x10] sm:$0xff]
        %v1158 = vld [vmem:[#allocation11 + $0x18] sm:$0xff]
        %v1159 = vld [vmem:[#allocation11 + $0x20] sm:$0xff]
        %v1160 = vld [vmem:[#allocation11 + $0x28] sm:$0xff]
        %v1161 = vld [vmem:[#allocation11 + $0x30] sm:$0xff]
        %v1162 = vld [vmem:[#allocation11 + $0x38] sm:$0xff]
        %v1163 = vld [vmem:[#allocation11 + $0x40] sm:$0xff]
        %v1164 = vld [vmem:[#allocation11 + $0x48] sm:$0xff]
        %v1165 = vld [vmem:[#allocation11 + $0x50] sm:$0xff]
        %v1166 = vld [vmem:[#allocation11 + $0x58] sm:$0xff]
        %v1167 = vld [vmem:[#allocation11 + $0x60] sm:$0xff]
        %v1168 = vld [vmem:[#allocation11 + $0x68] sm:$0xff]
        %v1169 = vld [vmem:[#allocation11 + $0x70] sm:$0xff]
        %v1170 = vld [vmem:[#allocation11 + $0x78] sm:$0xff]
        %v1171 = vld [vmem:[#allocation11 + $0x80] sm:$0xff]
        %v1172 = vld [vmem:[#allocation11 + $0x88] sm:$0xff]
        %v1173 = vld [vmem:[#allocation11 + $0x90] sm:$0xff]
        %v1174 = vld [vmem:[#allocation11 + $0x98] sm:$0xff]
        %v1175 = vld [vmem:[#allocation11 + $0xa0] sm:$0xff]
        %v1176 = vld [vmem:[#allocation11 + $0xa8] sm:$0xff]
        %v1177 = vld [vmem:[#allocation11 + $0xb0] sm:$0xff]
        %v1178 = vld [vmem:[#allocation11 + $0xb8] sm:$0xff]
        %v1179 = vld [vmem:[#allocation11 + $0xc0] sm:$0xff]
        %v1180 = vld [vmem:[#allocation11 + $0xc8] sm:$0xff]
        %v1181 = vld [vmem:[#allocation11 + $0xd0] sm:$0xff]
        %v1182 = vld [vmem:[#allocation11 + $0xd8] sm:$0xff]
        %v1183 = vld [vmem:[#allocation11 + $0xe0] sm:$0xff]
        %v1184 = vld [vmem:[#allocation11 + $0xe8] sm:$0xff]
        %v1185 = vld [vmem:[#allocation11 + $0xf0] sm:$0xff]
        %v1186 = vld [vmem:[#allocation11 + $0xf8] sm:$0xff]
        %v1187 = vld [vmem:[#allocation11 + $0x100] sm:$0xff]
        %v1188 = vld [vmem:[#allocation11 + $0x108] sm:$0xff]
        %v1189 = vld [vmem:[#allocation11 + $0x110] sm:$0xff]
        %v1190 = vld [vmem:[#allocation11 + $0x118] sm:$0xff]
        %v1191 = vld [vmem:[#allocation11 + $0x120] sm:$0xff]
        %v1192 = vld [vmem:[#allocation11 + $0x128] sm:$0xff]
        %v1193 = vld [vmem:[#allocation11 + $0x130] sm:$0xff]
        %v1194 = vld [vmem:[#allocation11 + $0x138] sm:$0xff]
        %v1195 = vld [vmem:[#allocation11 + $0x140] sm:$0xff]
        %v1196 = vld [vmem:[#allocation11 + $0x148] sm:$0xff]
        %v1197 = vld [vmem:[#allocation11 + $0x150] sm:$0xff]
        %v1198 = vld [vmem:[#allocation11 + $0x158] sm:$0xff]
        %v1199 = vld [vmem:[#allocation11 + $0x160] sm:$0xff]
        %v1200 = vld [vmem:[#allocation11 + $0x168] sm:$0xff]
        %v1201 = vld [vmem:[#allocation11 + $0x170] sm:$0xff]
        %v1202 = vld [vmem:[#allocation11 + $0x178] sm:$0xff]
        %v1203 = vld [vmem:[#allocation11 + $0x180] sm:$0xff]
        %v1204 = vld [vmem:[#allocation11 + $0x188] sm:$0xff]
        %v1205 = vld [vmem:[#allocation11 + $0x190] sm:$0xff]
        %v1206 = vld [vmem:[#allocation11 + $0x198] sm:$0xff]
        %v1207 = vld [vmem:[#allocation11 + $0x1a0] sm:$0xff]
        %v1208 = vld [vmem:[#allocation11 + $0x1a8] sm:$0xff]
        %v1209 = vld [vmem:[#allocation11 + $0x1b0] sm:$0xff]
        %v1210 = vld [vmem:[#allocation11 + $0x1b8] sm:$0xff]
        %v1211 = vld [vmem:[#allocation11 + $0x1c0] sm:$0xff]
        %v1212 = vld [vmem:[#allocation11 + $0x1c8] sm:$0xff]
        %v1213 = vld [vmem:[#allocation11 + $0x1d0] sm:$0xff]
        %v1214 = vld [vmem:[#allocation11 + $0x1d8] sm:$0xff]
        %v1215 = vld [vmem:[#allocation11 + $0x1e0] sm:$0xff]
        %v1216 = vld [vmem:[#allocation11 + $0x1e8] sm:$0xff]
        %v1217 = vld [vmem:[#allocation11 + $0x1f0] sm:$0xff]
        %v1218 = vld [vmem:[#allocation11 + $0x1f8] sm:$0xff]
        %v1219 = vld [vmem:[%s6] sm:$0x3]
        %v1221 = vperm.slane %v1219, 0
        %v1222 = vperm.slane %v1219, 1
        %v1289 = vunpack.c.l.b16 %v1155
        %v1290 = vunpack.c.h.b16 %v1155
        %v1291 = vunpack.c.l.b16 %v1156
        %v1292 = vunpack.c.h.b16 %v1156
        %v1293 = vunpack.c.l.b16 %v1157
        %v1294 = vunpack.c.h.b16 %v1157
        %v1295 = vunpack.c.l.b16 %v1158
        %v1296 = vunpack.c.h.b16 %v1158
        %v1297 = vunpack.c.l.b16 %v1159
        %v1298 = vunpack.c.h.b16 %v1159
        %v1299 = vunpack.c.l.b16 %v1160
        %v1300 = vunpack.c.h.b16 %v1160
        %v1301 = vunpack.c.l.b16 %v1161
        %v1302 = vunpack.c.h.b16 %v1161
        %v1303 = vunpack.c.l.b16 %v1162
        %v1304 = vunpack.c.h.b16 %v1162
        %v1305 = vunpack.c.l.b16 %v1163
        %v1306 = vunpack.c.h.b16 %v1163
        %v1307 = vunpack.c.l.b16 %v1164
        %v1308 = vunpack.c.h.b16 %v1164
        %v1309 = vunpack.c.l.b16 %v1165
        %v1310 = vunpack.c.h.b16 %v1165
        %v1311 = vunpack.c.l.b16 %v1166
        %v1312 = vunpack.c.h.b16 %v1166
        %v1313 = vunpack.c.l.b16 %v1167
        %v1314 = vunpack.c.h.b16 %v1167
        %v1315 = vunpack.c.l.b16 %v1168
        %v1316 = vunpack.c.h.b16 %v1168
        %v1317 = vunpack.c.l.b16 %v1169
        %v1318 = vunpack.c.h.b16 %v1169
        %v1319 = vunpack.c.l.b16 %v1170
        %v1320 = vunpack.c.h.b16 %v1170
        %v1321 = vunpack.c.l.b16 %v1171
        %v1322 = vunpack.c.h.b16 %v1171
        %v1323 = vunpack.c.l.b16 %v1172
        %v1324 = vunpack.c.h.b16 %v1172
        %v1325 = vunpack.c.l.b16 %v1173
        %v1326 = vunpack.c.h.b16 %v1173
        %v1327 = vunpack.c.l.b16 %v1174
        %v1328 = vunpack.c.h.b16 %v1174
        %v1329 = vunpack.c.l.b16 %v1175
        %v1330 = vunpack.c.h.b16 %v1175
        %v1331 = vunpack.c.l.b16 %v1176
        %v1332 = vunpack.c.h.b16 %v1176
        %v1333 = vunpack.c.l.b16 %v1177
        %v1334 = vunpack.c.h.b16 %v1177
        %v1335 = vunpack.c.l.b16 %v1178
        %v1336 = vunpack.c.h.b16 %v1178
        %v1337 = vunpack.c.l.b16 %v1179
        %v1338 = vunpack.c.h.b16 %v1179
        %v1339 = vunpack.c.l.b16 %v1180
        %v1340 = vunpack.c.h.b16 %v1180
        %v1341 = vunpack.c.l.b16 %v1181
        %v1342 = vunpack.c.h.b16 %v1181
        %v1343 = vunpack.c.l.b16 %v1182
        %v1344 = vunpack.c.h.b16 %v1182
        %v1345 = vunpack.c.l.b16 %v1183
        %v1346 = vunpack.c.h.b16 %v1183
        %v1347 = vunpack.c.l.b16 %v1184
        %v1348 = vunpack.c.h.b16 %v1184
        %v1349 = vunpack.c.l.b16 %v1185
        %v1350 = vunpack.c.h.b16 %v1185
        %v1351 = vunpack.c.l.b16 %v1186
        %v1352 = vunpack.c.h.b16 %v1186
        %v1353 = vunpack.c.l.b16 %v1187
        %v1354 = vunpack.c.h.b16 %v1187
        %v1355 = vunpack.c.l.b16 %v1188
        %v1356 = vunpack.c.h.b16 %v1188
        %v1357 = vunpack.c.l.b16 %v1189
        %v1358 = vunpack.c.h.b16 %v1189
        %v1359 = vunpack.c.l.b16 %v1190
        %v1360 = vunpack.c.h.b16 %v1190
        %v1361 = vunpack.c.l.b16 %v1191
        %v1362 = vunpack.c.h.b16 %v1191
        %v1363 = vunpack.c.l.b16 %v1192
        %v1364 = vunpack.c.h.b16 %v1192
        %v1365 = vunpack.c.l.b16 %v1193
        %v1366 = vunpack.c.h.b16 %v1193
        %v1367 = vunpack.c.l.b16 %v1194
        %v1368 = vunpack.c.h.b16 %v1194
        %v1369 = vunpack.c.l.b16 %v1195
        %v1370 = vunpack.c.h.b16 %v1195
        %v1371 = vunpack.c.l.b16 %v1196
        %v1372 = vunpack.c.h.b16 %v1196
        %v1373 = vunpack.c.l.b16 %v1197
        %v1374 = vunpack.c.h.b16 %v1197
        %v1375 = vunpack.c.l.b16 %v1198
        %v1376 = vunpack.c.h.b16 %v1198
        %v1377 = vunpack.c.l.b16 %v1199
        %v1378 = vunpack.c.h.b16 %v1199
        %v1379 = vunpack.c.l.b16 %v1200
        %v1380 = vunpack.c.h.b16 %v1200
        %v1381 = vunpack.c.l.b16 %v1201
        %v1382 = vunpack.c.h.b16 %v1201
        %v1383 = vunpack.c.l.b16 %v1202
        %v1384 = vunpack.c.h.b16 %v1202
        %v1385 = vunpack.c.l.b16 %v1203
        %v1386 = vunpack.c.h.b16 %v1203
        %v1387 = vunpack.c.l.b16 %v1204
        %v1388 = vunpack.c.h.b16 %v1204
        %v1389 = vunpack.c.l.b16 %v1205
        %v1390 = vunpack.c.h.b16 %v1205
        %v1391 = vunpack.c.l.b16 %v1206
        %v1392 = vunpack.c.h.b16 %v1206
        %v1393 = vunpack.c.l.b16 %v1207
        %v1394 = vunpack.c.h.b16 %v1207
        %v1395 = vunpack.c.l.b16 %v1208
        %v1396 = vunpack.c.h.b16 %v1208
        %v1397 = vunpack.c.l.b16 %v1209
        %v1398 = vunpack.c.h.b16 %v1209
        %v1399 = vunpack.c.l.b16 %v1210
        %v1400 = vunpack.c.h.b16 %v1210
        %v1401 = vunpack.c.l.b16 %v1211
        %v1402 = vunpack.c.h.b16 %v1211
        %v1403 = vunpack.c.l.b16 %v1212
        %v1404 = vunpack.c.h.b16 %v1212
        %v1405 = vunpack.c.l.b16 %v1213
        %v1406 = vunpack.c.h.b16 %v1213
        %v1407 = vunpack.c.l.b16 %v1214
        %v1408 = vunpack.c.h.b16 %v1214
        %v1409 = vunpack.c.l.b16 %v1215
        %v1410 = vunpack.c.h.b16 %v1215
        %v1411 = vunpack.c.l.b16 %v1216
        %v1412 = vunpack.c.h.b16 %v1216
        %v1413 = vunpack.c.l.b16 %v1217
        %v1414 = vunpack.c.h.b16 %v1217
        %v1415 = vunpack.c.l.b16 %v1218
        %v1416 = vunpack.c.h.b16 %v1218
        %v1417 = vpack.c.b16 %v1291, %v1289
        %v1418 = vpack.c.b16 %v1292, %v1290
        %v1419 = vpack.c.b16 %v1295, %v1293
        %v1420 = vpack.c.b16 %v1296, %v1294
        %v1421 = vpack.c.b16 %v1299, %v1297
        %v1422 = vpack.c.b16 %v1300, %v1298
        %v1423 = vpack.c.b16 %v1303, %v1301
        %v1424 = vpack.c.b16 %v1304, %v1302
        %v1425 = vpack.c.b16 %v1307, %v1305
        %v1426 = vpack.c.b16 %v1308, %v1306
        %v1427 = vpack.c.b16 %v1311, %v1309
        %v1428 = vpack.c.b16 %v1312, %v1310
        %v1429 = vpack.c.b16 %v1315, %v1313
        %v1430 = vpack.c.b16 %v1316, %v1314
        %v1431 = vpack.c.b16 %v1319, %v1317
        %v1432 = vpack.c.b16 %v1320, %v1318
        %v1433 = vpack.c.b16 %v1323, %v1321
        %v1434 = vpack.c.b16 %v1324, %v1322
        %v1435 = vpack.c.b16 %v1327, %v1325
        %v1436 = vpack.c.b16 %v1328, %v1326
        %v1437 = vpack.c.b16 %v1331, %v1329
        %v1438 = vpack.c.b16 %v1332, %v1330
        %v1439 = vpack.c.b16 %v1335, %v1333
        %v1440 = vpack.c.b16 %v1336, %v1334
        %v1441 = vpack.c.b16 %v1339, %v1337
        %v1442 = vpack.c.b16 %v1340, %v1338
        %v1443 = vpack.c.b16 %v1343, %v1341
        %v1444 = vpack.c.b16 %v1344, %v1342
        %v1445 = vpack.c.b16 %v1347, %v1345
        %v1446 = vpack.c.b16 %v1348, %v1346
        %v1447 = vpack.c.b16 %v1351, %v1349
        %v1448 = vpack.c.b16 %v1352, %v1350
        %v1449 = vpack.c.b16 %v1355, %v1353
        %v1450 = vpack.c.b16 %v1356, %v1354
        %v1451 = vpack.c.b16 %v1359, %v1357
        %v1452 = vpack.c.b16 %v1360, %v1358
        %v1453 = vpack.c.b16 %v1363, %v1361
        %v1454 = vpack.c.b16 %v1364, %v1362
        %v1455 = vpack.c.b16 %v1367, %v1365
        %v1456 = vpack.c.b16 %v1368, %v1366
        %v1457 = vpack.c.b16 %v1371, %v1369
        %v1458 = vpack.c.b16 %v1372, %v1370
        %v1459 = vpack.c.b16 %v1375, %v1373
        %v1460 = vpack.c.b16 %v1376, %v1374
        %v1461 = vpack.c.b16 %v1379, %v1377
        %v1462 = vpack.c.b16 %v1380, %v1378
        %v1463 = vpack.c.b16 %v1383, %v1381
        %v1464 = vpack.c.b16 %v1384, %v1382
        %v1465 = vpack.c.b16 %v1387, %v1385
        %v1466 = vpack.c.b16 %v1388, %v1386
        %v1467 = vpack.c.b16 %v1391, %v1389
        %v1468 = vpack.c.b16 %v1392, %v1390
        %v1469 = vpack.c.b16 %v1395, %v1393
        %v1470 = vpack.c.b16 %v1396, %v1394
        %v1471 = vpack.c.b16 %v1399, %v1397
        %v1472 = vpack.c.b16 %v1400, %v1398
        %v1473 = vpack.c.b16 %v1403, %v1401
        %v1474 = vpack.c.b16 %v1404, %v1402
        %v1475 = vpack.c.b16 %v1407, %v1405
        %v1476 = vpack.c.b16 %v1408, %v1406
        %v1477 = vpack.c.b16 %v1411, %v1409
        %v1478 = vpack.c.b16 %v1412, %v1410
        %v1479 = vpack.c.b16 %v1415, %v1413
        %v1480 = vpack.c.b16 %v1416, %v1414
        %1545 = vmatpush.bf16.msra.mxu0 %v1431
        %1546 = vmatpush.bf16.msra.mxu0 %v1429
        %1547 = vmatpush.bf16.msra.mxu0 %v1427
        %1548 = vmatpush.bf16.msra.mxu0 %v1425
        %1549 = vmatpush.bf16.msra.mxu0 %v1423
        %1550 = vmatpush.bf16.msra.mxu0 %v1421
        %1551 = vmatpush.bf16.msra.mxu0 %v1419
        %1552 = vmatpush.bf16.msra.mxu0 %v1417
        %1553 = vmatmul.bf16.gmra.mxu0 %v1151
        %v1554 = vpop.f32.mrf.mxu0
        %v1555 = vadd.f32 %v1221, %v1554
        %v1556 = vpop.f32.mrf.mxu0
        %1557 = vdwg.mxu0
        %1558 = vmatpush.bf16.msra.mxu0 %v1447
        %1559 = vmatpush.bf16.msra.mxu0 %v1445
        %1560 = vmatpush.bf16.msra.mxu0 %v1443
        %1561 = vmatpush.bf16.msra.mxu0 %v1441
        %1562 = vmatpush.bf16.msra.mxu0 %v1439
        %1563 = vmatpush.bf16.msra.mxu0 %v1437
        %1564 = vmatpush.bf16.msra.mxu0 %v1435
        %1565 = vmatpush.bf16.msra.mxu0 %v1433
        %1566 = vmatmul.bf16.gmra.mxu0 %v1152
        %v1567 = vpop.f32.mrf.mxu0
        %v1568 = vadd.f32 %v1555, %v1567
        %v1569 = vpop.f32.mrf.mxu0
        %1570 = vdwg.mxu0
        %1571 = vmatpush.bf16.msra.mxu0 %v1463
        %1572 = vmatpush.bf16.msra.mxu0 %v1461
        %1573 = vmatpush.bf16.msra.mxu0 %v1459
        %1574 = vmatpush.bf16.msra.mxu0 %v1457
        %1575 = vmatpush.bf16.msra.mxu0 %v1455
        %1576 = vmatpush.bf16.msra.mxu0 %v1453
        %1577 = vmatpush.bf16.msra.mxu0 %v1451
        %1578 = vmatpush.bf16.msra.mxu0 %v1449
        %1579 = vmatmul.bf16.gmra.mxu0 %v1153
        %v1580 = vpop.f32.mrf.mxu0
        %v1581 = vadd.f32 %v1568, %v1580
        %v1582 = vpop.f32.mrf.mxu0
        %1583 = vdwg.mxu0
        %1584 = vmatpush.bf16.msra.mxu0 %v1479
        %1585 = vmatpush.bf16.msra.mxu0 %v1477
        %1586 = vmatpush.bf16.msra.mxu0 %v1475
        %1587 = vmatpush.bf16.msra.mxu0 %v1473
        %1588 = vmatpush.bf16.msra.mxu0 %v1471
        %1589 = vmatpush.bf16.msra.mxu0 %v1469
        %1590 = vmatpush.bf16.msra.mxu0 %v1467
        %1591 = vmatpush.bf16.msra.mxu0 %v1465
        %1592 = vmatmul.bf16.gmra.mxu0 %v1154
        %v1593 = vpop.f32.mrf.mxu0
        %v1594 = vadd.f32 %v1581, %v1593
        %v1595 = vpop.f32.mrf.mxu0
        %1596 = vdwg.mxu0
        %1597 = vmatpush.bf16.msra.mxu0 %v1432
        %1598 = vmatpush.bf16.msra.mxu0 %v1430
        %1599 = vmatpush.bf16.msra.mxu0 %v1428
        %1600 = vmatpush.bf16.msra.mxu0 %v1426
        %1601 = vmatpush.bf16.msra.mxu0 %v1424
        %1602 = vmatpush.bf16.msra.mxu0 %v1422
        %1603 = vmatpush.bf16.msra.mxu0 %v1420
        %1604 = vmatpush.bf16.msra.mxu0 %v1418
        %1605 = vmatmul.bf16.gmra.mxu0 %v1151
        %v1606 = vpop.f32.mrf.mxu0
        %v1607 = vadd.f32 %v1222, %v1606
        %v1608 = vpop.f32.mrf.mxu0
        %1609 = vdwg.mxu0
        %1610 = vmatpush.bf16.msra.mxu0 %v1448
        %1611 = vmatpush.bf16.msra.mxu0 %v1446
        %1612 = vmatpush.bf16.msra.mxu0 %v1444
        %1613 = vmatpush.bf16.msra.mxu0 %v1442
        %1614 = vmatpush.bf16.msra.mxu0 %v1440
        %1615 = vmatpush.bf16.msra.mxu0 %v1438
        %1616 = vmatpush.bf16.msra.mxu0 %v1436
        %1617 = vmatpush.bf16.msra.mxu0 %v1434
        %1618 = vmatmul.bf16.gmra.mxu0 %v1152
        %v1619 = vpop.f32.mrf.mxu0
        %v1620 = vadd.f32 %v1607, %v1619
        %v1621 = vpop.f32.mrf.mxu0
        %1622 = vdwg.mxu0
        %1623 = vmatpush.bf16.msra.mxu0 %v1464
        %1624 = vmatpush.bf16.msra.mxu0 %v1462
        %1625 = vmatpush.bf16.msra.mxu0 %v1460
        %1626 = vmatpush.bf16.msra.mxu0 %v1458
        %1627 = vmatpush.bf16.msra.mxu0 %v1456
        %1628 = vmatpush.bf16.msra.mxu0 %v1454
        %1629 = vmatpush.bf16.msra.mxu0 %v1452
        %1630 = vmatpush.bf16.msra.mxu0 %v1450
        %1631 = vmatmul.bf16.gmra.mxu0 %v1153
        %v1632 = vpop.f32.mrf.mxu0
        %v1633 = vadd.f32 %v1620, %v1632
        %v1634 = vpop.f32.mrf.mxu0
        %1635 = vdwg.mxu0
        %1636 = vmatpush.bf16.msra.mxu0 %v1480
        %1637 = vmatpush.bf16.msra.mxu0 %v1478
        %1638 = vmatpush.bf16.msra.mxu0 %v1476
        %1639 = vmatpush.bf16.msra.mxu0 %v1474
        %1640 = vmatpush.bf16.msra.mxu0 %v1472
        %1641 = vmatpush.bf16.msra.mxu0 %v1470
        %1642 = vmatpush.bf16.msra.mxu0 %v1468
        %1643 = vmatpush.bf16.msra.mxu0 %v1466
        %1644 = vmatmul.bf16.gmra.mxu0 %v1154
        %v1645 = vpop.f32.mrf.mxu0
        %v1646 = vadd.f32 %v1633, %v1645
        %v1647 = vpop.f32.mrf.mxu0
        %1648 = vdwg.mxu0
        %v1649 = vmax.f32 %v1594, 0.0
        %v1650 = vmax.f32 %v1646, 0.0
        %v1651 = vpack.c.bf16 %v1649, %v1649
        %v1652 = vpack.c.bf16 %v1650, %v1650
        %v1653 = vld [vmem:[#allocation13] sm:$0xf]
        %v1654 = vld [vmem:[#allocation13 + $0x4] sm:$0xf]
        %v1655 = vld [vmem:[#allocation13 + $0x8] sm:$0xf]
        %v1656 = vld [vmem:[#allocation13 + $0xc] sm:$0xf]
        %v1657 = vld [vmem:[#allocation13 + $0x10] sm:$0xf]
        %v1658 = vld [vmem:[#allocation13 + $0x14] sm:$0xf]
        %v1659 = vld [vmem:[#allocation13 + $0x18] sm:$0xf]
        %v1660 = vld [vmem:[#allocation13 + $0x1c] sm:$0xf]
        %v1661 = vld [vmem:[#allocation13 + $0x20] sm:$0xf]
        %v1662 = vld [vmem:[#allocation13 + $0x24] sm:$0xf]
        %v1663 = vld [vmem:[#allocation13 + $0x28] sm:$0xf]
        %v1664 = vld [vmem:[#allocation13 + $0x2c] sm:$0xf]
        %v1665 = vld [vmem:[#allocation13 + $0x30] sm:$0xf]
        %v1666 = vld [vmem:[#allocation13 + $0x34] sm:$0xf]
        %v1667 = vld [vmem:[#allocation13 + $0x38] sm:$0xf]
        %v1668 = vld [vmem:[#allocation13 + $0x3c] sm:$0xf]
        %v1669 = vld [vmem:[#allocation13 + $0x40] sm:$0xf]
        %v1670 = vld [vmem:[#allocation13 + $0x44] sm:$0xf]
        %v1671 = vld [vmem:[#allocation13 + $0x48] sm:$0xf]
        %v1672 = vld [vmem:[#allocation13 + $0x4c] sm:$0xf]
        %v1673 = vld [vmem:[#allocation13 + $0x50] sm:$0xf]
        %v1674 = vld [vmem:[#allocation13 + $0x54] sm:$0xf]
        %v1675 = vld [vmem:[#allocation13 + $0x58] sm:$0xf]
        %v1676 = vld [vmem:[#allocation13 + $0x5c] sm:$0xf]
        %v1677 = vld [vmem:[#allocation13 + $0x60] sm:$0xf]
        %v1678 = vld [vmem:[#allocation13 + $0x64] sm:$0xf]
        %v1679 = vld [vmem:[#allocation13 + $0x68] sm:$0xf]
        %v1680 = vld [vmem:[#allocation13 + $0x6c] sm:$0xf]
        %v1681 = vld [vmem:[#allocation13 + $0x70] sm:$0xf]
        %v1682 = vld [vmem:[#allocation13 + $0x74] sm:$0xf]
        %v1683 = vld [vmem:[#allocation13 + $0x78] sm:$0xf]
        %v1684 = vld [vmem:[#allocation13 + $0x7c] sm:$0xf]
        %v1685 = vld [vmem:[%s8] sm:$0x1]
        %v1687 = vperm.slane %v1685, 0
        %v1721 = vunpack.c.l.b16 %v1653
        %v1722 = vunpack.c.l.b16 %v1654
        %v1723 = vunpack.c.l.b16 %v1655
        %v1724 = vunpack.c.l.b16 %v1656
        %v1725 = vunpack.c.l.b16 %v1657
        %v1726 = vunpack.c.l.b16 %v1658
        %v1727 = vunpack.c.l.b16 %v1659
        %v1728 = vunpack.c.l.b16 %v1660
        %v1729 = vunpack.c.l.b16 %v1661
        %v1730 = vunpack.c.l.b16 %v1662
        %v1731 = vunpack.c.l.b16 %v1663
        %v1732 = vunpack.c.l.b16 %v1664
        %v1733 = vunpack.c.l.b16 %v1665
        %v1734 = vunpack.c.l.b16 %v1666
        %v1735 = vunpack.c.l.b16 %v1667
        %v1736 = vunpack.c.l.b16 %v1668
        %v1737 = vunpack.c.l.b16 %v1669
        %v1738 = vunpack.c.l.b16 %v1670
        %v1739 = vunpack.c.l.b16 %v1671
        %v1740 = vunpack.c.l.b16 %v1672
        %v1741 = vunpack.c.l.b16 %v1673
        %v1742 = vunpack.c.l.b16 %v1674
        %v1743 = vunpack.c.l.b16 %v1675
        %v1744 = vunpack.c.l.b16 %v1676
        %v1745 = vunpack.c.l.b16 %v1677
        %v1746 = vunpack.c.l.b16 %v1678
        %v1747 = vunpack.c.l.b16 %v1679
        %v1748 = vunpack.c.l.b16 %v1680
        %v1749 = vunpack.c.l.b16 %v1681
        %v1750 = vunpack.c.l.b16 %v1682
        %v1751 = vunpack.c.l.b16 %v1683
        %v1752 = vunpack.c.l.b16 %v1684
        %v1753 = vpack.c.b16 %v1722, %v1721
        %v1754 = vpack.c.b16 %v1724, %v1723
        %v1755 = vpack.c.b16 %v1726, %v1725
        %v1756 = vpack.c.b16 %v1728, %v1727
        %v1757 = vpack.c.b16 %v1730, %v1729
        %v1758 = vpack.c.b16 %v1732, %v1731
        %v1759 = vpack.c.b16 %v1734, %v1733
        %v1760 = vpack.c.b16 %v1736, %v1735
        %v1761 = vpack.c.b16 %v1738, %v1737
        %v1762 = vpack.c.b16 %v1740, %v1739
        %v1763 = vpack.c.b16 %v1742, %v1741
        %v1764 = vpack.c.b16 %v1744, %v1743
        %v1765 = vpack.c.b16 %v1746, %v1745
        %v1766 = vpack.c.b16 %v1748, %v1747
        %v1767 = vpack.c.b16 %v1750, %v1749
        %v1768 = vpack.c.b16 %v1752, %v1751
        %1785 = vmatpush.bf16.msra.mxu0 %v1760
        %1786 = vmatpush.bf16.msra.mxu0 %v1759
        %1787 = vmatpush.bf16.msra.mxu0 %v1758
        %1788 = vmatpush.bf16.msra.mxu0 %v1757
        %1789 = vmatpush.bf16.msra.mxu0 %v1756
        %1790 = vmatpush.bf16.msra.mxu0 %v1755
        %1791 = vmatpush.bf16.msra.mxu0 %v1754
        %1792 = vmatpush.bf16.msra.mxu0 %v1753
        %1793 = vmatmul.bf16.gmra.mxu0 %v1651
        %v1794 = vpop.f32.mrf.mxu0
        %v1795 = vadd.f32 %v1687, %v1794
        %v1796 = vpop.f32.mrf.mxu0
        %1797 = vdwg.mxu0
        %1798 = vmatpush.bf16.msra.mxu0 %v1768
        %1799 = vmatpush.bf16.msra.mxu0 %v1767
        %1800 = vmatpush.bf16.msra.mxu0 %v1766
        %1801 = vmatpush.bf16.msra.mxu0 %v1765
        %1802 = vmatpush.bf16.msra.mxu0 %v1764
        %1803 = vmatpush.bf16.msra.mxu0 %v1763
        %1804 = vmatpush.bf16.msra.mxu0 %v1762
        %1805 = vmatpush.bf16.msra.mxu0 %v1761
        %1806 = vmatmul.bf16.gmra.mxu0 %v1652
        %v1807 = vpop.f32.mrf.mxu0
        %v1808 = vadd.f32 %v1795, %v1807
        %v1809 = vpop.f32.mrf.mxu0
        %1810 = vdwg.mxu0
        %v1811 = vmax.f32 %v1808, 0.0
        %v1812 = vpack.c.bf16 %v1811, %v1811
        %v1813 = vld [vmem:[#allocation14] sm:$0xf]
        %v1814 = vld [vmem:[#allocation14 + $0x4] sm:$0xf]
        %v1815 = vld [vmem:[#allocation14 + $0x8] sm:$0xf]
        %v1816 = vld [vmem:[#allocation14 + $0xc] sm:$0xf]
        %v1817 = vld [vmem:[#allocation14 + $0x10] sm:$0xf]
        %v1818 = vld [vmem:[#allocation14 + $0x14] sm:$0xf]
        %v1819 = vld [vmem:[#allocation14 + $0x18] sm:$0xf]
        %v1820 = vld [vmem:[#allocation14 + $0x1c] sm:$0xf]
        %v1821 = vld [vmem:[#allocation14 + $0x20] sm:$0xf]
        %v1822 = vld [vmem:[#allocation14 + $0x24] sm:$0xf]
        %v1823 = vld [vmem:[#allocation14 + $0x28] sm:$0xf]
        %v1824 = vld [vmem:[#allocation14 + $0x2c] sm:$0xf]
        %v1825 = vld [vmem:[#allocation14 + $0x30] sm:$0xf]
        %v1826 = vld [vmem:[#allocation14 + $0x34] sm:$0xf]
        %v1827 = vld [vmem:[#allocation14 + $0x38] sm:$0xf]
        %v1828 = vld [vmem:[#allocation14 + $0x3c] sm:$0xf]
        %v1829 = vld [vmem:[%s10] sm:$0x1]
        %v1831 = vperm.slane %v1829, 0
        %v1849 = vunpack.c.l.b16 %v1813
        %v1850 = vunpack.c.l.b16 %v1814
        %v1851 = vunpack.c.l.b16 %v1815
        %v1852 = vunpack.c.l.b16 %v1816
        %v1853 = vunpack.c.l.b16 %v1817
        %v1854 = vunpack.c.l.b16 %v1818
        %v1855 = vunpack.c.l.b16 %v1819
        %v1856 = vunpack.c.l.b16 %v1820
        %v1857 = vunpack.c.l.b16 %v1821
        %v1858 = vunpack.c.l.b16 %v1822
        %v1859 = vunpack.c.l.b16 %v1823
        %v1860 = vunpack.c.l.b16 %v1824
        %v1861 = vunpack.c.l.b16 %v1825
        %v1862 = vunpack.c.l.b16 %v1826
        %v1863 = vunpack.c.l.b16 %v1827
        %v1864 = vunpack.c.l.b16 %v1828
        %v1865 = vpack.c.b16 %v1850, %v1849
        %v1866 = vpack.c.b16 %v1852, %v1851
        %v1867 = vpack.c.b16 %v1854, %v1853
        %v1868 = vpack.c.b16 %v1856, %v1855
        %v1869 = vpack.c.b16 %v1858, %v1857
        %v1870 = vpack.c.b16 %v1860, %v1859
        %v1871 = vpack.c.b16 %v1862, %v1861
        %v1872 = vpack.c.b16 %v1864, %v1863
        %1881 = vmatpush.bf16.msra.mxu0 %v1872
        %1882 = vmatpush.bf16.msra.mxu0 %v1871
        %1883 = vmatpush.bf16.msra.mxu0 %v1870
        %1884 = vmatpush.bf16.msra.mxu0 %v1869
        %1885 = vmatpush.bf16.msra.mxu0 %v1868
        %1886 = vmatpush.bf16.msra.mxu0 %v1867
        %1887 = vmatpush.bf16.msra.mxu0 %v1866
        %1888 = vmatpush.bf16.msra.mxu0 %v1865
        %1889 = vmatmul.bf16.gmra.mxu0 %v1812
        %v1890 = vpop.f32.mrf.mxu0
        %v1891 = vadd.f32 %v1831, %v1890
        %v1892 = vpop.f32.mrf.mxu0
        %1893 = vdwg.mxu0
        %1894 = vst [vmem:[%s515] sm:$0xff] %v1891
        %s1895 = sand.u32 %s276, 1
        %s1896 = scalar_lea.sflag [#allocation4], %s1895
        %s1897 = sand.u32 %s276, 1
        %s1898 = smul.addr %s1897, 8
        %s1899 = scalar_lea.vmem [#allocation16], %s1898
        // Predicated region
        $region97: #{tpu_custom_call.1} parent=63 // pred_check
          %p1900 = pneg %p286
        $region98: #{tpu_custom_call.1} parent=63 // pred_check_branch
          %1902 = sbr.rel (%p1900) target = $region100
        $region99: #{tpu_custom_call.1} parent=63 // pred_region
          %1904 = vsyncadd %s1896, 0
          %s1905 = smul.addr %s32, 8
          %s1906 = scalar_lea.hbm %s11, %s1905
          %s1908 = sshll.u32 %s1899, 4
          %s1909 = int_to_ptr.vmem [resolvable:$true] %s1908
          %s1910 = sshll.u32 %s1906, 4
          %s1911 = int_to_ptr.hbm [resolvable:$true] %s1910
          %1913 = dma.vmem_to_hbm [thread:$0]  %s1909, 128, %s1911, %s1896
        $region100: #{tpu_custom_call.1} parent=63 // pred_fallthru
          _
      $region64: #{tpu_custom_call.1} parent=5 // pred_fallthru
        _
      %p1914 = scmp.le.s32.totalorder 2, %s27
      // Predicated region
      $region101: #{tpu_custom_call.1} parent=5 // pred_check
        %p1915 = pneg %p1914
      $region102: #{tpu_custom_call.1} parent=5 // pred_check_branch
        %1917 = sbr.rel (%p1915) target = $region104
      $region103: #{tpu_custom_call.1} parent=5 // pred_region
        %s1918 = ssub.s32 %s27, 2
        // Predicated region
        $region105: #{tpu_custom_call.1} parent=103 // pred_check
          %p1919 = pneg %p292
        $region106: #{tpu_custom_call.1} parent=103 // pred_check_branch
          %1921 = sbr.rel (%p1919) target = $region108
        $region107: #{tpu_custom_call.1} parent=103 // pred_region
          %s1922 = sand.u32 %s277, 1
          %s1923 = scalar_lea.sflag [#allocation4], %s1922
          %s1924 = sand.u32 %s277, 1
          %s1925 = smul.addr %s1924, 8
          %s1926 = scalar_lea.vmem [#allocation16], %s1925
          %1928 = dma.done %s1923, 128
        $region108: #{tpu_custom_call.1} parent=103 // pred_fallthru
          _
      $region104: #{tpu_custom_call.1} parent=5 // pred_fallthru
        _
    $region6: #{tpu_custom_call.1} parent=1 // loop_footer
      %s31 = sadd.s32 1, %s27
    $region7: #{tpu_custom_call.1} parent=1 // loop_footer_branch
      %26 = sbr.rel target = $region3
    $region8: #{tpu_custom_call.1} parent=1 // loop_exit
      _
    %1929 = vsyncpa [#allocation3], 1
    %s1930 = scalar_lea.sflag [#allocation3], 1
    %1931 = vsyncpa %s1930, 1
    %1932 = vsyncpa [#allocation6], 1
    %1933 = vsyncpa [#allocation9], 1
    %1934 = vsyncpa [#allocation12], 1
    %1935 = vsyncpa [#allocation15], 1
    %1936 = vsyncpa [#allocation4], 1
    %s1937 = scalar_lea.sflag [#allocation4], 1
    %1938 = vsyncpa %s1937, 1

</llo_original>
